<compile_context>
chip_gen: v7x
topology: tpu7x:2x2x1
jax: 0.10.0
libtpu: 0.0.40
codegen_flags: <defaults>
</compile_context>

<pallas_src>
import math

import numpy as np
import jax
import jax.numpy as jnp
from jax import lax
from jax.experimental import pallas as pl
from jax.experimental.pallas import tpu as pltpu


_STAGE_CALL_CACHE = {}


def _samples_per_step(N):
    for b in (8, 4, 2):
        if N % b == 0:
            return b
    return 1


def _build_stage_call(N, H, W, Cin, Cout, B):
    """One MGD generation stage: conv3x3 -> ReLU -> conv3x3, then per-position
    squared error against the teacher.

    Grid: (N // B,), B samples per step, batch axis "parallel".

    Inputs:
      x  : (N, Cin,  H*W)  bfloat16  student features (channels-first, flat HW)
      t  : (N, Cout, H*W)  float32   teacher features
      m  : (N, 1,    H*W)  bfloat16  0/1 MGD spatial mask
      w1 : (9, Cout, Cin)  bfloat16  conv1 weights, tap-major
      b1 : (Cout, 1)       float32
      w2 : (9, Cout, Cout) bfloat16  conv2 weights, tap-major
      b2 : (Cout, 1)       float32
    Output:
      (N, 1, H*W) float32  per-sample, per-position sum over channels of
                           (generated - teacher)^2  (reduced / scaled in JAX).
    """
    HW = H * W
    # Pad the flat-HW line buffer by a full lane granule (>= W+1) so the
    # interior store, the strip zeroing and the centre-tap window are aligned.
    PAD = ((W + 1 + 127) // 128) * 128
    HWP = HW + 2 * PAD

    def kernel(x_ref, t_ref, m_ref, w1_ref, b1_ref, w2_ref, b2_ref,
               out_ref, xpad, hpad):
        # Column-edge masks, built on-chip: kill the horizontal wrap-around of
        # the flat-HW layout for the kx = -1 / +1 taps.
        col = lax.broadcasted_iota(jnp.int32, (1, HW), 1) % W
        cm_l = jnp.where(col != 0, 1.0, 0.0).astype(jnp.bfloat16)       # col 0
        cm_r = jnp.where(col != W - 1, 1.0, 0.0).astype(jnp.bfloat16)   # col W-1

        # Zero the pad strips once per grid step.  The interior is fully
        # overwritten for every sample and the strips never receive data, so
        # no full-scratch clears are needed (and this is safe under megacore
        # partitioning since it runs on every step).
        xpad[:, 0:PAD] = jnp.zeros((Cin, PAD), jnp.bfloat16)
        xpad[:, PAD + HW:HWP] = jnp.zeros((Cin, PAD), jnp.bfloat16)
        hpad[:, 0:PAD] = jnp.zeros((Cout, PAD), jnp.bfloat16)
        hpad[:, PAD + HW:HWP] = jnp.zeros((Cout, PAD), jnp.bfloat16)

        def conv3x3(pad_ref, w_ref):
            # 3x3 "same" conv as 9 accumulated MXU matmuls fed straight from
            # shifted windows of the padded line buffer (no im2col scratch).
            # Vertical overflow lands in the zero pad strips; horizontal
            # wrap-around is killed by the column masks.
            # TODO(synk): the 8 off-centre windows are lane-misaligned reads
            # (XLU rotates); a 2-D (H, W-on-lanes) layout would remove them.
            acc = jnp.zeros((Cout, HW), jnp.float32)
            for ky in (-1, 0, 1):
                for kx in (-1, 0, 1):
                    tap = (ky + 1) * 3 + (kx + 1)
                    start = PAD + ky * W + kx               # static per tap
                    win = pad_ref[:, start:start + HW]      # (C, HW) bf16
                    if kx == -1:
                        win = win * cm_l
                    elif kx == 1:
                        win = win * cm_r
                    acc = acc + jnp.dot(w_ref[tap], win,
                                        preferred_element_type=jnp.float32)
            return acc

        for b in range(B):   # static: B samples per grid step
            # conv1 on the masked student features, ReLU
            xpad[:, PAD:PAD + HW] = x_ref[b] * m_ref[b]                # bf16
            h = jnp.maximum(conv3x3(xpad, w1_ref) + b1_ref[...], 0.0)  # f32
            # conv2 -> generated feature, squared error vs teacher
            hpad[:, PAD:PAD + HW] = h.astype(jnp.bfloat16)
            diff = conv3x3(hpad, w2_ref) + b2_ref[...] - t_ref[b]      # f32
            # Lane-dense per-position partials; cross-lane reduce stays in JAX.
            out_ref[b] = jnp.sum(diff * diff, axis=0, keepdims=True)

    grid_spec = pltpu.PrefetchScalarGridSpec(
        num_scalar_prefetch=0,
        grid=(N // B,),
        in_specs=[
            pl.BlockSpec((B, Cin, HW), lambda i: (i, 0, 0)),      # x   (bf16)
            pl.BlockSpec((B, Cout, HW), lambda i: (i, 0, 0)),     # t   (f32)
            pl.BlockSpec((B, 1, HW), lambda i: (i, 0, 0)),        # mask (bf16)
            pl.BlockSpec((9, Cout, Cin), lambda i: (0, 0, 0)),    # w1 packed
            pl.BlockSpec((Cout, 1), lambda i: (0, 0)),            # b1
            pl.BlockSpec((9, Cout, Cout), lambda i: (0, 0, 0)),   # w2 packed
            pl.BlockSpec((Cout, 1), lambda i: (0, 0)),            # b2
        ],
        out_specs=pl.BlockSpec((B, 1, HW), lambda i: (i, 0, 0)),
        scratch_shapes=[
            pltpu.VMEM((Cin, HWP), jnp.bfloat16),    # padded masked-student line
            pltpu.VMEM((Cout, HWP), jnp.bfloat16),   # padded hidden line
        ],
    )

    # TODO(synk): production-sized stages (e.g. C=256, H=W>=64) need spatial
    # (H) tiling with a 1-row halo, an explicit vmem_limit_bytes budget
    # (64 MiB physical VMEM on v7x) and a second "parallel" grid axis.
    return pl.pallas_call(
        kernel,
        out_shape=jax.ShapeDtypeStruct((N, 1, HW), jnp.float32),
        grid_spec=grid_spec,
        compiler_params=pltpu.CompilerParams(
            dimension_semantics=("parallel",)),   # per-sample outputs: no race
    )


def _get_stage_call(N, H, W, Cin, Cout, B):
    key = (N, H, W, Cin, Cout, B)
    call = _STAGE_CALL_CACHE.get(key)
    if call is None:
        call = _build_stage_call(N, H, W, Cin, Cout, B)
        _STAGE_CALL_CACHE[key] = call
    return call


class MGDLossPallas:
    """JAX/Pallas port of MGDLoss (forward only).  Generation-head weights use
    PyTorch Conv2d-style uniform init, drawn deterministically from `key`."""

    def __init__(self, channels_s, channels_t, alpha_mgd=2e-5,
                 lambda_mgd=0.65, key=None):
        self.alpha_mgd = float(alpha_mgd)
        self.lambda_mgd = float(lambda_mgd)
        self.channels_s = list(channels_s)
        self.channels_t = list(channels_t)
        if key is None:
            key = jax.random.PRNGKey(42)

        self.params = []   # per stage: (w1 OIHW f32, b1, w2 OIHW f32, b2)
        self.packed = []   # per stage: kernel-layout weights (bf16) + biases
        for cs, ct in zip(channels_s, channels_t):
            key, k1, k2, k3, k4 = jax.random.split(key, 5)
            bound1 = 1.0 / math.sqrt(cs * 9)
            bound2 = 1.0 / math.sqrt(ct * 9)
            w1 = jax.random.uniform(k1, (ct, cs, 3, 3), jnp.float32, -bound1, bound1)
            b1 = jax.random.uniform(k2, (ct,), jnp.float32, -bound1, bound1)
            w2 = jax.random.uniform(k3, (ct, ct, 3, 3), jnp.float32, -bound2, bound2)
            b2 = jax.random.uniform(k4, (ct,), jnp.float32, -bound2, bound2)
            self.params.append((w1, b1, w2, b2))
            # OIHW -> (KH, KW, O, I) -> (9, O, I); tap = ky*3 + kx
            w1p = jnp.transpose(w1, (2, 3, 0, 1)).reshape(9, ct, cs).astype(jnp.bfloat16)
            w2p = jnp.transpose(w2, (2, 3, 0, 1)).reshape(9, ct, ct).astype(jnp.bfloat16)
            self.packed.append((w1p, b1.reshape(ct, 1), w2p, b2.reshape(ct, 1)))

    def _stage_partials(self, s, t, mask, idx):
        N, Cs, H, W = s.shape
        Ct = t.shape[1]
        HW = H * W
        w1p, b1r, w2p, b2r = self.packed[idx]
        # channels-first flat-HW layout: free reshapes, NO transposes of x / t.
        # x streams in bf16 (the 0/1 mask multiply is exact in bf16).
        x = s.reshape(N, Cs, HW).astype(jnp.bfloat16)
        tt = t.reshape(N, Ct, HW).astype(jnp.float32)
        m = mask.reshape(N, 1, HW).astype(jnp.bfloat16)
        B = _samples_per_step(N)
        call = _get_stage_call(N, H, W, Cs, Ct, B)
        return call(x, tt, m, w1p, b1r, w2p, b2r)       # (N, 1, HW)

    def __call__(self, y_s, y_t, key=None, masks=None, layer=None):
        """Forward pass.  `masks` (list of (N,1,H,W) 0/1 arrays) overrides the
        random MGD masks; otherwise they are drawn from `key`."""
        assert len(y_s) == len(y_t)
        if masks is None:
            # TODO(synk): torch.rand's RNG stream cannot be reproduced; the
            # Bernoulli spatial mask is drawn from jax.random instead
            # (identical semantics: zero with probability lambda_mgd).
            assert key is not None, "need a PRNG key when masks are not given"
            masks = []
            for t in y_t:
                N, _, H, W = t.shape
                key, sub = jax.random.split(key)
                u = jax.random.uniform(sub, (N, 1, H, W), jnp.float32)
                masks.append(jnp.where(u > 1.0 - self.lambda_mgd, 0.0, 1.0))
        losses = []
        for i, (s, t) in enumerate(zip(y_s, y_t)):
            idx = -1 if layer == 'outlayer' else i
            N = t.shape[0]
            partials = self._stage_partials(s, t, masks[i], idx)   # (N, 1, HW)
            losses.append(jnp.sum(partials) / N * self.alpha_mgd)
        return sum(losses)

    # Pure-JAX reference (lax.conv, same bf16-operand / f32-accum precision as
    # the kernel) with explicit masks — used for correctness checking.
    def reference(self, y_s, y_t, masks, layer=None):
        total = jnp.float32(0.0)
        dn = ('NCHW', 'OIHW', 'NCHW')
        for i, (s, t) in enumerate(zip(y_s, y_t)):
            idx = -1 if layer == 'outlayer' else i
            w1, b1, w2, b2 = self.params[idx]
            N = t.shape[0]
            masked = s.astype(jnp.bfloat16) * masks[i].astype(jnp.bfloat16)
            h = lax.conv_general_dilated(masked, w1.astype(jnp.bfloat16),
                                         (1, 1), 'SAME', dimension_numbers=dn,
                                         preferred_element_type=jnp.float32)
            h = jnp.maximum(h + b1.reshape(1, -1, 1, 1), 0.0)
            o = lax.conv_general_dilated(h.astype(jnp.bfloat16),
                                         w2.astype(jnp.bfloat16),
                                         (1, 1), 'SAME', dimension_numbers=dn,
                                         preferred_element_type=jnp.float32)
            o = o + b2.reshape(1, -1, 1, 1)
            total = total + jnp.sum((o - t) ** 2) / N * self.alpha_mgd
        return total


if __name__ == "__main__":
    # Small synthetic shapes consistent with MGDLoss: two stages of NCHW maps.
    N, H, W = 2, 16, 16
    channels_s = [4, 8]
    channels_t = [8, 8]

    key = jax.random.PRNGKey(0)
    key, *ks = jax.random.split(key, 5)
    y_s = [jax.random.normal(ks[0], (N, channels_s[0], H, W), jnp.float32),
           jax.random.normal(ks[1], (N, channels_s[1], H, W), jnp.float32)]
    y_t = [jax.random.normal(ks[2], (N, channels_t[0], H, W), jnp.float32),
           jax.random.normal(ks[3], (N, channels_t[1], H, W), jnp.float32)]

    mgd = MGDLossPallas(channels_s, channels_t, alpha_mgd=2e-5,
                        lambda_mgd=0.65, key=jax.random.PRNGKey(7))

    # ---- correctness: explicit 65%-masking random masks vs lax.conv ref ----
    mkeys = jax.random.split(jax.random.PRNGKey(3), len(y_t))
    masks = []
    for mk, t in zip(mkeys, y_t):
        u = jax.random.uniform(mk, (t.shape[0], 1, t.shape[2], t.shape[3]),
                               jnp.float32)
        masks.append(jnp.where(u > 1.0 - mgd.lambda_mgd, 0.0, 1.0))

    loss = jax.block_until_ready(mgd(y_s, y_t, masks=masks))
    ref = jax.block_until_ready(mgd.reference(y_s, y_t, masks))
    np.testing.assert_allclose(np.asarray(loss), np.asarray(ref),
                               rtol=1e-2, atol=1e-6)

    # ---- stochastic forward (masks drawn internally from a JAX key) --------
    loss2 = jax.block_until_ready(mgd(y_s, y_t, key=jax.random.PRNGKey(11)))
    assert bool(jnp.isfinite(loss2)), "loss is not finite"

    print("KERNEL_OK")
</pallas_src>

<mosaic_0001>
module attributes {stable_mosaic.version = 11 : i64} {
  func.func @kernel(%arg0: i32, %arg1: memref<2x4x256xbf16, #tpu.memory_space<vmem>>, %arg2: memref<2x8x256xf32, #tpu.memory_space<vmem>>, %arg3: memref<2x1x256xbf16, #tpu.memory_space<vmem>>, %arg4: memref<9x8x4xbf16, #tpu.memory_space<vmem>>, %arg5: memref<8x1xf32, #tpu.memory_space<vmem>>, %arg6: memref<9x8x8xbf16, #tpu.memory_space<vmem>>, %arg7: memref<8x1xf32, #tpu.memory_space<vmem>>, %arg8: memref<2x1x256xf32, #tpu.memory_space<vmem>>, %arg9: memref<4x512xbf16, #tpu.memory_space<vmem>>, %arg10: memref<8x512xbf16, #tpu.memory_space<vmem>>) attributes {dimension_semantics = [#tpu.dimension_semantics<parallel>], iteration_bounds = array<i64: 1>, scalar_prefetch = 0 : i64, scratch_operands = 2 : i64, tpu.core_type = #tpu.core_type<tc>, window_params = [{transform_indices = @transform_0, window_bounds = array<i64: 2, 4, 256>}, {transform_indices = @transform_1, window_bounds = array<i64: 2, 8, 256>}, {transform_indices = @transform_2, window_bounds = array<i64: 2, 1, 256>}, {pipeline_mode = #tpu.pipeline_mode<synchronous>, transform_indices = @transform_3, window_bounds = array<i64: 9, 8, 4>}, {pipeline_mode = #tpu.pipeline_mode<synchronous>, transform_indices = @transform_4, window_bounds = array<i64: 8, 1>}, {pipeline_mode = #tpu.pipeline_mode<synchronous>, transform_indices = @transform_5, window_bounds = array<i64: 9, 8, 8>}, {pipeline_mode = #tpu.pipeline_mode<synchronous>, transform_indices = @transform_6, window_bounds = array<i64: 8, 1>}, {transform_indices = @transform_7, window_bounds = array<i64: 2, 1, 256>}]} {
    %0 = tpu.iota {dimensions = array<i32: 1>} : vector<1x256xi32>
    %c16_i32 = arith.constant 16 : i32
    %c0_i32 = arith.constant 0 : i32
    %1 = arith.cmpi eq, %c16_i32, %c0_i32 : i32
    %c1_i32 = arith.constant 1 : i32
    %2 = arith.select %1, %c1_i32, %c16_i32 : i32
    %3 = vector.broadcast %2 : i32 to vector<1x256xi32>
    %4 = arith.remsi %0, %3 : vector<1x256xi32>
    %c0_i32_0 = arith.constant 0 : i32
    %5 = vector.broadcast %c0_i32_0 : i32 to vector<1x256xi32>
    %6 = arith.cmpi ne, %4, %5 : vector<1x256xi32>
    %c0_i32_1 = arith.constant 0 : i32
    %7 = vector.broadcast %c0_i32_1 : i32 to vector<1x256xi32>
    %8 = arith.cmpi slt, %4, %7 : vector<1x256xi32>
    %c0_i32_2 = arith.constant 0 : i32
    %9 = arith.cmpi slt, %2, %c0_i32_2 : i32
    %10 = vector.broadcast %9 : i1 to vector<1x256xi1>
    %11 = vector.broadcast %10 : vector<1x256xi1> to vector<1x256xi1>
    %12 = arith.xori %8, %11 : vector<1x256xi1>
    %13 = arith.andi %12, %6 : vector<1x256xi1>
    %14 = vector.broadcast %2 : i32 to vector<1x256xi32>
    %15 = arith.addi %4, %14 : vector<1x256xi32>
    %16 = arith.select %13, %15, %4 : vector<1x256xi1>, vector<1x256xi32>
    %c0_i32_3 = arith.constant 0 : i32
    %17 = vector.broadcast %c0_i32_3 : i32 to vector<1x256xi32>
    %18 = arith.cmpi ne, %16, %17 : vector<1x256xi32>
    %cst = arith.constant 1.000000e+00 : f32
    %cst_4 = arith.constant 0.000000e+00 : f32
    %19 = vector.broadcast %cst : f32 to vector<1x256xf32>
    %20 = vector.broadcast %cst_4 : f32 to vector<1x256xf32>
    %21 = arith.select %18, %19, %20 : vector<1x256xi1>, vector<1x256xf32>
    %22 = arith.truncf %21 : vector<1x256xf32> to vector<1x256xbf16>
    %c15_i32 = arith.constant 15 : i32
    %23 = vector.broadcast %c15_i32 : i32 to vector<1x256xi32>
    %24 = arith.cmpi ne, %16, %23 : vector<1x256xi32>
    %cst_5 = arith.constant 1.000000e+00 : f32
    %cst_6 = arith.constant 0.000000e+00 : f32
    %25 = vector.broadcast %cst_5 : f32 to vector<1x256xf32>
    %26 = vector.broadcast %cst_6 : f32 to vector<1x256xf32>
    %27 = arith.select %24, %25, %26 : vector<1x256xi1>, vector<1x256xf32>
    %28 = arith.truncf %27 : vector<1x256xf32> to vector<1x256xbf16>
    %cst_7 = arith.constant 0.000000e+00 : bf16
    %29 = vector.broadcast %cst_7 : bf16 to vector<4x128xbf16>
    %c0 = arith.constant 0 : index
    %c0_8 = arith.constant 0 : index
    %30 = vector.load %arg9[%c0, %c0_8] : memref<4x512xbf16, #tpu.memory_space<vmem>>, vector<4x128xbf16>
    tpu.vector_store %arg9[%c0, %c0_8], %29 {strides = array<i32>} : memref<4x512xbf16, #tpu.memory_space<vmem>>, vector<4x128xbf16>,
    %cst_9 = arith.constant 0.000000e+00 : bf16
    %31 = vector.broadcast %cst_9 : bf16 to vector<4x128xbf16>
    %c0_10 = arith.constant 0 : index
    %c384 = arith.constant 384 : index
    %32 = vector.load %arg9[%c0_10, %c384] : memref<4x512xbf16, #tpu.memory_space<vmem>>, vector<4x128xbf16>
    tpu.vector_store %arg9[%c0_10, %c384], %31 {strides = array<i32>} : memref<4x512xbf16, #tpu.memory_space<vmem>>, vector<4x128xbf16>,
    %cst_11 = arith.constant 0.000000e+00 : bf16
    %33 = vector.broadcast %cst_11 : bf16 to vector<8x128xbf16>
    %c0_12 = arith.constant 0 : index
    %c0_13 = arith.constant 0 : index
    %34 = vector.load %arg10[%c0_12, %c0_13] : memref<8x512xbf16, #tpu.memory_space<vmem>>, vector<8x128xbf16>
    tpu.vector_store %arg10[%c0_12, %c0_13], %33 {strides = array<i32>} : memref<8x512xbf16, #tpu.memory_space<vmem>>, vector<8x128xbf16>,
    %cst_14 = arith.constant 0.000000e+00 : bf16
    %35 = vector.broadcast %cst_14 : bf16 to vector<8x128xbf16>
    %c0_15 = arith.constant 0 : index
    %c384_16 = arith.constant 384 : index
    %36 = vector.load %arg10[%c0_15, %c384_16] : memref<8x512xbf16, #tpu.memory_space<vmem>>, vector<8x128xbf16>
    tpu.vector_store %arg10[%c0_15, %c384_16], %35 {strides = array<i32>} : memref<8x512xbf16, #tpu.memory_space<vmem>>, vector<8x128xbf16>,
    %c0_17 = arith.constant 0 : index
    %c0_18 = arith.constant 0 : index
    %c0_19 = arith.constant 0 : index
    %37 = vector.load %arg1[%c0_17, %c0_18, %c0_19] : memref<2x4x256xbf16, #tpu.memory_space<vmem>>, vector<1x4x256xbf16>
    %38 = vector.shape_cast %37 : vector<1x4x256xbf16> to vector<4x256xbf16>
    %c0_20 = arith.constant 0 : index
    %c0_21 = arith.constant 0 : index
    %c0_22 = arith.constant 0 : index
    %39 = vector.load %arg3[%c0_20, %c0_21, %c0_22] : memref<2x1x256xbf16, #tpu.memory_space<vmem>>, vector<1x1x256xbf16>
    %40 = vector.shape_cast %39 : vector<1x1x256xbf16> to vector<1x256xbf16>
    %41 = vector.broadcast %40 : vector<1x256xbf16> to vector<4x256xbf16>
    %42 = arith.mulf %38, %41 : vector<4x256xbf16>
    %c0_23 = arith.constant 0 : index
    %c128 = arith.constant 128 : index
    %43 = vector.load %arg9[%c0_23, %c128] : memref<4x512xbf16, #tpu.memory_space<vmem>>, vector<4x256xbf16>
    tpu.vector_store %arg9[%c0_23, %c128], %42 {strides = array<i32>} : memref<4x512xbf16, #tpu.memory_space<vmem>>, vector<4x256xbf16>,
    %cst_24 = arith.constant 0.000000e+00 : f32
    %44 = vector.broadcast %cst_24 : f32 to vector<8x256xf32>
    %c0_25 = arith.constant 0 : index
    %c111 = arith.constant 111 : index
    %45 = vector.load %arg9[%c0_25, %c111] : memref<4x512xbf16, #tpu.memory_space<vmem>>, vector<4x256xbf16>
    %46 = vector.broadcast %22 : vector<1x256xbf16> to vector<4x256xbf16>
    %47 = arith.mulf %45, %46 : vector<4x256xbf16>
    %c0_26 = arith.constant 0 : index
    %c0_27 = arith.constant 0 : index
    %c0_28 = arith.constant 0 : index
    %48 = vector.load %arg4[%c0_26, %c0_27, %c0_28] : memref<9x8x4xbf16, #tpu.memory_space<vmem>>, vector<1x8x4xbf16>
    %49 = vector.shape_cast %48 : vector<1x8x4xbf16> to vector<8x4xbf16>
    %cst_29 = arith.constant dense<0.000000e+00> : vector<8x256xf32>
    %50 = tpu.matmul %49, %47, %cst_29 {dimension_numbers = #tpu.dot_dimension_numbers<[1], [0], [0], [1], [0, 0, 1, 1], [], []>} : vector<8x4xbf16>, vector<4x256xbf16>, vector<8x256xf32> -> vector<8x256xf32>
    %51 = arith.addf %44, %50 : vector<8x256xf32>
    %c0_30 = arith.constant 0 : index
    %c112 = arith.constant 112 : index
    %52 = vector.load %arg9[%c0_30, %c112] : memref<4x512xbf16, #tpu.memory_space<vmem>>, vector<4x256xbf16>
    %c1 = arith.constant 1 : index
    %c0_31 = arith.constant 0 : index
    %c0_32 = arith.constant 0 : index
    %53 = vector.load %arg4[%c1, %c0_31, %c0_32] : memref<9x8x4xbf16, #tpu.memory_space<vmem>>, vector<1x8x4xbf16>
    %54 = vector.shape_cast %53 : vector<1x8x4xbf16> to vector<8x4xbf16>
    %cst_33 = arith.constant dense<0.000000e+00> : vector<8x256xf32>
    %55 = tpu.matmul %54, %52, %cst_33 {dimension_numbers = #tpu.dot_dimension_numbers<[1], [0], [0], [1], [0, 0, 1, 1], [], []>} : vector<8x4xbf16>, vector<4x256xbf16>, vector<8x256xf32> -> vector<8x256xf32>
    %56 = arith.addf %51, %55 : vector<8x256xf32>
    %c0_34 = arith.constant 0 : index
    %c113 = arith.constant 113 : index
    %57 = vector.load %arg9[%c0_34, %c113] : memref<4x512xbf16, #tpu.memory_space<vmem>>, vector<4x256xbf16>
    %58 = vector.broadcast %28 : vector<1x256xbf16> to vector<4x256xbf16>
    %59 = arith.mulf %57, %58 : vector<4x256xbf16>
    %c2 = arith.constant 2 : index
    %c0_35 = arith.constant 0 : index
    %c0_36 = arith.constant 0 : index
    %60 = vector.load %arg4[%c2, %c0_35, %c0_36] : memref<9x8x4xbf16, #tpu.memory_space<vmem>>, vector<1x8x4xbf16>
    %61 = vector.shape_cast %60 : vector<1x8x4xbf16> to vector<8x4xbf16>
    %cst_37 = arith.constant dense<0.000000e+00> : vector<8x256xf32>
    %62 = tpu.matmul %61, %59, %cst_37 {dimension_numbers = #tpu.dot_dimension_numbers<[1], [0], [0], [1], [0, 0, 1, 1], [], []>} : vector<8x4xbf16>, vector<4x256xbf16>, vector<8x256xf32> -> vector<8x256xf32>
    %63 = arith.addf %56, %62 : vector<8x256xf32>
    %c0_38 = arith.constant 0 : index
    %c127 = arith.constant 127 : index
    %64 = vector.load %arg9[%c0_38, %c127] : memref<4x512xbf16, #tpu.memory_space<vmem>>, vector<4x256xbf16>
    %65 = vector.broadcast %22 : vector<1x256xbf16> to vector<4x256xbf16>
    %66 = arith.mulf %64, %65 : vector<4x256xbf16>
    %c3 = arith.constant 3 : index
    %c0_39 = arith.constant 0 : index
    %c0_40 = arith.constant 0 : index
    %67 = vector.load %arg4[%c3, %c0_39, %c0_40] : memref<9x8x4xbf16, #tpu.memory_space<vmem>>, vector<1x8x4xbf16>
    %68 = vector.shape_cast %67 : vector<1x8x4xbf16> to vector<8x4xbf16>
    %cst_41 = arith.constant dense<0.000000e+00> : vector<8x256xf32>
    %69 = tpu.matmul %68, %66, %cst_41 {dimension_numbers = #tpu.dot_dimension_numbers<[1], [0], [0], [1], [0, 0, 1, 1], [], []>} : vector<8x4xbf16>, vector<4x256xbf16>, vector<8x256xf32> -> vector<8x256xf32>
    %70 = arith.addf %63, %69 : vector<8x256xf32>
    %c0_42 = arith.constant 0 : index
    %c128_43 = arith.constant 128 : index
    %71 = vector.load %arg9[%c0_42, %c128_43] : memref<4x512xbf16, #tpu.memory_space<vmem>>, vector<4x256xbf16>
    %c4 = arith.constant 4 : index
    %c0_44 = arith.constant 0 : index
    %c0_45 = arith.constant 0 : index
    %72 = vector.load %arg4[%c4, %c0_44, %c0_45] : memref<9x8x4xbf16, #tpu.memory_space<vmem>>, vector<1x8x4xbf16>
    %73 = vector.shape_cast %72 : vector<1x8x4xbf16> to vector<8x4xbf16>
    %cst_46 = arith.constant dense<0.000000e+00> : vector<8x256xf32>
    %74 = tpu.matmul %73, %71, %cst_46 {dimension_numbers = #tpu.dot_dimension_numbers<[1], [0], [0], [1], [0, 0, 1, 1], [], []>} : vector<8x4xbf16>, vector<4x256xbf16>, vector<8x256xf32> -> vector<8x256xf32>
    %75 = arith.addf %70, %74 : vector<8x256xf32>
    %c0_47 = arith.constant 0 : index
    %c129 = arith.constant 129 : index
    %76 = vector.load %arg9[%c0_47, %c129] : memref<4x512xbf16, #tpu.memory_space<vmem>>, vector<4x256xbf16>
    %77 = vector.broadcast %28 : vector<1x256xbf16> to vector<4x256xbf16>
    %78 = arith.mulf %76, %77 : vector<4x256xbf16>
    %c5 = arith.constant 5 : index
    %c0_48 = arith.constant 0 : index
    %c0_49 = arith.constant 0 : index
    %79 = vector.load %arg4[%c5, %c0_48, %c0_49] : memref<9x8x4xbf16, #tpu.memory_space<vmem>>, vector<1x8x4xbf16>
    %80 = vector.shape_cast %79 : vector<1x8x4xbf16> to vector<8x4xbf16>
    %cst_50 = arith.constant dense<0.000000e+00> : vector<8x256xf32>
    %81 = tpu.matmul %80, %78, %cst_50 {dimension_numbers = #tpu.dot_dimension_numbers<[1], [0], [0], [1], [0, 0, 1, 1], [], []>} : vector<8x4xbf16>, vector<4x256xbf16>, vector<8x256xf32> -> vector<8x256xf32>
    %82 = arith.addf %75, %81 : vector<8x256xf32>
    %c0_51 = arith.constant 0 : index
    %c143 = arith.constant 143 : index
    %83 = vector.load %arg9[%c0_51, %c143] : memref<4x512xbf16, #tpu.memory_space<vmem>>, vector<4x256xbf16>
    %84 = vector.broadcast %22 : vector<1x256xbf16> to vector<4x256xbf16>
    %85 = arith.mulf %83, %84 : vector<4x256xbf16>
    %c6 = arith.constant 6 : index
    %c0_52 = arith.constant 0 : index
    %c0_53 = arith.constant 0 : index
    %86 = vector.load %arg4[%c6, %c0_52, %c0_53] : memref<9x8x4xbf16, #tpu.memory_space<vmem>>, vector<1x8x4xbf16>
    %87 = vector.shape_cast %86 : vector<1x8x4xbf16> to vector<8x4xbf16>
    %cst_54 = arith.constant dense<0.000000e+00> : vector<8x256xf32>
    %88 = tpu.matmul %87, %85, %cst_54 {dimension_numbers = #tpu.dot_dimension_numbers<[1], [0], [0], [1], [0, 0, 1, 1], [], []>} : vector<8x4xbf16>, vector<4x256xbf16>, vector<8x256xf32> -> vector<8x256xf32>
    %89 = arith.addf %82, %88 : vector<8x256xf32>
    %c0_55 = arith.constant 0 : index
    %c144 = arith.constant 144 : index
    %90 = vector.load %arg9[%c0_55, %c144] : memref<4x512xbf16, #tpu.memory_space<vmem>>, vector<4x256xbf16>
    %c7 = arith.constant 7 : index
    %c0_56 = arith.constant 0 : index
    %c0_57 = arith.constant 0 : index
    %91 = vector.load %arg4[%c7, %c0_56, %c0_57] : memref<9x8x4xbf16, #tpu.memory_space<vmem>>, vector<1x8x4xbf16>
    %92 = vector.shape_cast %91 : vector<1x8x4xbf16> to vector<8x4xbf16>
    %cst_58 = arith.constant dense<0.000000e+00> : vector<8x256xf32>
    %93 = tpu.matmul %92, %90, %cst_58 {dimension_numbers = #tpu.dot_dimension_numbers<[1], [0], [0], [1], [0, 0, 1, 1], [], []>} : vector<8x4xbf16>, vector<4x256xbf16>, vector<8x256xf32> -> vector<8x256xf32>
    %94 = arith.addf %89, %93 : vector<8x256xf32>
    %c0_59 = arith.constant 0 : index
    %c145 = arith.constant 145 : index
    %95 = vector.load %arg9[%c0_59, %c145] : memref<4x512xbf16, #tpu.memory_space<vmem>>, vector<4x256xbf16>
    %96 = vector.broadcast %28 : vector<1x256xbf16> to vector<4x256xbf16>
    %97 = arith.mulf %95, %96 : vector<4x256xbf16>
    %c8 = arith.constant 8 : index
    %c0_60 = arith.constant 0 : index
    %c0_61 = arith.constant 0 : index
    %98 = vector.load %arg4[%c8, %c0_60, %c0_61] : memref<9x8x4xbf16, #tpu.memory_space<vmem>>, vector<1x8x4xbf16>
    %99 = vector.shape_cast %98 : vector<1x8x4xbf16> to vector<8x4xbf16>
    %cst_62 = arith.constant dense<0.000000e+00> : vector<8x256xf32>
    %100 = tpu.matmul %99, %97, %cst_62 {dimension_numbers = #tpu.dot_dimension_numbers<[1], [0], [0], [1], [0, 0, 1, 1], [], []>} : vector<8x4xbf16>, vector<4x256xbf16>, vector<8x256xf32> -> vector<8x256xf32>
    %101 = arith.addf %94, %100 : vector<8x256xf32>
    %c0_63 = arith.constant 0 : index
    %c0_64 = arith.constant 0 : index
    %102 = vector.load %arg5[%c0_63, %c0_64] : memref<8x1xf32, #tpu.memory_space<vmem>>, vector<8x1xf32>
    %103 = vector.broadcast %102 : vector<8x1xf32> to vector<8x256xf32>
    %104 = arith.addf %101, %103 : vector<8x256xf32>
    %cst_65 = arith.constant 0.000000e+00 : f32
    %105 = vector.broadcast %cst_65 : f32 to vector<8x256xf32>
    %106 = arith.maximumf %104, %105 : vector<8x256xf32>
    %107 = arith.truncf %106 : vector<8x256xf32> to vector<8x256xbf16>
    %c0_66 = arith.constant 0 : index
    %c128_67 = arith.constant 128 : index
    %108 = vector.load %arg10[%c0_66, %c128_67] : memref<8x512xbf16, #tpu.memory_space<vmem>>, vector<8x256xbf16>
    tpu.vector_store %arg10[%c0_66, %c128_67], %107 {strides = array<i32>} : memref<8x512xbf16, #tpu.memory_space<vmem>>, vector<8x256xbf16>,
    %cst_68 = arith.constant 0.000000e+00 : f32
    %109 = vector.broadcast %cst_68 : f32 to vector<8x256xf32>
    %c0_69 = arith.constant 0 : index
    %c111_70 = arith.constant 111 : index
    %110 = vector.load %arg10[%c0_69, %c111_70] : memref<8x512xbf16, #tpu.memory_space<vmem>>, vector<8x256xbf16>
    %111 = vector.broadcast %22 : vector<1x256xbf16> to vector<8x256xbf16>
    %112 = arith.mulf %110, %111 : vector<8x256xbf16>
    %c0_71 = arith.constant 0 : index
    %c0_72 = arith.constant 0 : index
    %c0_73 = arith.constant 0 : index
    %113 = vector.load %arg6[%c0_71, %c0_72, %c0_73] : memref<9x8x8xbf16, #tpu.memory_space<vmem>>, vector<1x8x8xbf16>
    %114 = vector.shape_cast %113 : vector<1x8x8xbf16> to vector<8x8xbf16>
    %cst_74 = arith.constant dense<0.000000e+00> : vector<8x256xf32>
    %115 = tpu.matmul %114, %112, %cst_74 {dimension_numbers = #tpu.dot_dimension_numbers<[1], [0], [0], [1], [0, 0, 1, 1], [], []>} : vector<8x8xbf16>, vector<8x256xbf16>, vector<8x256xf32> -> vector<8x256xf32>
    %116 = arith.addf %109, %115 : vector<8x256xf32>
    %c0_75 = arith.constant 0 : index
    %c112_76 = arith.constant 112 : index
    %117 = vector.load %arg10[%c0_75, %c112_76] : memref<8x512xbf16, #tpu.memory_space<vmem>>, vector<8x256xbf16>
    %c1_77 = arith.constant 1 : index
    %c0_78 = arith.constant 0 : index
    %c0_79 = arith.constant 0 : index
    %118 = vector.load %arg6[%c1_77, %c0_78, %c0_79] : memref<9x8x8xbf16, #tpu.memory_space<vmem>>, vector<1x8x8xbf16>
    %119 = vector.shape_cast %118 : vector<1x8x8xbf16> to vector<8x8xbf16>
    %cst_80 = arith.constant dense<0.000000e+00> : vector<8x256xf32>
    %120 = tpu.matmul %119, %117, %cst_80 {dimension_numbers = #tpu.dot_dimension_numbers<[1], [0], [0], [1], [0, 0, 1, 1], [], []>} : vector<8x8xbf16>, vector<8x256xbf16>, vector<8x256xf32> -> vector<8x256xf32>
    %121 = arith.addf %116, %120 : vector<8x256xf32>
    %c0_81 = arith.constant 0 : index
    %c113_82 = arith.constant 113 : index
    %122 = vector.load %arg10[%c0_81, %c113_82] : memref<8x512xbf16, #tpu.memory_space<vmem>>, vector<8x256xbf16>
    %123 = vector.broadcast %28 : vector<1x256xbf16> to vector<8x256xbf16>
    %124 = arith.mulf %122, %123 : vector<8x256xbf16>
    %c2_83 = arith.constant 2 : index
    %c0_84 = arith.constant 0 : index
    %c0_85 = arith.constant 0 : index
    %125 = vector.load %arg6[%c2_83, %c0_84, %c0_85] : memref<9x8x8xbf16, #tpu.memory_space<vmem>>, vector<1x8x8xbf16>
    %126 = vector.shape_cast %125 : vector<1x8x8xbf16> to vector<8x8xbf16>
    %cst_86 = arith.constant dense<0.000000e+00> : vector<8x256xf32>
    %127 = tpu.matmul %126, %124, %cst_86 {dimension_numbers = #tpu.dot_dimension_numbers<[1], [0], [0], [1], [0, 0, 1, 1], [], []>} : vector<8x8xbf16>, vector<8x256xbf16>, vector<8x256xf32> -> vector<8x256xf32>
    %128 = arith.addf %121, %127 : vector<8x256xf32>
    %c0_87 = arith.constant 0 : index
    %c127_88 = arith.constant 127 : index
    %129 = vector.load %arg10[%c0_87, %c127_88] : memref<8x512xbf16, #tpu.memory_space<vmem>>, vector<8x256xbf16>
    %130 = vector.broadcast %22 : vector<1x256xbf16> to vector<8x256xbf16>
    %131 = arith.mulf %129, %130 : vector<8x256xbf16>
    %c3_89 = arith.constant 3 : index
    %c0_90 = arith.constant 0 : index
    %c0_91 = arith.constant 0 : index
    %132 = vector.load %arg6[%c3_89, %c0_90, %c0_91] : memref<9x8x8xbf16, #tpu.memory_space<vmem>>, vector<1x8x8xbf16>
    %133 = vector.shape_cast %132 : vector<1x8x8xbf16> to vector<8x8xbf16>
    %cst_92 = arith.constant dense<0.000000e+00> : vector<8x256xf32>
    %134 = tpu.matmul %133, %131, %cst_92 {dimension_numbers = #tpu.dot_dimension_numbers<[1], [0], [0], [1], [0, 0, 1, 1], [], []>} : vector<8x8xbf16>, vector<8x256xbf16>, vector<8x256xf32> -> vector<8x256xf32>
    %135 = arith.addf %128, %134 : vector<8x256xf32>
    %c0_93 = arith.constant 0 : index
    %c128_94 = arith.constant 128 : index
    %136 = vector.load %arg10[%c0_93, %c128_94] : memref<8x512xbf16, #tpu.memory_space<vmem>>, vector<8x256xbf16>
    %c4_95 = arith.constant 4 : index
    %c0_96 = arith.constant 0 : index
    %c0_97 = arith.constant 0 : index
    %137 = vector.load %arg6[%c4_95, %c0_96, %c0_97] : memref<9x8x8xbf16, #tpu.memory_space<vmem>>, vector<1x8x8xbf16>
    %138 = vector.shape_cast %137 : vector<1x8x8xbf16> to vector<8x8xbf16>
    %cst_98 = arith.constant dense<0.000000e+00> : vector<8x256xf32>
    %139 = tpu.matmul %138, %136, %cst_98 {dimension_numbers = #tpu.dot_dimension_numbers<[1], [0], [0], [1], [0, 0, 1, 1], [], []>} : vector<8x8xbf16>, vector<8x256xbf16>, vector<8x256xf32> -> vector<8x256xf32>
    %140 = arith.addf %135, %139 : vector<8x256xf32>
    %c0_99 = arith.constant 0 : index
    %c129_100 = arith.constant 129 : index
    %141 = vector.load %arg10[%c0_99, %c129_100] : memref<8x512xbf16, #tpu.memory_space<vmem>>, vector<8x256xbf16>
    %142 = vector.broadcast %28 : vector<1x256xbf16> to vector<8x256xbf16>
    %143 = arith.mulf %141, %142 : vector<8x256xbf16>
    %c5_101 = arith.constant 5 : index
    %c0_102 = arith.constant 0 : index
    %c0_103 = arith.constant 0 : index
    %144 = vector.load %arg6[%c5_101, %c0_102, %c0_103] : memref<9x8x8xbf16, #tpu.memory_space<vmem>>, vector<1x8x8xbf16>
    %145 = vector.shape_cast %144 : vector<1x8x8xbf16> to vector<8x8xbf16>
    %cst_104 = arith.constant dense<0.000000e+00> : vector<8x256xf32>
    %146 = tpu.matmul %145, %143, %cst_104 {dimension_numbers = #tpu.dot_dimension_numbers<[1], [0], [0], [1], [0, 0, 1, 1], [], []>} : vector<8x8xbf16>, vector<8x256xbf16>, vector<8x256xf32> -> vector<8x256xf32>
    %147 = arith.addf %140, %146 : vector<8x256xf32>
    %c0_105 = arith.constant 0 : index
    %c143_106 = arith.constant 143 : index
    %148 = vector.load %arg10[%c0_105, %c143_106] : memref<8x512xbf16, #tpu.memory_space<vmem>>, vector<8x256xbf16>
    %149 = vector.broadcast %22 : vector<1x256xbf16> to vector<8x256xbf16>
    %150 = arith.mulf %148, %149 : vector<8x256xbf16>
    %c6_107 = arith.constant 6 : index
    %c0_108 = arith.constant 0 : index
    %c0_109 = arith.constant 0 : index
    %151 = vector.load %arg6[%c6_107, %c0_108, %c0_109] : memref<9x8x8xbf16, #tpu.memory_space<vmem>>, vector<1x8x8xbf16>
    %152 = vector.shape_cast %151 : vector<1x8x8xbf16> to vector<8x8xbf16>
    %cst_110 = arith.constant dense<0.000000e+00> : vector<8x256xf32>
    %153 = tpu.matmul %152, %150, %cst_110 {dimension_numbers = #tpu.dot_dimension_numbers<[1], [0], [0], [1], [0, 0, 1, 1], [], []>} : vector<8x8xbf16>, vector<8x256xbf16>, vector<8x256xf32> -> vector<8x256xf32>
    %154 = arith.addf %147, %153 : vector<8x256xf32>
    %c0_111 = arith.constant 0 : index
    %c144_112 = arith.constant 144 : index
    %155 = vector.load %arg10[%c0_111, %c144_112] : memref<8x512xbf16, #tpu.memory_space<vmem>>, vector<8x256xbf16>
    %c7_113 = arith.constant 7 : index
    %c0_114 = arith.constant 0 : index
    %c0_115 = arith.constant 0 : index
    %156 = vector.load %arg6[%c7_113, %c0_114, %c0_115] : memref<9x8x8xbf16, #tpu.memory_space<vmem>>, vector<1x8x8xbf16>
    %157 = vector.shape_cast %156 : vector<1x8x8xbf16> to vector<8x8xbf16>
    %cst_116 = arith.constant dense<0.000000e+00> : vector<8x256xf32>
    %158 = tpu.matmul %157, %155, %cst_116 {dimension_numbers = #tpu.dot_dimension_numbers<[1], [0], [0], [1], [0, 0, 1, 1], [], []>} : vector<8x8xbf16>, vector<8x256xbf16>, vector<8x256xf32> -> vector<8x256xf32>
    %159 = arith.addf %154, %158 : vector<8x256xf32>
    %c0_117 = arith.constant 0 : index
    %c145_118 = arith.constant 145 : index
    %160 = vector.load %arg10[%c0_117, %c145_118] : memref<8x512xbf16, #tpu.memory_space<vmem>>, vector<8x256xbf16>
    %161 = vector.broadcast %28 : vector<1x256xbf16> to vector<8x256xbf16>
    %162 = arith.mulf %160, %161 : vector<8x256xbf16>
    %c8_119 = arith.constant 8 : index
    %c0_120 = arith.constant 0 : index
    %c0_121 = arith.constant 0 : index
    %163 = vector.load %arg6[%c8_119, %c0_120, %c0_121] : memref<9x8x8xbf16, #tpu.memory_space<vmem>>, vector<1x8x8xbf16>
    %164 = vector.shape_cast %163 : vector<1x8x8xbf16> to vector<8x8xbf16>
    %cst_122 = arith.constant dense<0.000000e+00> : vector<8x256xf32>
    %165 = tpu.matmul %164, %162, %cst_122 {dimension_numbers = #tpu.dot_dimension_numbers<[1], [0], [0], [1], [0, 0, 1, 1], [], []>} : vector<8x8xbf16>, vector<8x256xbf16>, vector<8x256xf32> -> vector<8x256xf32>
    %166 = arith.addf %159, %165 : vector<8x256xf32>
    %c0_123 = arith.constant 0 : index
    %c0_124 = arith.constant 0 : index
    %167 = vector.load %arg7[%c0_123, %c0_124] : memref<8x1xf32, #tpu.memory_space<vmem>>, vector<8x1xf32>
    %168 = vector.broadcast %167 : vector<8x1xf32> to vector<8x256xf32>
    %169 = arith.addf %166, %168 : vector<8x256xf32>
    %c0_125 = arith.constant 0 : index
    %c0_126 = arith.constant 0 : index
    %c0_127 = arith.constant 0 : index
    %170 = vector.load %arg2[%c0_125, %c0_126, %c0_127] : memref<2x8x256xf32, #tpu.memory_space<vmem>>, vector<1x8x256xf32>
    %171 = vector.shape_cast %170 : vector<1x8x256xf32> to vector<8x256xf32>
    %172 = arith.subf %169, %171 : vector<8x256xf32>
    %173 = arith.mulf %172, %172 : vector<8x256xf32>
    %cst_128 = arith.constant dense<0.000000e+00> : vector<256xf32>
    %174 = vector.multi_reduction <add>, %173, %cst_128 [0] : vector<8x256xf32> to vector<256xf32>
    %175 = vector.shape_cast %174 : vector<256xf32> to vector<1x256xf32>
    %c0_129 = arith.constant 0 : index
    %c0_130 = arith.constant 0 : index
    %c0_131 = arith.constant 0 : index
    %176 = vector.load %arg8[%c0_129, %c0_130, %c0_131] : memref<2x1x256xf32, #tpu.memory_space<vmem>>, vector<1x1x256xf32>
    %177 = vector.shape_cast %176 : vector<1x1x256xf32> to vector<1x256xf32>
    %178 = vector.shape_cast %175 : vector<1x256xf32> to vector<1x1x256xf32>
    tpu.vector_store %arg8[%c0_129, %c0_130, %c0_131], %178 {strides = array<i32>} : memref<2x1x256xf32, #tpu.memory_space<vmem>>, vector<1x1x256xf32>,
    %c1_132 = arith.constant 1 : index
    %c0_133 = arith.constant 0 : index
    %c0_134 = arith.constant 0 : index
    %179 = vector.load %arg1[%c1_132, %c0_133, %c0_134] : memref<2x4x256xbf16, #tpu.memory_space<vmem>>, vector<1x4x256xbf16>
    %180 = vector.shape_cast %179 : vector<1x4x256xbf16> to vector<4x256xbf16>
    %c1_135 = arith.constant 1 : index
    %c0_136 = arith.constant 0 : index
    %c0_137 = arith.constant 0 : index
    %181 = vector.load %arg3[%c1_135, %c0_136, %c0_137] : memref<2x1x256xbf16, #tpu.memory_space<vmem>>, vector<1x1x256xbf16>
    %182 = vector.shape_cast %181 : vector<1x1x256xbf16> to vector<1x256xbf16>
    %183 = vector.broadcast %182 : vector<1x256xbf16> to vector<4x256xbf16>
    %184 = arith.mulf %180, %183 : vector<4x256xbf16>
    %c0_138 = arith.constant 0 : index
    %c128_139 = arith.constant 128 : index
    %185 = vector.load %arg9[%c0_138, %c128_139] : memref<4x512xbf16, #tpu.memory_space<vmem>>, vector<4x256xbf16>
    tpu.vector_store %arg9[%c0_138, %c128_139], %184 {strides = array<i32>} : memref<4x512xbf16, #tpu.memory_space<vmem>>, vector<4x256xbf16>,
    %cst_140 = arith.constant 0.000000e+00 : f32
    %186 = vector.broadcast %cst_140 : f32 to vector<8x256xf32>
    %c0_141 = arith.constant 0 : index
    %c111_142 = arith.constant 111 : index
    %187 = vector.load %arg9[%c0_141, %c111_142] : memref<4x512xbf16, #tpu.memory_space<vmem>>, vector<4x256xbf16>
    %188 = vector.broadcast %22 : vector<1x256xbf16> to vector<4x256xbf16>
    %189 = arith.mulf %187, %188 : vector<4x256xbf16>
    %c0_143 = arith.constant 0 : index
    %c0_144 = arith.constant 0 : index
    %c0_145 = arith.constant 0 : index
    %190 = vector.load %arg4[%c0_143, %c0_144, %c0_145] : memref<9x8x4xbf16, #tpu.memory_space<vmem>>, vector<1x8x4xbf16>
    %191 = vector.shape_cast %190 : vector<1x8x4xbf16> to vector<8x4xbf16>
    %cst_146 = arith.constant dense<0.000000e+00> : vector<8x256xf32>
    %192 = tpu.matmul %191, %189, %cst_146 {dimension_numbers = #tpu.dot_dimension_numbers<[1], [0], [0], [1], [0, 0, 1, 1], [], []>} : vector<8x4xbf16>, vector<4x256xbf16>, vector<8x256xf32> -> vector<8x256xf32>
    %193 = arith.addf %186, %192 : vector<8x256xf32>
    %c0_147 = arith.constant 0 : index
    %c112_148 = arith.constant 112 : index
    %194 = vector.load %arg9[%c0_147, %c112_148] : memref<4x512xbf16, #tpu.memory_space<vmem>>, vector<4x256xbf16>
    %c1_149 = arith.constant 1 : index
    %c0_150 = arith.constant 0 : index
    %c0_151 = arith.constant 0 : index
    %195 = vector.load %arg4[%c1_149, %c0_150, %c0_151] : memref<9x8x4xbf16, #tpu.memory_space<vmem>>, vector<1x8x4xbf16>
    %196 = vector.shape_cast %195 : vector<1x8x4xbf16> to vector<8x4xbf16>
    %cst_152 = arith.constant dense<0.000000e+00> : vector<8x256xf32>
    %197 = tpu.matmul %196, %194, %cst_152 {dimension_numbers = #tpu.dot_dimension_numbers<[1], [0], [0], [1], [0, 0, 1, 1], [], []>} : vector<8x4xbf16>, vector<4x256xbf16>, vector<8x256xf32> -> vector<8x256xf32>
    %198 = arith.addf %193, %197 : vector<8x256xf32>
    %c0_153 = arith.constant 0 : index
    %c113_154 = arith.constant 113 : index
    %199 = vector.load %arg9[%c0_153, %c113_154] : memref<4x512xbf16, #tpu.memory_space<vmem>>, vector<4x256xbf16>
    %200 = vector.broadcast %28 : vector<1x256xbf16> to vector<4x256xbf16>
    %201 = arith.mulf %199, %200 : vector<4x256xbf16>
    %c2_155 = arith.constant 2 : index
    %c0_156 = arith.constant 0 : index
    %c0_157 = arith.constant 0 : index
    %202 = vector.load %arg4[%c2_155, %c0_156, %c0_157] : memref<9x8x4xbf16, #tpu.memory_space<vmem>>, vector<1x8x4xbf16>
    %203 = vector.shape_cast %202 : vector<1x8x4xbf16> to vector<8x4xbf16>
    %cst_158 = arith.constant dense<0.000000e+00> : vector<8x256xf32>
    %204 = tpu.matmul %203, %201, %cst_158 {dimension_numbers = #tpu.dot_dimension_numbers<[1], [0], [0], [1], [0, 0, 1, 1], [], []>} : vector<8x4xbf16>, vector<4x256xbf16>, vector<8x256xf32> -> vector<8x256xf32>
    %205 = arith.addf %198, %204 : vector<8x256xf32>
    %c0_159 = arith.constant 0 : index
    %c127_160 = arith.constant 127 : index
    %206 = vector.load %arg9[%c0_159, %c127_160] : memref<4x512xbf16, #tpu.memory_space<vmem>>, vector<4x256xbf16>
    %207 = vector.broadcast %22 : vector<1x256xbf16> to vector<4x256xbf16>
    %208 = arith.mulf %206, %207 : vector<4x256xbf16>
    %c3_161 = arith.constant 3 : index
    %c0_162 = arith.constant 0 : index
    %c0_163 = arith.constant 0 : index
    %209 = vector.load %arg4[%c3_161, %c0_162, %c0_163] : memref<9x8x4xbf16, #tpu.memory_space<vmem>>, vector<1x8x4xbf16>
    %210 = vector.shape_cast %209 : vector<1x8x4xbf16> to vector<8x4xbf16>
    %cst_164 = arith.constant dense<0.000000e+00> : vector<8x256xf32>
    %211 = tpu.matmul %210, %208, %cst_164 {dimension_numbers = #tpu.dot_dimension_numbers<[1], [0], [0], [1], [0, 0, 1, 1], [], []>} : vector<8x4xbf16>, vector<4x256xbf16>, vector<8x256xf32> -> vector<8x256xf32>
    %212 = arith.addf %205, %211 : vector<8x256xf32>
    %c0_165 = arith.constant 0 : index
    %c128_166 = arith.constant 128 : index
    %213 = vector.load %arg9[%c0_165, %c128_166] : memref<4x512xbf16, #tpu.memory_space<vmem>>, vector<4x256xbf16>
    %c4_167 = arith.constant 4 : index
    %c0_168 = arith.constant 0 : index
    %c0_169 = arith.constant 0 : index
    %214 = vector.load %arg4[%c4_167, %c0_168, %c0_169] : memref<9x8x4xbf16, #tpu.memory_space<vmem>>, vector<1x8x4xbf16>
    %215 = vector.shape_cast %214 : vector<1x8x4xbf16> to vector<8x4xbf16>
    %cst_170 = arith.constant dense<0.000000e+00> : vector<8x256xf32>
    %216 = tpu.matmul %215, %213, %cst_170 {dimension_numbers = #tpu.dot_dimension_numbers<[1], [0], [0], [1], [0, 0, 1, 1], [], []>} : vector<8x4xbf16>, vector<4x256xbf16>, vector<8x256xf32> -> vector<8x256xf32>
    %217 = arith.addf %212, %216 : vector<8x256xf32>
    %c0_171 = arith.constant 0 : index
    %c129_172 = arith.constant 129 : index
    %218 = vector.load %arg9[%c0_171, %c129_172] : memref<4x512xbf16, #tpu.memory_space<vmem>>, vector<4x256xbf16>
    %219 = vector.broadcast %28 : vector<1x256xbf16> to vector<4x256xbf16>
    %220 = arith.mulf %218, %219 : vector<4x256xbf16>
    %c5_173 = arith.constant 5 : index
    %c0_174 = arith.constant 0 : index
    %c0_175 = arith.constant 0 : index
    %221 = vector.load %arg4[%c5_173, %c0_174, %c0_175] : memref<9x8x4xbf16, #tpu.memory_space<vmem>>, vector<1x8x4xbf16>
    %222 = vector.shape_cast %221 : vector<1x8x4xbf16> to vector<8x4xbf16>
    %cst_176 = arith.constant dense<0.000000e+00> : vector<8x256xf32>
    %223 = tpu.matmul %222, %220, %cst_176 {dimension_numbers = #tpu.dot_dimension_numbers<[1], [0], [0], [1], [0, 0, 1, 1], [], []>} : vector<8x4xbf16>, vector<4x256xbf16>, vector<8x256xf32> -> vector<8x256xf32>
    %224 = arith.addf %217, %223 : vector<8x256xf32>
    %c0_177 = arith.constant 0 : index
    %c143_178 = arith.constant 143 : index
    %225 = vector.load %arg9[%c0_177, %c143_178] : memref<4x512xbf16, #tpu.memory_space<vmem>>, vector<4x256xbf16>
    %226 = vector.broadcast %22 : vector<1x256xbf16> to vector<4x256xbf16>
    %227 = arith.mulf %225, %226 : vector<4x256xbf16>
    %c6_179 = arith.constant 6 : index
    %c0_180 = arith.constant 0 : index
    %c0_181 = arith.constant 0 : index
    %228 = vector.load %arg4[%c6_179, %c0_180, %c0_181] : memref<9x8x4xbf16, #tpu.memory_space<vmem>>, vector<1x8x4xbf16>
    %229 = vector.shape_cast %228 : vector<1x8x4xbf16> to vector<8x4xbf16>
    %cst_182 = arith.constant dense<0.000000e+00> : vector<8x256xf32>
    %230 = tpu.matmul %229, %227, %cst_182 {dimension_numbers = #tpu.dot_dimension_numbers<[1], [0], [0], [1], [0, 0, 1, 1], [], []>} : vector<8x4xbf16>, vector<4x256xbf16>, vector<8x256xf32> -> vector<8x256xf32>
    %231 = arith.addf %224, %230 : vector<8x256xf32>
    %c0_183 = arith.constant 0 : index
    %c144_184 = arith.constant 144 : index
    %232 = vector.load %arg9[%c0_183, %c144_184] : memref<4x512xbf16, #tpu.memory_space<vmem>>, vector<4x256xbf16>
    %c7_185 = arith.constant 7 : index
    %c0_186 = arith.constant 0 : index
    %c0_187 = arith.constant 0 : index
    %233 = vector.load %arg4[%c7_185, %c0_186, %c0_187] : memref<9x8x4xbf16, #tpu.memory_space<vmem>>, vector<1x8x4xbf16>
    %234 = vector.shape_cast %233 : vector<1x8x4xbf16> to vector<8x4xbf16>
    %cst_188 = arith.constant dense<0.000000e+00> : vector<8x256xf32>
    %235 = tpu.matmul %234, %232, %cst_188 {dimension_numbers = #tpu.dot_dimension_numbers<[1], [0], [0], [1], [0, 0, 1, 1], [], []>} : vector<8x4xbf16>, vector<4x256xbf16>, vector<8x256xf32> -> vector<8x256xf32>
    %236 = arith.addf %231, %235 : vector<8x256xf32>
    %c0_189 = arith.constant 0 : index
    %c145_190 = arith.constant 145 : index
    %237 = vector.load %arg9[%c0_189, %c145_190] : memref<4x512xbf16, #tpu.memory_space<vmem>>, vector<4x256xbf16>
    %238 = vector.broadcast %28 : vector<1x256xbf16> to vector<4x256xbf16>
    %239 = arith.mulf %237, %238 : vector<4x256xbf16>
    %c8_191 = arith.constant 8 : index
    %c0_192 = arith.constant 0 : index
    %c0_193 = arith.constant 0 : index
    %240 = vector.load %arg4[%c8_191, %c0_192, %c0_193] : memref<9x8x4xbf16, #tpu.memory_space<vmem>>, vector<1x8x4xbf16>
    %241 = vector.shape_cast %240 : vector<1x8x4xbf16> to vector<8x4xbf16>
    %cst_194 = arith.constant dense<0.000000e+00> : vector<8x256xf32>
    %242 = tpu.matmul %241, %239, %cst_194 {dimension_numbers = #tpu.dot_dimension_numbers<[1], [0], [0], [1], [0, 0, 1, 1], [], []>} : vector<8x4xbf16>, vector<4x256xbf16>, vector<8x256xf32> -> vector<8x256xf32>
    %243 = arith.addf %236, %242 : vector<8x256xf32>
    %c0_195 = arith.constant 0 : index
    %c0_196 = arith.constant 0 : index
    %244 = vector.load %arg5[%c0_195, %c0_196] : memref<8x1xf32, #tpu.memory_space<vmem>>, vector<8x1xf32>
    %245 = vector.broadcast %244 : vector<8x1xf32> to vector<8x256xf32>
    %246 = arith.addf %243, %245 : vector<8x256xf32>
    %cst_197 = arith.constant 0.000000e+00 : f32
    %247 = vector.broadcast %cst_197 : f32 to vector<8x256xf32>
    %248 = arith.maximumf %246, %247 : vector<8x256xf32>
    %249 = arith.truncf %248 : vector<8x256xf32> to vector<8x256xbf16>
    %c0_198 = arith.constant 0 : index
    %c128_199 = arith.constant 128 : index
    %250 = vector.load %arg10[%c0_198, %c128_199] : memref<8x512xbf16, #tpu.memory_space<vmem>>, vector<8x256xbf16>
    tpu.vector_store %arg10[%c0_198, %c128_199], %249 {strides = array<i32>} : memref<8x512xbf16, #tpu.memory_space<vmem>>, vector<8x256xbf16>,
    %cst_200 = arith.constant 0.000000e+00 : f32
    %251 = vector.broadcast %cst_200 : f32 to vector<8x256xf32>
    %c0_201 = arith.constant 0 : index
    %c111_202 = arith.constant 111 : index
    %252 = vector.load %arg10[%c0_201, %c111_202] : memref<8x512xbf16, #tpu.memory_space<vmem>>, vector<8x256xbf16>
    %253 = vector.broadcast %22 : vector<1x256xbf16> to vector<8x256xbf16>
    %254 = arith.mulf %252, %253 : vector<8x256xbf16>
    %c0_203 = arith.constant 0 : index
    %c0_204 = arith.constant 0 : index
    %c0_205 = arith.constant 0 : index
    %255 = vector.load %arg6[%c0_203, %c0_204, %c0_205] : memref<9x8x8xbf16, #tpu.memory_space<vmem>>, vector<1x8x8xbf16>
    %256 = vector.shape_cast %255 : vector<1x8x8xbf16> to vector<8x8xbf16>
    %cst_206 = arith.constant dense<0.000000e+00> : vector<8x256xf32>
    %257 = tpu.matmul %256, %254, %cst_206 {dimension_numbers = #tpu.dot_dimension_numbers<[1], [0], [0], [1], [0, 0, 1, 1], [], []>} : vector<8x8xbf16>, vector<8x256xbf16>, vector<8x256xf32> -> vector<8x256xf32>
    %258 = arith.addf %251, %257 : vector<8x256xf32>
    %c0_207 = arith.constant 0 : index
    %c112_208 = arith.constant 112 : index
    %259 = vector.load %arg10[%c0_207, %c112_208] : memref<8x512xbf16, #tpu.memory_space<vmem>>, vector<8x256xbf16>
    %c1_209 = arith.constant 1 : index
    %c0_210 = arith.constant 0 : index
    %c0_211 = arith.constant 0 : index
    %260 = vector.load %arg6[%c1_209, %c0_210, %c0_211] : memref<9x8x8xbf16, #tpu.memory_space<vmem>>, vector<1x8x8xbf16>
    %261 = vector.shape_cast %260 : vector<1x8x8xbf16> to vector<8x8xbf16>
    %cst_212 = arith.constant dense<0.000000e+00> : vector<8x256xf32>
    %262 = tpu.matmul %261, %259, %cst_212 {dimension_numbers = #tpu.dot_dimension_numbers<[1], [0], [0], [1], [0, 0, 1, 1], [], []>} : vector<8x8xbf16>, vector<8x256xbf16>, vector<8x256xf32> -> vector<8x256xf32>
    %263 = arith.addf %258, %262 : vector<8x256xf32>
    %c0_213 = arith.constant 0 : index
    %c113_214 = arith.constant 113 : index
    %264 = vector.load %arg10[%c0_213, %c113_214] : memref<8x512xbf16, #tpu.memory_space<vmem>>, vector<8x256xbf16>
    %265 = vector.broadcast %28 : vector<1x256xbf16> to vector<8x256xbf16>
    %266 = arith.mulf %264, %265 : vector<8x256xbf16>
    %c2_215 = arith.constant 2 : index
    %c0_216 = arith.constant 0 : index
    %c0_217 = arith.constant 0 : index
    %267 = vector.load %arg6[%c2_215, %c0_216, %c0_217] : memref<9x8x8xbf16, #tpu.memory_space<vmem>>, vector<1x8x8xbf16>
    %268 = vector.shape_cast %267 : vector<1x8x8xbf16> to vector<8x8xbf16>
    %cst_218 = arith.constant dense<0.000000e+00> : vector<8x256xf32>
    %269 = tpu.matmul %268, %266, %cst_218 {dimension_numbers = #tpu.dot_dimension_numbers<[1], [0], [0], [1], [0, 0, 1, 1], [], []>} : vector<8x8xbf16>, vector<8x256xbf16>, vector<8x256xf32> -> vector<8x256xf32>
    %270 = arith.addf %263, %269 : vector<8x256xf32>
    %c0_219 = arith.constant 0 : index
    %c127_220 = arith.constant 127 : index
    %271 = vector.load %arg10[%c0_219, %c127_220] : memref<8x512xbf16, #tpu.memory_space<vmem>>, vector<8x256xbf16>
    %272 = vector.broadcast %22 : vector<1x256xbf16> to vector<8x256xbf16>
    %273 = arith.mulf %271, %272 : vector<8x256xbf16>
    %c3_221 = arith.constant 3 : index
    %c0_222 = arith.constant 0 : index
    %c0_223 = arith.constant 0 : index
    %274 = vector.load %arg6[%c3_221, %c0_222, %c0_223] : memref<9x8x8xbf16, #tpu.memory_space<vmem>>, vector<1x8x8xbf16>
    %275 = vector.shape_cast %274 : vector<1x8x8xbf16> to vector<8x8xbf16>
    %cst_224 = arith.constant dense<0.000000e+00> : vector<8x256xf32>
    %276 = tpu.matmul %275, %273, %cst_224 {dimension_numbers = #tpu.dot_dimension_numbers<[1], [0], [0], [1], [0, 0, 1, 1], [], []>} : vector<8x8xbf16>, vector<8x256xbf16>, vector<8x256xf32> -> vector<8x256xf32>
    %277 = arith.addf %270, %276 : vector<8x256xf32>
    %c0_225 = arith.constant 0 : index
    %c128_226 = arith.constant 128 : index
    %278 = vector.load %arg10[%c0_225, %c128_226] : memref<8x512xbf16, #tpu.memory_space<vmem>>, vector<8x256xbf16>
    %c4_227 = arith.constant 4 : index
    %c0_228 = arith.constant 0 : index
    %c0_229 = arith.constant 0 : index
    %279 = vector.load %arg6[%c4_227, %c0_228, %c0_229] : memref<9x8x8xbf16, #tpu.memory_space<vmem>>, vector<1x8x8xbf16>
    %280 = vector.shape_cast %279 : vector<1x8x8xbf16> to vector<8x8xbf16>
    %cst_230 = arith.constant dense<0.000000e+00> : vector<8x256xf32>
    %281 = tpu.matmul %280, %278, %cst_230 {dimension_numbers = #tpu.dot_dimension_numbers<[1], [0], [0], [1], [0, 0, 1, 1], [], []>} : vector<8x8xbf16>, vector<8x256xbf16>, vector<8x256xf32> -> vector<8x256xf32>
    %282 = arith.addf %277, %281 : vector<8x256xf32>
    %c0_231 = arith.constant 0 : index
    %c129_232 = arith.constant 129 : index
    %283 = vector.load %arg10[%c0_231, %c129_232] : memref<8x512xbf16, #tpu.memory_space<vmem>>, vector<8x256xbf16>
    %284 = vector.broadcast %28 : vector<1x256xbf16> to vector<8x256xbf16>
    %285 = arith.mulf %283, %284 : vector<8x256xbf16>
    %c5_233 = arith.constant 5 : index
    %c0_234 = arith.constant 0 : index
    %c0_235 = arith.constant 0 : index
    %286 = vector.load %arg6[%c5_233, %c0_234, %c0_235] : memref<9x8x8xbf16, #tpu.memory_space<vmem>>, vector<1x8x8xbf16>
    %287 = vector.shape_cast %286 : vector<1x8x8xbf16> to vector<8x8xbf16>
    %cst_236 = arith.constant dense<0.000000e+00> : vector<8x256xf32>
    %288 = tpu.matmul %287, %285, %cst_236 {dimension_numbers = #tpu.dot_dimension_numbers<[1], [0], [0], [1], [0, 0, 1, 1], [], []>} : vector<8x8xbf16>, vector<8x256xbf16>, vector<8x256xf32> -> vector<8x256xf32>
    %289 = arith.addf %282, %288 : vector<8x256xf32>
    %c0_237 = arith.constant 0 : index
    %c143_238 = arith.constant 143 : index
    %290 = vector.load %arg10[%c0_237, %c143_238] : memref<8x512xbf16, #tpu.memory_space<vmem>>, vector<8x256xbf16>
    %291 = vector.broadcast %22 : vector<1x256xbf16> to vector<8x256xbf16>
    %292 = arith.mulf %290, %291 : vector<8x256xbf16>
    %c6_239 = arith.constant 6 : index
    %c0_240 = arith.constant 0 : index
    %c0_241 = arith.constant 0 : index
    %293 = vector.load %arg6[%c6_239, %c0_240, %c0_241] : memref<9x8x8xbf16, #tpu.memory_space<vmem>>, vector<1x8x8xbf16>
    %294 = vector.shape_cast %293 : vector<1x8x8xbf16> to vector<8x8xbf16>
    %cst_242 = arith.constant dense<0.000000e+00> : vector<8x256xf32>
    %295 = tpu.matmul %294, %292, %cst_242 {dimension_numbers = #tpu.dot_dimension_numbers<[1], [0], [0], [1], [0, 0, 1, 1], [], []>} : vector<8x8xbf16>, vector<8x256xbf16>, vector<8x256xf32> -> vector<8x256xf32>
    %296 = arith.addf %289, %295 : vector<8x256xf32>
    %c0_243 = arith.constant 0 : index
    %c144_244 = arith.constant 144 : index
    %297 = vector.load %arg10[%c0_243, %c144_244] : memref<8x512xbf16, #tpu.memory_space<vmem>>, vector<8x256xbf16>
    %c7_245 = arith.constant 7 : index
    %c0_246 = arith.constant 0 : index
    %c0_247 = arith.constant 0 : index
    %298 = vector.load %arg6[%c7_245, %c0_246, %c0_247] : memref<9x8x8xbf16, #tpu.memory_space<vmem>>, vector<1x8x8xbf16>
    %299 = vector.shape_cast %298 : vector<1x8x8xbf16> to vector<8x8xbf16>
    %cst_248 = arith.constant dense<0.000000e+00> : vector<8x256xf32>
    %300 = tpu.matmul %299, %297, %cst_248 {dimension_numbers = #tpu.dot_dimension_numbers<[1], [0], [0], [1], [0, 0, 1, 1], [], []>} : vector<8x8xbf16>, vector<8x256xbf16>, vector<8x256xf32> -> vector<8x256xf32>
    %301 = arith.addf %296, %300 : vector<8x256xf32>
    %c0_249 = arith.constant 0 : index
    %c145_250 = arith.constant 145 : index
    %302 = vector.load %arg10[%c0_249, %c145_250] : memref<8x512xbf16, #tpu.memory_space<vmem>>, vector<8x256xbf16>
    %303 = vector.broadcast %28 : vector<1x256xbf16> to vector<8x256xbf16>
    %304 = arith.mulf %302, %303 : vector<8x256xbf16>
    %c8_251 = arith.constant 8 : index
    %c0_252 = arith.constant 0 : index
    %c0_253 = arith.constant 0 : index
    %305 = vector.load %arg6[%c8_251, %c0_252, %c0_253] : memref<9x8x8xbf16, #tpu.memory_space<vmem>>, vector<1x8x8xbf16>
    %306 = vector.shape_cast %305 : vector<1x8x8xbf16> to vector<8x8xbf16>
    %cst_254 = arith.constant dense<0.000000e+00> : vector<8x256xf32>
    %307 = tpu.matmul %306, %304, %cst_254 {dimension_numbers = #tpu.dot_dimension_numbers<[1], [0], [0], [1], [0, 0, 1, 1], [], []>} : vector<8x8xbf16>, vector<8x256xbf16>, vector<8x256xf32> -> vector<8x256xf32>
    %308 = arith.addf %301, %307 : vector<8x256xf32>
    %c0_255 = arith.constant 0 : index
    %c0_256 = arith.constant 0 : index
    %309 = vector.load %arg7[%c0_255, %c0_256] : memref<8x1xf32, #tpu.memory_space<vmem>>, vector<8x1xf32>
    %310 = vector.broadcast %309 : vector<8x1xf32> to vector<8x256xf32>
    %311 = arith.addf %308, %310 : vector<8x256xf32>
    %c1_257 = arith.constant 1 : index
    %c0_258 = arith.constant 0 : index
    %c0_259 = arith.constant 0 : index
    %312 = vector.load %arg2[%c1_257, %c0_258, %c0_259] : memref<2x8x256xf32, #tpu.memory_space<vmem>>, vector<1x8x256xf32>
    %313 = vector.shape_cast %312 : vector<1x8x256xf32> to vector<8x256xf32>
    %314 = arith.subf %311, %313 : vector<8x256xf32>
    %315 = arith.mulf %314, %314 : vector<8x256xf32>
    %cst_260 = arith.constant dense<0.000000e+00> : vector<256xf32>
    %316 = vector.multi_reduction <add>, %315, %cst_260 [0] : vector<8x256xf32> to vector<256xf32>
    %317 = vector.shape_cast %316 : vector<256xf32> to vector<1x256xf32>
    %c1_261 = arith.constant 1 : index
    %c0_262 = arith.constant 0 : index
    %c0_263 = arith.constant 0 : index
    %318 = vector.load %arg8[%c1_261, %c0_262, %c0_263] : memref<2x1x256xf32, #tpu.memory_space<vmem>>, vector<1x1x256xf32>
    %319 = vector.shape_cast %318 : vector<1x1x256xf32> to vector<1x256xf32>
    %320 = vector.shape_cast %317 : vector<1x256xf32> to vector<1x1x256xf32>
    tpu.vector_store %arg8[%c1_261, %c0_262, %c0_263], %320 {strides = array<i32>} : memref<2x1x256xf32, #tpu.memory_space<vmem>>, vector<1x1x256xf32>,
    return
  }
  func.func @transform_0(%arg0: i32) -> (i32, i32, i32) {
    %c0_i32 = arith.constant 0 : i32
    %c0_i32_0 = arith.constant 0 : i32
    %c0_i32_1 = arith.constant 0 : i32
    return %arg0, %c0_i32, %c0_i32_0 : i32, i32, i32
  }
  func.func @transform_1(%arg0: i32) -> (i32, i32, i32) {
    %c0_i32 = arith.constant 0 : i32
    %c0_i32_0 = arith.constant 0 : i32
    %c0_i32_1 = arith.constant 0 : i32
    return %arg0, %c0_i32, %c0_i32_0 : i32, i32, i32
  }
  func.func @transform_2(%arg0: i32) -> (i32, i32, i32) {
    %c0_i32 = arith.constant 0 : i32
    %c0_i32_0 = arith.constant 0 : i32
    %c0_i32_1 = arith.constant 0 : i32
    return %arg0, %c0_i32, %c0_i32_0 : i32, i32, i32
  }
  func.func @transform_3(%arg0: i32) -> (i32, i32, i32) {
    %c0_i32 = arith.constant 0 : i32
    %c0_i32_0 = arith.constant 0 : i32
    %c0_i32_1 = arith.constant 0 : i32
    %c0_i32_2 = arith.constant 0 : i32
    return %c0_i32, %c0_i32_0, %c0_i32_1 : i32, i32, i32
  }
  func.func @transform_4(%arg0: i32) -> (i32, i32) {
    %c0_i32 = arith.constant 0 : i32
    %c0_i32_0 = arith.constant 0 : i32
    %c0_i32_1 = arith.constant 0 : i32
    return %c0_i32, %c0_i32_0 : i32, i32
  }
  func.func @transform_5(%arg0: i32) -> (i32, i32, i32) {
    %c0_i32 = arith.constant 0 : i32
    %c0_i32_0 = arith.constant 0 : i32
    %c0_i32_1 = arith.constant 0 : i32
    %c0_i32_2 = arith.constant 0 : i32
    return %c0_i32, %c0_i32_0, %c0_i32_1 : i32, i32, i32
  }
  func.func @transform_6(%arg0: i32) -> (i32, i32) {
    %c0_i32 = arith.constant 0 : i32
    %c0_i32_0 = arith.constant 0 : i32
    %c0_i32_1 = arith.constant 0 : i32
    return %c0_i32, %c0_i32_0 : i32, i32
  }
  func.func @transform_7(%arg0: i32) -> (i32, i32, i32) {
    %c0_i32 = arith.constant 0 : i32
    %c0_i32_0 = arith.constant 0 : i32
    %c0_i32_1 = arith.constant 0 : i32
    return %arg0, %c0_i32, %c0_i32_0 : i32, i32, i32
  }
}

</mosaic_0001>

<llo_original>
// kernel: tpu_custom_call.1
$region0: #{tpu_custom_call.1}
  #allocation0 [shape = 'u32[]', space=smem, size = 0x4, offset = 0x4, fixed_abs, tag = 'smem constant byte address 0x4 - core index']
  #allocation1 [shape = 'u32[144,128]{1,0:T(1,128)}', space=vmem, size = 0x12000, scoped, tag = 'internal scratch']
  #allocation2 [shape = 'bf16[4,512]{1,0:T(4,128)(2,1)}', space=vmem, size = 0x1000, scoped, tag = 'scratch operand']
  #allocation3 [shape = 'bf16[8,512]{1,0:T(8,128)(2,1)}', space=vmem, size = 0x2000, scoped, tag = 'scratch operand']
  %s0 = inlined_call_operand.vmem [shape: bf16[2,4,256], index: 0, kind: input, shape index: {}]
  %s1 = inlined_call_operand.vmem [shape: f32[2,8,256], index: 1, kind: input, shape index: {}]
  %s2 = inlined_call_operand.vmem [shape: bf16[2,1,256], index: 2, kind: input, shape index: {}]
  %s3 = inlined_call_operand.vmem [shape: bf16[9,8,4], index: 3, kind: input, shape index: {}]
  %s4 = inlined_call_operand.vmem [shape: f32[8,1], index: 4, kind: input, shape index: {}]
  %s5 = inlined_call_operand.vmem [shape: bf16[9,8,8], index: 5, kind: input, shape index: {}]
  %s6 = inlined_call_operand.vmem [shape: f32[8,1], index: 6, kind: input, shape index: {}]
  %s7 = inlined_call_operand.hbm [shape: f32[2,1,256], index: 7, kind: output, shape index: {}]
  %s8 = sld [smem:[#allocation0]]
  $region38: #{tpu_custom_call.1} parent=0
    _
  %s10 = ssub.s32 1, %s8
  %s11 = scalar_select 0, %s10, %s8
  $region1: #{tpu_custom_call.1} parent=0
    #allocation4 [shape = 'u8[2048]{0}', space=vmem, size = 0x800, scoped, tag = 'output window, operand 0, single buffered']
    #allocation5 [shape = 's32[1]{0}', space=sflag, size = 0x4, scoped, tag = 'scoped memory for tpu_custom_call.1']
    %12 = vsyncpa [#allocation5], 0
    // Predicated region
    $region2: #{tpu_custom_call.1} parent=1 // pred_check
      _
    $region3: #{tpu_custom_call.1} parent=1 // pred_check_branch
      %14 = sbr.rel (0) target = $region5
    $region4: #{tpu_custom_call.1} parent=1 // pred_region
      _
    $region5: #{tpu_custom_call.1} parent=1 // pred_fallthru
      _
    // Predicated region
    $region6: #{tpu_custom_call.1} parent=1 // pred_check
      _
    $region7: #{tpu_custom_call.1} parent=1 // pred_check_branch
      %16 = sbr.rel (0) target = $region9
    $region8: #{tpu_custom_call.1} parent=1 // pred_region
      _
    $region9: #{tpu_custom_call.1} parent=1 // pred_fallthru
      _
    // Predicated region
    $region10: #{tpu_custom_call.1} parent=1 // pred_check
      _
    $region11: #{tpu_custom_call.1} parent=1 // pred_check_branch
      %18 = sbr.rel (0) target = $region13
    $region12: #{tpu_custom_call.1} parent=1 // pred_region
      _
    $region13: #{tpu_custom_call.1} parent=1 // pred_fallthru
      _
    // Predicated region
    $region14: #{tpu_custom_call.1} parent=1 // pred_check
      _
    $region15: #{tpu_custom_call.1} parent=1 // pred_check_branch
      %20 = sbr.rel (0) target = $region17
    $region16: #{tpu_custom_call.1} parent=1 // pred_region
      _
    $region17: #{tpu_custom_call.1} parent=1 // pred_fallthru
      _
    // Predicated region
    $region18: #{tpu_custom_call.1} parent=1 // pred_check
      _
    $region19: #{tpu_custom_call.1} parent=1 // pred_check_branch
      %22 = sbr.rel (0) target = $region21
    $region20: #{tpu_custom_call.1} parent=1 // pred_region
      _
    $region21: #{tpu_custom_call.1} parent=1 // pred_fallthru
      _
    // Predicated region
    $region22: #{tpu_custom_call.1} parent=1 // pred_check
      _
    $region23: #{tpu_custom_call.1} parent=1 // pred_check_branch
      %24 = sbr.rel (0) target = $region25
    $region24: #{tpu_custom_call.1} parent=1 // pred_region
      _
    $region25: #{tpu_custom_call.1} parent=1 // pred_fallthru
      _
    // Predicated region
    $region26: #{tpu_custom_call.1} parent=1 // pred_check
      _
    $region27: #{tpu_custom_call.1} parent=1 // pred_check_branch
      %26 = sbr.rel (0) target = $region29
    $region28: #{tpu_custom_call.1} parent=1 // pred_region
      _
    $region29: #{tpu_custom_call.1} parent=1 // pred_fallthru
      _
    %v28 = vlaneseq
    %v29 = vand.u32 %v28, 127
    %v30 = vadd.s32 %v29, 128
    %vm31 = vcmp.lt.s32.totalorder %v29, 0
    %v32 = vsub.s32 0, %v29
    %v33 = vsel %vm31, %v32, %v29
    %v34 = vshrl.u32 %v33, 4
    %v35 = vand.u32 %v33, 15
    %v36 = vsub.s32 0, %v35
    %v37 = vsel %vm31, %v36, %v35
    %vm38 = vcmp.lt.s32.totalorder %v30, 0
    %v39 = vsub.s32 0, %v30
    %v40 = vsel %vm38, %v39, %v30
    %v41 = vshrl.u32 %v40, 4
    %v42 = vand.u32 %v40, 15
    %v43 = vsub.s32 0, %v42
    %v44 = vsel %vm38, %v43, %v42
    %vm45 = vcmp.ne.s32.totalorder %v37, 0
    %vm46 = vcmp.ne.s32.totalorder %v44, 0
    %vm47 = vcmp.lt.s32.totalorder %v37, 0
    %vm48 = vcmp.lt.s32.totalorder %v44, 0
    %vm49 = vmand %vm47, %vm45
    %vm50 = vmand %vm48, %vm46
    %v51 = vadd.s32 %v37, 16
    %v52 = vadd.s32 %v44, 16
    %v53 = vsel %vm49, %v51, %v37
    %v54 = vsel %vm50, %v52, %v44
    %vm55 = vcmp.ne.s32.totalorder %v53, 0
    %vm56 = vcmp.ne.s32.totalorder %v54, 0
    %v57 = vsel %vm55, 1.0, 0.0
    %v58 = vsel %vm56, 1.0, 0.0
    %v59 = vpack.c.bf16 %v57, %v57
    %v60 = vpack.c.bf16 %v58, %v58
    %vm61 = vcmp.ne.s32.totalorder %v53, 15
    %vm62 = vcmp.ne.s32.totalorder %v54, 15
    %v63 = vsel %vm61, 1.0, 0.0
    %v64 = vsel %vm62, 1.0, 0.0
    %v65 = vpack.c.bf16 %v63, %v63
    %v66 = vpack.c.bf16 %v64, %v64
    %67 = vst [vmem:[#allocation2] sm:$0x3] 0
    %68 = vst [vmem:[#allocation2 + $0x6] sm:$0x3] 0
    %69 = vst [vmem:[#allocation3] sm:$0xf] 0
    %70 = vst [vmem:[#allocation3 + $0xc] sm:$0xf] 0
    %v71 = vld [vmem:[%s0] sm:$0xf]
    %v72 = vld [vmem:[%s2] sm:$0x3]
    %v75 = vunpack.c.l.s4 1966171168
    %v76 = vunpack.c.0.s8 %v75
    %v77 = vlaneseq
    %v78 = vshrl.u32 %v77, 7
    %v79 = vsub.s32 %v76, %v78
    %v80 = vrot.slane %v72, %v79
    %v81 = vcombine.high %v80, %v80
    %v83 = vunpack.c.l.s4 1966171168
    %v84 = vunpack.c.0.s8 %v83
    %v85 = vlaneseq
    %v86 = vshrl.u32 %v85, 7
    %v87 = vsub.s32 %v84, %v86
    %v88 = vrot.slane %v80, %v87
    %v90 = vunpack.c.l.s4 1966171168
    %v91 = vunpack.c.0.s8 %v90
    %v92 = vlaneseq
    %v93 = vshrl.u32 %v92, 7
    %v94 = vsub.s32 %v91, %v93
    %v95 = vrot.slane %v81, %v94
    %v97 = vpack.i.b16 %v88, %v88
    %v99 = vlaneseq
    %v100 = vshrl.u32 %v99, 7
    %v101 = vsub.s32 0, %v100
    %v102 = vrot.slane %v97, %v101
    %v104 = vpack.i.b16 %v95, %v95
    %v106 = vlaneseq
    %v107 = vshrl.u32 %v106, 7
    %v108 = vsub.s32 0, %v107
    %v109 = vrot.slane %v104, %v108
    %v112 = vcombine.low %v102, %v109
    %v114 = vunpack.c.l.s4 1983009808
    %v115 = vunpack.c.0.s8 %v114
    %v116 = vlaneseq
    %v117 = vshrl.u32 %v116, 7
    %v118 = vsub.s32 %v115, %v117
    %v119 = vrot.slane %v112, %v118
    %v121 = vmul.bf16 %v71, %v119
    %122 = vst [vmem:[#allocation2 + $0x2] sm:$0xf] %v121
    %v123 = vld [vmem:[#allocation2] sm:$0x3f]
    %v126 = vcombine.low %v59, %v60
    %v128 = vunpack.c.l.s4 1983009808
    %v129 = vunpack.c.0.s8 %v128
    %v130 = vlaneseq
    %v131 = vshrl.u32 %v130, 7
    %v132 = vsub.s32 %v129, %v131
    %v133 = vrot.slane %v126, %v132
    %134 = vrot.lane.b32.xlu0 %v133, 111
    %v135 = vpop.permute.xlu0 %134
    %v136 = vrot.slane %v135, 6
    %vm137 = vcmask 908288
    %v138 = vsel %vm137, %v136, %v135
    %v140 = vmul.bf16 %v123, %v138
    %v141 = vld [vmem:[%s3] sm:$0xf]
    %s142 = scalar_lea.vmem %s3, 4
    %v143 = vld [vmem:[%s142] sm:$0xf]
    %v145 = vcombine.high %v123, %v123
    %v147 = vunpack.c.l.s4 1983009808
    %v148 = vunpack.c.0.s8 %v147
    %v149 = vlaneseq
    %v150 = vshrl.u32 %v149, 7
    %v151 = vsub.s32 %v148, %v150
    %v152 = vrot.slane %v123, %v151
    %v154 = vunpack.c.l.s4 1983009808
    %v155 = vunpack.c.0.s8 %v154
    %v156 = vlaneseq
    %v157 = vshrl.u32 %v156, 7
    %v158 = vsub.s32 %v155, %v157
    %v159 = vrot.slane %v145, %v158
    %v160 = vcombine.high %v152, %v152
    %161 = vrot.lane.b32.xlu0 %v152, 16
    %v162 = vpop.permute.xlu0 %161
    %163 = vrot.lane.b32.xlu0 %v160, 16
    %v164 = vpop.permute.xlu0 %163
    %165 = vrot.lane.b32.xlu0 %v159, 16
    %v166 = vpop.permute.xlu0 %165
    %vm167 = vcmask 130048
    %v168 = vsel %vm167, %v162, %v164
    %v169 = vsel %vm167, %v164, %v166
    %vm170 = vcmask 31744
    %v172 = vsel %vm170, %v143, 0
    %vm174 = vcmask 1041408
    %v176 = vsel %vm174, %v168, 0
    %v179 = vsel %vm174, %v169, 0
    %181 = vmatprep.subr.bf16.mxu0 %v179
    %182 = vmatpush1.bf16.msra.mxu0 %v176
    %183 = vmatprep.subr.bf16.mxu0 0
    %184 = vmatpush1.bf16.msra.mxu0 0
    %185 = vmatprep.subr.bf16.mxu0 0
    %186 = vmatpush1.bf16.msra.mxu0 0
    %187 = vmatprep.subr.bf16.mxu0 0
    %188 = vmatpush1.bf16.msra.mxu0 0
    %189 = vmatprep.subr.bf16.mxu0 0
    %190 = vmatpush1.bf16.msra.mxu0 0
    %191 = vmatprep.subr.bf16.mxu0 0
    %192 = vmatpush1.bf16.msra.mxu0 0
    %193 = vmatprep.subr.bf16.mxu0 0
    %194 = vmatpush1.bf16.msra.mxu0 0
    %195 = vmatprep.subr.bf16.mxu0 0
    %196 = vmatpush1.bf16.msra.mxu0 0
    %197 = vmatprep.subr.bf16.mxu0 0
    %198 = vmatpush1.bf16.msra.mxu0 0
    %199 = vmatprep.subr.bf16.mxu0 0
    %200 = vmatpush1.bf16.msra.mxu0 0
    %201 = vmatprep.subr.bf16.mxu0 0
    %202 = vmatpush1.bf16.msra.mxu0 0
    %203 = vmatprep.subr.bf16.mxu0 0
    %204 = vmatpush1.bf16.msra.mxu0 0
    %205 = vmatprep.subr.bf16.mxu0 0
    %206 = vmatpush1.bf16.msra.mxu0 0
    %207 = vmatprep.subr.bf16.mxu0 0
    %208 = vmatpush1.bf16.msra.mxu0 0
    %209 = vmatprep.subr.bf16.mxu0 0
    %210 = vmatpush1.bf16.msra.mxu0 0
    %211 = vmatprep.subr.bf16.mxu0 0
    %212 = vmatpush1.bf16.msra.mxu0 0
    %213 = vmatprep.mubr.bf16.mxu0 0
    %214 = vmatmul.mubr.bf16.gmra.mrb[0].mxu0 %v172
    %v215 = vpop.f32.mrb[0].mxu0
    %v216 = vadd.f32 0.0, %v215
    %v217 = vpop.f32.mrb[0].mxu0
    %v218 = vadd.f32 0.0, %v217
    %v219 = vpop.f32.mrb[0].mxu0
    %v220 = vpop.f32.mrb[0].mxu0
    %221 = vdwg.mxu0
    %v223 = vcombine.high %v140, %v140
    %v225 = vunpack.c.l.s4 1983009808
    %v226 = vunpack.c.0.s8 %v225
    %v227 = vlaneseq
    %v228 = vshrl.u32 %v227, 7
    %v229 = vsub.s32 %v226, %v228
    %v230 = vrot.slane %v140, %v229
    %v232 = vunpack.c.l.s4 1983009808
    %v233 = vunpack.c.0.s8 %v232
    %v234 = vlaneseq
    %v235 = vshrl.u32 %v234, 7
    %v236 = vsub.s32 %v233, %v235
    %v237 = vrot.slane %v223, %v236
    %v238 = vcombine.high %v230, %v230
    %239 = vrot.lane.b32.xlu0 %v230, 17
    %v240 = vpop.permute.xlu0 %239
    %241 = vrot.lane.b32.xlu0 %v238, 17
    %v242 = vpop.permute.xlu0 %241
    %243 = vrot.lane.b32.xlu0 %v237, 17
    %v244 = vpop.permute.xlu0 %243
    %vm245 = vcmask 138240
    %v246 = vsel %vm245, %v240, %v242
    %v247 = vsel %vm245, %v242, %v244
    %v249 = vsel %vm170, %v141, 0
    %v252 = vsel %vm174, %v246, 0
    %v255 = vsel %vm174, %v247, 0
    %257 = vmatprep.subr.bf16.mxu0 %v255
    %258 = vmatpush1.bf16.msra.mxu0 %v252
    %259 = vmatprep.subr.bf16.mxu0 0
    %260 = vmatpush1.bf16.msra.mxu0 0
    %261 = vmatprep.subr.bf16.mxu0 0
    %262 = vmatpush1.bf16.msra.mxu0 0
    %263 = vmatprep.subr.bf16.mxu0 0
    %264 = vmatpush1.bf16.msra.mxu0 0
    %265 = vmatprep.subr.bf16.mxu0 0
    %266 = vmatpush1.bf16.msra.mxu0 0
    %267 = vmatprep.subr.bf16.mxu0 0
    %268 = vmatpush1.bf16.msra.mxu0 0
    %269 = vmatprep.subr.bf16.mxu0 0
    %270 = vmatpush1.bf16.msra.mxu0 0
    %271 = vmatprep.subr.bf16.mxu0 0
    %272 = vmatpush1.bf16.msra.mxu0 0
    %273 = vmatprep.subr.bf16.mxu0 0
    %274 = vmatpush1.bf16.msra.mxu0 0
    %275 = vmatprep.subr.bf16.mxu0 0
    %276 = vmatpush1.bf16.msra.mxu0 0
    %277 = vmatprep.subr.bf16.mxu0 0
    %278 = vmatpush1.bf16.msra.mxu0 0
    %279 = vmatprep.subr.bf16.mxu0 0
    %280 = vmatpush1.bf16.msra.mxu0 0
    %281 = vmatprep.subr.bf16.mxu0 0
    %282 = vmatpush1.bf16.msra.mxu0 0
    %283 = vmatprep.subr.bf16.mxu0 0
    %284 = vmatpush1.bf16.msra.mxu0 0
    %285 = vmatprep.subr.bf16.mxu0 0
    %286 = vmatpush1.bf16.msra.mxu0 0
    %287 = vmatprep.subr.bf16.mxu0 0
    %288 = vmatpush1.bf16.msra.mxu0 0
    %289 = vmatprep.mubr.bf16.mxu0 0
    %290 = vmatmul.mubr.bf16.gmra.mrb[0].mxu0 %v249
    %v291 = vpop.f32.mrb[0].mxu0
    %v292 = vadd.f32 %v216, %v291
    %v293 = vpop.f32.mrb[0].mxu0
    %v294 = vadd.f32 %v218, %v293
    %v295 = vpop.f32.mrb[0].mxu0
    %v296 = vpop.f32.mrb[0].mxu0
    %297 = vdwg.mxu0
    %v298 = vld [vmem:[#allocation2] sm:$0x3f]
    %v301 = vcombine.low %v65, %v66
    %v303 = vunpack.c.l.s4 1983009808
    %v304 = vunpack.c.0.s8 %v303
    %v305 = vlaneseq
    %v306 = vshrl.u32 %v305, 7
    %v307 = vsub.s32 %v304, %v306
    %v308 = vrot.slane %v301, %v307
    %309 = vrot.lane.b32.xlu0 %v308, 113
    %v310 = vpop.permute.xlu0 %309
    %v311 = vrot.slane %v310, 6
    %vm312 = vcmask 924672
    %v313 = vsel %vm312, %v311, %v310
    %v315 = vmul.bf16 %v298, %v313
    %s316 = scalar_lea.vmem %s3, 8
    %v317 = vld [vmem:[%s316] sm:$0xf]
    %v319 = vcombine.high %v315, %v315
    %v321 = vunpack.c.l.s4 1983009808
    %v322 = vunpack.c.0.s8 %v321
    %v323 = vlaneseq
    %v324 = vshrl.u32 %v323, 7
    %v325 = vsub.s32 %v322, %v324
    %v326 = vrot.slane %v315, %v325
    %v328 = vunpack.c.l.s4 1983009808
    %v329 = vunpack.c.0.s8 %v328
    %v330 = vlaneseq
    %v331 = vshrl.u32 %v330, 7
    %v332 = vsub.s32 %v329, %v331
    %v333 = vrot.slane %v319, %v332
    %v334 = vcombine.high %v326, %v326
    %335 = vrot.lane.b32.xlu0 %v326, 15
    %v336 = vpop.permute.xlu0 %335
    %337 = vrot.lane.b32.xlu0 %v334, 15
    %v338 = vpop.permute.xlu0 %337
    %339 = vrot.lane.b32.xlu0 %v333, 15
    %v340 = vpop.permute.xlu0 %339
    %vm341 = vcmask 121856
    %v342 = vsel %vm341, %v336, %v338
    %v343 = vsel %vm341, %v338, %v340
    %v345 = vsel %vm170, %v317, 0
    %v348 = vsel %vm174, %v342, 0
    %v351 = vsel %vm174, %v343, 0
    %353 = vmatprep.subr.bf16.mxu0 %v351
    %354 = vmatpush1.bf16.msra.mxu0 %v348
    %355 = vmatprep.subr.bf16.mxu0 0
    %356 = vmatpush1.bf16.msra.mxu0 0
    %357 = vmatprep.subr.bf16.mxu0 0
    %358 = vmatpush1.bf16.msra.mxu0 0
    %359 = vmatprep.subr.bf16.mxu0 0
    %360 = vmatpush1.bf16.msra.mxu0 0
    %361 = vmatprep.subr.bf16.mxu0 0
    %362 = vmatpush1.bf16.msra.mxu0 0
    %363 = vmatprep.subr.bf16.mxu0 0
    %364 = vmatpush1.bf16.msra.mxu0 0
    %365 = vmatprep.subr.bf16.mxu0 0
    %366 = vmatpush1.bf16.msra.mxu0 0
    %367 = vmatprep.subr.bf16.mxu0 0
    %368 = vmatpush1.bf16.msra.mxu0 0
    %369 = vmatprep.subr.bf16.mxu0 0
    %370 = vmatpush1.bf16.msra.mxu0 0
    %371 = vmatprep.subr.bf16.mxu0 0
    %372 = vmatpush1.bf16.msra.mxu0 0
    %373 = vmatprep.subr.bf16.mxu0 0
    %374 = vmatpush1.bf16.msra.mxu0 0
    %375 = vmatprep.subr.bf16.mxu0 0
    %376 = vmatpush1.bf16.msra.mxu0 0
    %377 = vmatprep.subr.bf16.mxu0 0
    %378 = vmatpush1.bf16.msra.mxu0 0
    %379 = vmatprep.subr.bf16.mxu0 0
    %380 = vmatpush1.bf16.msra.mxu0 0
    %381 = vmatprep.subr.bf16.mxu0 0
    %382 = vmatpush1.bf16.msra.mxu0 0
    %383 = vmatprep.subr.bf16.mxu0 0
    %384 = vmatpush1.bf16.msra.mxu0 0
    %385 = vmatprep.mubr.bf16.mxu0 0
    %386 = vmatmul.mubr.bf16.gmra.mrb[0].mxu0 %v345
    %v387 = vpop.f32.mrb[0].mxu0
    %v388 = vadd.f32 0.0, %v387
    %v389 = vpop.f32.mrb[0].mxu0
    %v390 = vadd.f32 0.0, %v389
    %v391 = vpop.f32.mrb[0].mxu0
    %v392 = vpop.f32.mrb[0].mxu0
    %393 = vdwg.mxu0
    %v394 = vadd.f32 %v292, %v388
    %v395 = vadd.f32 %v294, %v390
    %v396 = vld [vmem:[#allocation2] sm:$0x3f]
    %397 = vrot.lane.b32.xlu0 %v133, 127
    %v398 = vpop.permute.xlu0 %397
    %v399 = vrot.slane %v398, 6
    %vm400 = vcmask 1039360
    %v401 = vsel %vm400, %v399, %v398
    %v403 = vmul.bf16 %v396, %v401
    %s404 = scalar_lea.vmem %s3, 12
    %v405 = vld [vmem:[%s404] sm:$0xf]
    %v407 = vcombine.high %v403, %v403
    %v409 = vunpack.c.l.s4 1983009808
    %v410 = vunpack.c.0.s8 %v409
    %v411 = vlaneseq
    %v412 = vshrl.u32 %v411, 7
    %v413 = vsub.s32 %v410, %v412
    %v414 = vrot.slane %v403, %v413
    %v416 = vunpack.c.l.s4 1983009808
    %v417 = vunpack.c.0.s8 %v416
    %v418 = vlaneseq
    %v419 = vshrl.u32 %v418, 7
    %v420 = vsub.s32 %v417, %v419
    %v421 = vrot.slane %v407, %v420
    %v422 = vcombine.high %v414, %v414
    %423 = vrot.lane.b32.xlu0 %v414, 1
    %v424 = vpop.permute.xlu0 %423
    %425 = vrot.lane.b32.xlu0 %v422, 1
    %v426 = vpop.permute.xlu0 %425
    %427 = vrot.lane.b32.xlu0 %v421, 1
    %v428 = vpop.permute.xlu0 %427
    %vm429 = vcmask 7168
    %v430 = vsel %vm429, %v424, %v426
    %v431 = vsel %vm429, %v426, %v428
    %v433 = vsel %vm170, %v405, 0
    %v436 = vsel %vm174, %v430, 0
    %v439 = vsel %vm174, %v431, 0
    %441 = vmatprep.subr.bf16.mxu0 %v439
    %442 = vmatpush1.bf16.msra.mxu0 %v436
    %443 = vmatprep.subr.bf16.mxu0 0
    %444 = vmatpush1.bf16.msra.mxu0 0
    %445 = vmatprep.subr.bf16.mxu0 0
    %446 = vmatpush1.bf16.msra.mxu0 0
    %447 = vmatprep.subr.bf16.mxu0 0
    %448 = vmatpush1.bf16.msra.mxu0 0
    %449 = vmatprep.subr.bf16.mxu0 0
    %450 = vmatpush1.bf16.msra.mxu0 0
    %451 = vmatprep.subr.bf16.mxu0 0
    %452 = vmatpush1.bf16.msra.mxu0 0
    %453 = vmatprep.subr.bf16.mxu0 0
    %454 = vmatpush1.bf16.msra.mxu0 0
    %455 = vmatprep.subr.bf16.mxu0 0
    %456 = vmatpush1.bf16.msra.mxu0 0
    %457 = vmatprep.subr.bf16.mxu0 0
    %458 = vmatpush1.bf16.msra.mxu0 0
    %459 = vmatprep.subr.bf16.mxu0 0
    %460 = vmatpush1.bf16.msra.mxu0 0
    %461 = vmatprep.subr.bf16.mxu0 0
    %462 = vmatpush1.bf16.msra.mxu0 0
    %463 = vmatprep.subr.bf16.mxu0 0
    %464 = vmatpush1.bf16.msra.mxu0 0
    %465 = vmatprep.subr.bf16.mxu0 0
    %466 = vmatpush1.bf16.msra.mxu0 0
    %467 = vmatprep.subr.bf16.mxu0 0
    %468 = vmatpush1.bf16.msra.mxu0 0
    %469 = vmatprep.subr.bf16.mxu0 0
    %470 = vmatpush1.bf16.msra.mxu0 0
    %471 = vmatprep.subr.bf16.mxu0 0
    %472 = vmatpush1.bf16.msra.mxu0 0
    %473 = vmatprep.mubr.bf16.mxu0 0
    %474 = vmatmul.mubr.bf16.gmra.mrb[0].mxu0 %v433
    %v475 = vpop.f32.mrb[0].mxu0
    %v476 = vadd.f32 0.0, %v475
    %v477 = vpop.f32.mrb[0].mxu0
    %v478 = vadd.f32 0.0, %v477
    %v479 = vpop.f32.mrb[0].mxu0
    %v480 = vpop.f32.mrb[0].mxu0
    %481 = vdwg.mxu0
    %v482 = vadd.f32 %v394, %v476
    %v483 = vadd.f32 %v395, %v478
    %v484 = vld [vmem:[#allocation2 + $0x2] sm:$0xf]
    %s485 = scalar_lea.vmem %s3, 16
    %v486 = vld [vmem:[%s485] sm:$0xf]
    %v489 = vunpack.c.l.s4 1983009808
    %v490 = vunpack.c.0.s8 %v489
    %v491 = vlaneseq
    %v492 = vshrl.u32 %v491, 7
    %v493 = vsub.s32 %v490, %v492
    %v494 = vrot.slane %v484, %v493
    %v495 = vcombine.high %v494, %v494
    %v497 = vsel %vm170, %v486, 0
    %v500 = vsel %vm174, %v494, 0
    %v503 = vsel %vm174, %v495, 0
    %505 = vmatprep.subr.bf16.mxu0 %v503
    %506 = vmatpush1.bf16.msra.mxu0 %v500
    %507 = vmatprep.subr.bf16.mxu0 0
    %508 = vmatpush1.bf16.msra.mxu0 0
    %509 = vmatprep.subr.bf16.mxu0 0
    %510 = vmatpush1.bf16.msra.mxu0 0
    %511 = vmatprep.subr.bf16.mxu0 0
    %512 = vmatpush1.bf16.msra.mxu0 0
    %513 = vmatprep.subr.bf16.mxu0 0
    %514 = vmatpush1.bf16.msra.mxu0 0
    %515 = vmatprep.subr.bf16.mxu0 0
    %516 = vmatpush1.bf16.msra.mxu0 0
    %517 = vmatprep.subr.bf16.mxu0 0
    %518 = vmatpush1.bf16.msra.mxu0 0
    %519 = vmatprep.subr.bf16.mxu0 0
    %520 = vmatpush1.bf16.msra.mxu0 0
    %521 = vmatprep.subr.bf16.mxu0 0
    %522 = vmatpush1.bf16.msra.mxu0 0
    %523 = vmatprep.subr.bf16.mxu0 0
    %524 = vmatpush1.bf16.msra.mxu0 0
    %525 = vmatprep.subr.bf16.mxu0 0
    %526 = vmatpush1.bf16.msra.mxu0 0
    %527 = vmatprep.subr.bf16.mxu0 0
    %528 = vmatpush1.bf16.msra.mxu0 0
    %529 = vmatprep.subr.bf16.mxu0 0
    %530 = vmatpush1.bf16.msra.mxu0 0
    %531 = vmatprep.subr.bf16.mxu0 0
    %532 = vmatpush1.bf16.msra.mxu0 0
    %533 = vmatprep.subr.bf16.mxu0 0
    %534 = vmatpush1.bf16.msra.mxu0 0
    %535 = vmatprep.subr.bf16.mxu0 0
    %536 = vmatpush1.bf16.msra.mxu0 0
    %537 = vmatprep.mubr.bf16.mxu0 0
    %538 = vmatmul.mubr.bf16.gmra.mrb[0].mxu0 %v497
    %v539 = vpop.f32.mrb[0].mxu0
    %v540 = vadd.f32 0.0, %v539
    %v541 = vpop.f32.mrb[0].mxu0
    %v542 = vadd.f32 0.0, %v541
    %v543 = vpop.f32.mrb[0].mxu0
    %v544 = vpop.f32.mrb[0].mxu0
    %545 = vdwg.mxu0
    %v546 = vadd.f32 %v482, %v540
    %v547 = vadd.f32 %v483, %v542
    %v548 = vld [vmem:[#allocation2 + $0x2] sm:$0x3f]
    %549 = vrot.lane.b32.xlu0 %v308, 1
    %v550 = vpop.permute.xlu0 %549
    %v551 = vrot.slane %v550, 6
    %v552 = vsel %vm429, %v551, %v550
    %v554 = vmul.bf16 %v548, %v552
    %s555 = scalar_lea.vmem %s3, 20
    %v556 = vld [vmem:[%s555] sm:$0xf]
    %v558 = vcombine.high %v554, %v554
    %v560 = vunpack.c.l.s4 1983009808
    %v561 = vunpack.c.0.s8 %v560
    %v562 = vlaneseq
    %v563 = vshrl.u32 %v562, 7
    %v564 = vsub.s32 %v561, %v563
    %v565 = vrot.slane %v554, %v564
    %v567 = vunpack.c.l.s4 1983009808
    %v568 = vunpack.c.0.s8 %v567
    %v569 = vlaneseq
    %v570 = vshrl.u32 %v569, 7
    %v571 = vsub.s32 %v568, %v570
    %v572 = vrot.slane %v558, %v571
    %v573 = vcombine.high %v565, %v565
    %574 = vrot.lane.b32.xlu0 %v565, 127
    %v575 = vpop.permute.xlu0 %574
    %576 = vrot.lane.b32.xlu0 %v573, 127
    %v577 = vpop.permute.xlu0 %576
    %578 = vrot.lane.b32.xlu0 %v572, 127
    %v579 = vpop.permute.xlu0 %578
    %v580 = vsel %vm400, %v575, %v577
    %v581 = vsel %vm400, %v577, %v579
    %v583 = vsel %vm170, %v556, 0
    %v586 = vsel %vm174, %v580, 0
    %v589 = vsel %vm174, %v581, 0
    %591 = vmatprep.subr.bf16.mxu0 %v589
    %592 = vmatpush1.bf16.msra.mxu0 %v586
    %593 = vmatprep.subr.bf16.mxu0 0
    %594 = vmatpush1.bf16.msra.mxu0 0
    %595 = vmatprep.subr.bf16.mxu0 0
    %596 = vmatpush1.bf16.msra.mxu0 0
    %597 = vmatprep.subr.bf16.mxu0 0
    %598 = vmatpush1.bf16.msra.mxu0 0
    %599 = vmatprep.subr.bf16.mxu0 0
    %600 = vmatpush1.bf16.msra.mxu0 0
    %601 = vmatprep.subr.bf16.mxu0 0
    %602 = vmatpush1.bf16.msra.mxu0 0
    %603 = vmatprep.subr.bf16.mxu0 0
    %604 = vmatpush1.bf16.msra.mxu0 0
    %605 = vmatprep.subr.bf16.mxu0 0
    %606 = vmatpush1.bf16.msra.mxu0 0
    %607 = vmatprep.subr.bf16.mxu0 0
    %608 = vmatpush1.bf16.msra.mxu0 0
    %609 = vmatprep.subr.bf16.mxu0 0
    %610 = vmatpush1.bf16.msra.mxu0 0
    %611 = vmatprep.subr.bf16.mxu0 0
    %612 = vmatpush1.bf16.msra.mxu0 0
    %613 = vmatprep.subr.bf16.mxu0 0
    %614 = vmatpush1.bf16.msra.mxu0 0
    %615 = vmatprep.subr.bf16.mxu0 0
    %616 = vmatpush1.bf16.msra.mxu0 0
    %617 = vmatprep.subr.bf16.mxu0 0
    %618 = vmatpush1.bf16.msra.mxu0 0
    %619 = vmatprep.subr.bf16.mxu0 0
    %620 = vmatpush1.bf16.msra.mxu0 0
    %621 = vmatprep.subr.bf16.mxu0 0
    %622 = vmatpush1.bf16.msra.mxu0 0
    %623 = vmatprep.mubr.bf16.mxu0 0
    %624 = vmatmul.mubr.bf16.gmra.mrb[0].mxu0 %v583
    %v625 = vpop.f32.mrb[0].mxu0
    %v626 = vadd.f32 0.0, %v625
    %v627 = vpop.f32.mrb[0].mxu0
    %v628 = vadd.f32 0.0, %v627
    %v629 = vpop.f32.mrb[0].mxu0
    %v630 = vpop.f32.mrb[0].mxu0
    %631 = vdwg.mxu0
    %v632 = vadd.f32 %v546, %v626
    %v633 = vadd.f32 %v547, %v628
    %v634 = vld [vmem:[#allocation2 + $0x2] sm:$0x3f]
    %635 = vrot.lane.b32.xlu0 %v133, 15
    %v636 = vpop.permute.xlu0 %635
    %v637 = vrot.slane %v636, 6
    %v638 = vsel %vm341, %v637, %v636
    %v640 = vmul.bf16 %v634, %v638
    %s641 = scalar_lea.vmem %s3, 24
    %v642 = vld [vmem:[%s641] sm:$0xf]
    %v644 = vcombine.high %v640, %v640
    %v646 = vunpack.c.l.s4 1983009808
    %v647 = vunpack.c.0.s8 %v646
    %v648 = vlaneseq
    %v649 = vshrl.u32 %v648, 7
    %v650 = vsub.s32 %v647, %v649
    %v651 = vrot.slane %v640, %v650
    %v653 = vunpack.c.l.s4 1983009808
    %v654 = vunpack.c.0.s8 %v653
    %v655 = vlaneseq
    %v656 = vshrl.u32 %v655, 7
    %v657 = vsub.s32 %v654, %v656
    %v658 = vrot.slane %v644, %v657
    %v659 = vcombine.high %v651, %v651
    %660 = vrot.lane.b32.xlu0 %v651, 113
    %v661 = vpop.permute.xlu0 %660
    %662 = vrot.lane.b32.xlu0 %v659, 113
    %v663 = vpop.permute.xlu0 %662
    %664 = vrot.lane.b32.xlu0 %v658, 113
    %v665 = vpop.permute.xlu0 %664
    %v666 = vsel %vm312, %v661, %v663
    %v667 = vsel %vm312, %v663, %v665
    %v669 = vsel %vm170, %v642, 0
    %v672 = vsel %vm174, %v666, 0
    %v675 = vsel %vm174, %v667, 0
    %677 = vmatprep.subr.bf16.mxu0 %v675
    %678 = vmatpush1.bf16.msra.mxu0 %v672
    %679 = vmatprep.subr.bf16.mxu0 0
    %680 = vmatpush1.bf16.msra.mxu0 0
    %681 = vmatprep.subr.bf16.mxu0 0
    %682 = vmatpush1.bf16.msra.mxu0 0
    %683 = vmatprep.subr.bf16.mxu0 0
    %684 = vmatpush1.bf16.msra.mxu0 0
    %685 = vmatprep.subr.bf16.mxu0 0
    %686 = vmatpush1.bf16.msra.mxu0 0
    %687 = vmatprep.subr.bf16.mxu0 0
    %688 = vmatpush1.bf16.msra.mxu0 0
    %689 = vmatprep.subr.bf16.mxu0 0
    %690 = vmatpush1.bf16.msra.mxu0 0
    %691 = vmatprep.subr.bf16.mxu0 0
    %692 = vmatpush1.bf16.msra.mxu0 0
    %693 = vmatprep.subr.bf16.mxu0 0
    %694 = vmatpush1.bf16.msra.mxu0 0
    %695 = vmatprep.subr.bf16.mxu0 0
    %696 = vmatpush1.bf16.msra.mxu0 0
    %697 = vmatprep.subr.bf16.mxu0 0
    %698 = vmatpush1.bf16.msra.mxu0 0
    %699 = vmatprep.subr.bf16.mxu0 0
    %700 = vmatpush1.bf16.msra.mxu0 0
    %701 = vmatprep.subr.bf16.mxu0 0
    %702 = vmatpush1.bf16.msra.mxu0 0
    %703 = vmatprep.subr.bf16.mxu0 0
    %704 = vmatpush1.bf16.msra.mxu0 0
    %705 = vmatprep.subr.bf16.mxu0 0
    %706 = vmatpush1.bf16.msra.mxu0 0
    %707 = vmatprep.subr.bf16.mxu0 0
    %708 = vmatpush1.bf16.msra.mxu0 0
    %709 = vmatprep.mubr.bf16.mxu0 0
    %710 = vmatmul.mubr.bf16.gmra.mrb[0].mxu0 %v669
    %v711 = vpop.f32.mrb[0].mxu0
    %v712 = vadd.f32 0.0, %v711
    %v713 = vpop.f32.mrb[0].mxu0
    %v714 = vadd.f32 0.0, %v713
    %v715 = vpop.f32.mrb[0].mxu0
    %v716 = vpop.f32.mrb[0].mxu0
    %717 = vdwg.mxu0
    %v718 = vadd.f32 %v632, %v712
    %v719 = vadd.f32 %v633, %v714
    %v720 = vld [vmem:[#allocation2 + $0x2] sm:$0x3f]
    %s721 = scalar_lea.vmem %s3, 28
    %v722 = vld [vmem:[%s721] sm:$0xf]
    %v724 = vcombine.high %v720, %v720
    %v726 = vunpack.c.l.s4 1983009808
    %v727 = vunpack.c.0.s8 %v726
    %v728 = vlaneseq
    %v729 = vshrl.u32 %v728, 7
    %v730 = vsub.s32 %v727, %v729
    %v731 = vrot.slane %v720, %v730
    %v733 = vunpack.c.l.s4 1983009808
    %v734 = vunpack.c.0.s8 %v733
    %v735 = vlaneseq
    %v736 = vshrl.u32 %v735, 7
    %v737 = vsub.s32 %v734, %v736
    %v738 = vrot.slane %v724, %v737
    %v739 = vcombine.high %v731, %v731
    %740 = vrot.lane.b32.xlu0 %v731, 112
    %v741 = vpop.permute.xlu0 %740
    %742 = vrot.lane.b32.xlu0 %v739, 112
    %v743 = vpop.permute.xlu0 %742
    %744 = vrot.lane.b32.xlu0 %v738, 112
    %v745 = vpop.permute.xlu0 %744
    %vm746 = vcmask 916480
    %v747 = vsel %vm746, %v741, %v743
    %v748 = vsel %vm746, %v743, %v745
    %v750 = vsel %vm170, %v722, 0
    %v753 = vsel %vm174, %v747, 0
    %v756 = vsel %vm174, %v748, 0
    %758 = vmatprep.subr.bf16.mxu0 %v756
    %759 = vmatpush1.bf16.msra.mxu0 %v753
    %760 = vmatprep.subr.bf16.mxu0 0
    %761 = vmatpush1.bf16.msra.mxu0 0
    %762 = vmatprep.subr.bf16.mxu0 0
    %763 = vmatpush1.bf16.msra.mxu0 0
    %764 = vmatprep.subr.bf16.mxu0 0
    %765 = vmatpush1.bf16.msra.mxu0 0
    %766 = vmatprep.subr.bf16.mxu0 0
    %767 = vmatpush1.bf16.msra.mxu0 0
    %768 = vmatprep.subr.bf16.mxu0 0
    %769 = vmatpush1.bf16.msra.mxu0 0
    %770 = vmatprep.subr.bf16.mxu0 0
    %771 = vmatpush1.bf16.msra.mxu0 0
    %772 = vmatprep.subr.bf16.mxu0 0
    %773 = vmatpush1.bf16.msra.mxu0 0
    %774 = vmatprep.subr.bf16.mxu0 0
    %775 = vmatpush1.bf16.msra.mxu0 0
    %776 = vmatprep.subr.bf16.mxu0 0
    %777 = vmatpush1.bf16.msra.mxu0 0
    %778 = vmatprep.subr.bf16.mxu0 0
    %779 = vmatpush1.bf16.msra.mxu0 0
    %780 = vmatprep.subr.bf16.mxu0 0
    %781 = vmatpush1.bf16.msra.mxu0 0
    %782 = vmatprep.subr.bf16.mxu0 0
    %783 = vmatpush1.bf16.msra.mxu0 0
    %784 = vmatprep.subr.bf16.mxu0 0
    %785 = vmatpush1.bf16.msra.mxu0 0
    %786 = vmatprep.subr.bf16.mxu0 0
    %787 = vmatpush1.bf16.msra.mxu0 0
    %788 = vmatprep.subr.bf16.mxu0 0
    %789 = vmatpush1.bf16.msra.mxu0 0
    %790 = vmatprep.mubr.bf16.mxu0 0
    %791 = vmatmul.mubr.bf16.gmra.mrb[0].mxu0 %v750
    %v792 = vpop.f32.mrb[0].mxu0
    %v793 = vadd.f32 0.0, %v792
    %v794 = vpop.f32.mrb[0].mxu0
    %v795 = vadd.f32 0.0, %v794
    %v796 = vpop.f32.mrb[0].mxu0
    %v797 = vpop.f32.mrb[0].mxu0
    %798 = vdwg.mxu0
    %v799 = vadd.f32 %v718, %v793
    %v800 = vadd.f32 %v719, %v795
    %v801 = vld [vmem:[#allocation2 + $0x2] sm:$0x3f]
    %802 = vrot.lane.b32.xlu0 %v308, 17
    %v803 = vpop.permute.xlu0 %802
    %v804 = vrot.slane %v803, 6
    %v805 = vsel %vm245, %v804, %v803
    %v807 = vmul.bf16 %v801, %v805
    %s808 = scalar_lea.vmem %s3, 32
    %v809 = vld [vmem:[%s808] sm:$0xf]
    %v811 = vcombine.high %v807, %v807
    %v813 = vunpack.c.l.s4 1983009808
    %v814 = vunpack.c.0.s8 %v813
    %v815 = vlaneseq
    %v816 = vshrl.u32 %v815, 7
    %v817 = vsub.s32 %v814, %v816
    %v818 = vrot.slane %v807, %v817
    %v820 = vunpack.c.l.s4 1983009808
    %v821 = vunpack.c.0.s8 %v820
    %v822 = vlaneseq
    %v823 = vshrl.u32 %v822, 7
    %v824 = vsub.s32 %v821, %v823
    %v825 = vrot.slane %v811, %v824
    %v826 = vcombine.high %v818, %v818
    %827 = vrot.lane.b32.xlu0 %v818, 111
    %v828 = vpop.permute.xlu0 %827
    %829 = vrot.lane.b32.xlu0 %v826, 111
    %v830 = vpop.permute.xlu0 %829
    %831 = vrot.lane.b32.xlu0 %v825, 111
    %v832 = vpop.permute.xlu0 %831
    %v833 = vsel %vm137, %v828, %v830
    %v834 = vsel %vm137, %v830, %v832
    %v836 = vsel %vm170, %v809, 0
    %v839 = vsel %vm174, %v833, 0
    %v842 = vsel %vm174, %v834, 0
    %844 = vmatprep.subr.bf16.mxu0 %v842
    %845 = vmatpush1.bf16.msra.mxu0 %v839
    %846 = vmatprep.subr.bf16.mxu0 0
    %847 = vmatpush1.bf16.msra.mxu0 0
    %848 = vmatprep.subr.bf16.mxu0 0
    %849 = vmatpush1.bf16.msra.mxu0 0
    %850 = vmatprep.subr.bf16.mxu0 0
    %851 = vmatpush1.bf16.msra.mxu0 0
    %852 = vmatprep.subr.bf16.mxu0 0
    %853 = vmatpush1.bf16.msra.mxu0 0
    %854 = vmatprep.subr.bf16.mxu0 0
    %855 = vmatpush1.bf16.msra.mxu0 0
    %856 = vmatprep.subr.bf16.mxu0 0
    %857 = vmatpush1.bf16.msra.mxu0 0
    %858 = vmatprep.subr.bf16.mxu0 0
    %859 = vmatpush1.bf16.msra.mxu0 0
    %860 = vmatprep.subr.bf16.mxu0 0
    %861 = vmatpush1.bf16.msra.mxu0 0
    %862 = vmatprep.subr.bf16.mxu0 0
    %863 = vmatpush1.bf16.msra.mxu0 0
    %864 = vmatprep.subr.bf16.mxu0 0
    %865 = vmatpush1.bf16.msra.mxu0 0
    %866 = vmatprep.subr.bf16.mxu0 0
    %867 = vmatpush1.bf16.msra.mxu0 0
    %868 = vmatprep.subr.bf16.mxu0 0
    %869 = vmatpush1.bf16.msra.mxu0 0
    %870 = vmatprep.subr.bf16.mxu0 0
    %871 = vmatpush1.bf16.msra.mxu0 0
    %872 = vmatprep.subr.bf16.mxu0 0
    %873 = vmatpush1.bf16.msra.mxu0 0
    %874 = vmatprep.subr.bf16.mxu0 0
    %875 = vmatpush1.bf16.msra.mxu0 0
    %876 = vmatprep.mubr.bf16.mxu0 0
    %877 = vmatmul.mubr.bf16.gmra.mrb[0].mxu0 %v836
    %v878 = vpop.f32.mrb[0].mxu0
    %v879 = vadd.f32 0.0, %v878
    %v880 = vpop.f32.mrb[0].mxu0
    %v881 = vadd.f32 0.0, %v880
    %v882 = vpop.f32.mrb[0].mxu0
    %v883 = vpop.f32.mrb[0].mxu0
    %884 = vdwg.mxu0
    %v885 = vadd.f32 %v799, %v879
    %v886 = vadd.f32 %v800, %v881
    %v887 = vld [vmem:[%s4] sm:$0xff]
    %889 = vset.pattern.permute.xlu0 0
    %890 = vperm.xlu0 %889, %v887
    %v891 = vpop.permute.xlu0 %890
    %v893 = vadd.f32 %v885, %v891
    %v894 = vadd.f32 %v886, %v891
    %v895 = vmax.f32 %v893, 0.0
    %v896 = vmax.f32 %v894, 0.0
    %v897 = vpack.c.bf16 %v895, %v895
    %v898 = vpack.c.bf16 %v896, %v896
    %v901 = vunpack.c.l.b16 %v897
    %v902 = vunpack.c.l.b16 %v898
    %v903 = vpack.c.b16 %v902, %v901
    %905 = vst [vmem:[#allocation3 + $0x4] sm:$0xff] %v903
    %v906 = vld [vmem:[#allocation3] sm:$0xff]
    %v907 = vld [vmem:[#allocation3 + $0x8] sm:$0xf]
    %v908 = vunpack.c.l.b16 %v59
    %v909 = vunpack.c.l.b16 %v60
    %v910 = vpack.c.b16 %v909, %v908
    %911 = vrot.lane.b32.xlu0 %v910, 111
    %v912 = vpop.permute.xlu0 %911
    %v913 = vrot.slane %v912, 4
    %v914 = vsel %vm137, %v913, %v912
    %v917 = vmul.bf16 %v906, %v914
    %v918 = vmul.bf16 %v907, %v913
    %v919 = vld [vmem:[%s5] sm:$0xf]
    %s920 = scalar_lea.vmem %s5, 4
    %v921 = vld [vmem:[%s920] sm:$0xf]
    %v924 = vunpack.c.l.b16 %v906
    %v925 = vunpack.c.h.b16 %v906
    %v926 = vunpack.c.l.b16 %v907
    %v927 = vpack.c.b16 %v924, %v924
    %v928 = vpack.c.b16 %v925, %v925
    %v929 = vpack.c.b16 %v926, %v926
    %930 = vrot.lane.b32.xlu0 %v927, 16
    %v931 = vpop.permute.xlu0 %930
    %932 = vrot.lane.b32.xlu0 %v928, 16
    %v933 = vpop.permute.xlu0 %932
    %934 = vrot.lane.b32.xlu0 %v929, 16
    %v935 = vpop.permute.xlu0 %934
    %v936 = vsel %vm167, %v931, %v933
    %v937 = vsel %vm167, %v933, %v935
    %vm938 = vcmask 64512
    %v940 = vsel %vm938, %v921, 0
    %vm942 = vcmask 1043456
    %v944 = vsel %vm942, %v936, 0
    %v947 = vsel %vm942, %v937, 0
    %949 = vmatprep.subr.bf16.mxu0 %v947
    %950 = vmatpush1.bf16.msra.mxu0 %v944
    %951 = vmatprep.subr.bf16.mxu0 0
    %952 = vmatpush1.bf16.msra.mxu0 0
    %953 = vmatprep.subr.bf16.mxu0 0
    %954 = vmatpush1.bf16.msra.mxu0 0
    %955 = vmatprep.subr.bf16.mxu0 0
    %956 = vmatpush1.bf16.msra.mxu0 0
    %957 = vmatprep.subr.bf16.mxu0 0
    %958 = vmatpush1.bf16.msra.mxu0 0
    %959 = vmatprep.subr.bf16.mxu0 0
    %960 = vmatpush1.bf16.msra.mxu0 0
    %961 = vmatprep.subr.bf16.mxu0 0
    %962 = vmatpush1.bf16.msra.mxu0 0
    %963 = vmatprep.subr.bf16.mxu0 0
    %964 = vmatpush1.bf16.msra.mxu0 0
    %965 = vmatprep.subr.bf16.mxu0 0
    %966 = vmatpush1.bf16.msra.mxu0 0
    %967 = vmatprep.subr.bf16.mxu0 0
    %968 = vmatpush1.bf16.msra.mxu0 0
    %969 = vmatprep.subr.bf16.mxu0 0
    %970 = vmatpush1.bf16.msra.mxu0 0
    %971 = vmatprep.subr.bf16.mxu0 0
    %972 = vmatpush1.bf16.msra.mxu0 0
    %973 = vmatprep.subr.bf16.mxu0 0
    %974 = vmatpush1.bf16.msra.mxu0 0
    %975 = vmatprep.subr.bf16.mxu0 0
    %976 = vmatpush1.bf16.msra.mxu0 0
    %977 = vmatprep.subr.bf16.mxu0 0
    %978 = vmatpush1.bf16.msra.mxu0 0
    %979 = vmatprep.subr.bf16.mxu0 0
    %980 = vmatpush1.bf16.msra.mxu0 0
    %981 = vmatprep.mubr.bf16.mxu0 0
    %982 = vmatmul.mubr.bf16.gmra.mrb[0].mxu0 %v940
    %v983 = vpop.f32.mrb[0].mxu0
    %v984 = vadd.f32 0.0, %v983
    %v985 = vpop.f32.mrb[0].mxu0
    %v986 = vadd.f32 0.0, %v985
    %v987 = vpop.f32.mrb[0].mxu0
    %v988 = vpop.f32.mrb[0].mxu0
    %989 = vdwg.mxu0
    %v992 = vunpack.c.l.b16 %v917
    %v993 = vunpack.c.h.b16 %v917
    %v994 = vunpack.c.l.b16 %v918
    %v995 = vpack.c.b16 %v992, %v992
    %v996 = vpack.c.b16 %v993, %v993
    %v997 = vpack.c.b16 %v994, %v994
    %998 = vrot.lane.b32.xlu0 %v995, 17
    %v999 = vpop.permute.xlu0 %998
    %1000 = vrot.lane.b32.xlu0 %v996, 17
    %v1001 = vpop.permute.xlu0 %1000
    %1002 = vrot.lane.b32.xlu0 %v997, 17
    %v1003 = vpop.permute.xlu0 %1002
    %v1004 = vsel %vm245, %v999, %v1001
    %v1005 = vsel %vm245, %v1001, %v1003
    %v1007 = vsel %vm938, %v919, 0
    %v1010 = vsel %vm942, %v1004, 0
    %v1013 = vsel %vm942, %v1005, 0
    %1015 = vmatprep.subr.bf16.mxu0 %v1013
    %1016 = vmatpush1.bf16.msra.mxu0 %v1010
    %1017 = vmatprep.subr.bf16.mxu0 0
    %1018 = vmatpush1.bf16.msra.mxu0 0
    %1019 = vmatprep.subr.bf16.mxu0 0
    %1020 = vmatpush1.bf16.msra.mxu0 0
    %1021 = vmatprep.subr.bf16.mxu0 0
    %1022 = vmatpush1.bf16.msra.mxu0 0
    %1023 = vmatprep.subr.bf16.mxu0 0
    %1024 = vmatpush1.bf16.msra.mxu0 0
    %1025 = vmatprep.subr.bf16.mxu0 0
    %1026 = vmatpush1.bf16.msra.mxu0 0
    %1027 = vmatprep.subr.bf16.mxu0 0
    %1028 = vmatpush1.bf16.msra.mxu0 0
    %1029 = vmatprep.subr.bf16.mxu0 0
    %1030 = vmatpush1.bf16.msra.mxu0 0
    %1031 = vmatprep.subr.bf16.mxu0 0
    %1032 = vmatpush1.bf16.msra.mxu0 0
    %1033 = vmatprep.subr.bf16.mxu0 0
    %1034 = vmatpush1.bf16.msra.mxu0 0
    %1035 = vmatprep.subr.bf16.mxu0 0
    %1036 = vmatpush1.bf16.msra.mxu0 0
    %1037 = vmatprep.subr.bf16.mxu0 0
    %1038 = vmatpush1.bf16.msra.mxu0 0
    %1039 = vmatprep.subr.bf16.mxu0 0
    %1040 = vmatpush1.bf16.msra.mxu0 0
    %1041 = vmatprep.subr.bf16.mxu0 0
    %1042 = vmatpush1.bf16.msra.mxu0 0
    %1043 = vmatprep.subr.bf16.mxu0 0
    %1044 = vmatpush1.bf16.msra.mxu0 0
    %1045 = vmatprep.subr.bf16.mxu0 0
    %1046 = vmatpush1.bf16.msra.mxu0 0
    %1047 = vmatprep.mubr.bf16.mxu0 0
    %1048 = vmatmul.mubr.bf16.gmra.mrb[0].mxu0 %v1007
    %v1049 = vpop.f32.mrb[0].mxu0
    %v1050 = vadd.f32 %v984, %v1049
    %v1051 = vpop.f32.mrb[0].mxu0
    %v1052 = vadd.f32 %v986, %v1051
    %v1053 = vpop.f32.mrb[0].mxu0
    %v1054 = vpop.f32.mrb[0].mxu0
    %1055 = vdwg.mxu0
    %v1056 = vunpack.c.l.b16 %v65
    %v1057 = vunpack.c.l.b16 %v66
    %v1058 = vpack.c.b16 %v1057, %v1056
    %1059 = vrot.lane.b32.xlu0 %v1058, 113
    %v1060 = vpop.permute.xlu0 %1059
    %v1061 = vrot.slane %v1060, 4
    %v1062 = vsel %vm312, %v1061, %v1060
    %v1065 = vmul.bf16 %v906, %v1062
    %v1066 = vmul.bf16 %v907, %v1061
    %s1067 = scalar_lea.vmem %s5, 8
    %v1068 = vld [vmem:[%s1067] sm:$0xf]
    %v1071 = vunpack.c.l.b16 %v1065
    %v1072 = vunpack.c.h.b16 %v1065
    %v1073 = vunpack.c.l.b16 %v1066
    %v1074 = vpack.c.b16 %v1071, %v1071
    %v1075 = vpack.c.b16 %v1072, %v1072
    %v1076 = vpack.c.b16 %v1073, %v1073
    %1077 = vrot.lane.b32.xlu0 %v1074, 15
    %v1078 = vpop.permute.xlu0 %1077
    %1079 = vrot.lane.b32.xlu0 %v1075, 15
    %v1080 = vpop.permute.xlu0 %1079
    %1081 = vrot.lane.b32.xlu0 %v1076, 15
    %v1082 = vpop.permute.xlu0 %1081
    %v1083 = vsel %vm341, %v1078, %v1080
    %v1084 = vsel %vm341, %v1080, %v1082
    %v1086 = vsel %vm938, %v1068, 0
    %v1089 = vsel %vm942, %v1083, 0
    %v1092 = vsel %vm942, %v1084, 0
    %1094 = vmatprep.subr.bf16.mxu0 %v1092
    %1095 = vmatpush1.bf16.msra.mxu0 %v1089
    %1096 = vmatprep.subr.bf16.mxu0 0
    %1097 = vmatpush1.bf16.msra.mxu0 0
    %1098 = vmatprep.subr.bf16.mxu0 0
    %1099 = vmatpush1.bf16.msra.mxu0 0
    %1100 = vmatprep.subr.bf16.mxu0 0
    %1101 = vmatpush1.bf16.msra.mxu0 0
    %1102 = vmatprep.subr.bf16.mxu0 0
    %1103 = vmatpush1.bf16.msra.mxu0 0
    %1104 = vmatprep.subr.bf16.mxu0 0
    %1105 = vmatpush1.bf16.msra.mxu0 0
    %1106 = vmatprep.subr.bf16.mxu0 0
    %1107 = vmatpush1.bf16.msra.mxu0 0
    %1108 = vmatprep.subr.bf16.mxu0 0
    %1109 = vmatpush1.bf16.msra.mxu0 0
    %1110 = vmatprep.subr.bf16.mxu0 0
    %1111 = vmatpush1.bf16.msra.mxu0 0
    %1112 = vmatprep.subr.bf16.mxu0 0
    %1113 = vmatpush1.bf16.msra.mxu0 0
    %1114 = vmatprep.subr.bf16.mxu0 0
    %1115 = vmatpush1.bf16.msra.mxu0 0
    %1116 = vmatprep.subr.bf16.mxu0 0
    %1117 = vmatpush1.bf16.msra.mxu0 0
    %1118 = vmatprep.subr.bf16.mxu0 0
    %1119 = vmatpush1.bf16.msra.mxu0 0
    %1120 = vmatprep.subr.bf16.mxu0 0
    %1121 = vmatpush1.bf16.msra.mxu0 0
    %1122 = vmatprep.subr.bf16.mxu0 0
    %1123 = vmatpush1.bf16.msra.mxu0 0
    %1124 = vmatprep.subr.bf16.mxu0 0
    %1125 = vmatpush1.bf16.msra.mxu0 0
    %1126 = vmatprep.mubr.bf16.mxu0 0
    %1127 = vmatmul.mubr.bf16.gmra.mrb[0].mxu0 %v1086
    %v1128 = vpop.f32.mrb[0].mxu0
    %v1129 = vadd.f32 0.0, %v1128
    %v1130 = vpop.f32.mrb[0].mxu0
    %v1131 = vadd.f32 0.0, %v1130
    %v1132 = vpop.f32.mrb[0].mxu0
    %v1133 = vpop.f32.mrb[0].mxu0
    %1134 = vdwg.mxu0
    %v1135 = vadd.f32 %v1050, %v1129
    %v1136 = vadd.f32 %v1052, %v1131
    %1137 = vrot.lane.b32.xlu0 %v910, 127
    %v1138 = vpop.permute.xlu0 %1137
    %v1139 = vrot.slane %v1138, 4
    %v1140 = vsel %vm400, %v1139, %v1138
    %v1143 = vmul.bf16 %v906, %v1140
    %v1144 = vmul.bf16 %v907, %v1139
    %s1145 = scalar_lea.vmem %s5, 12
    %v1146 = vld [vmem:[%s1145] sm:$0xf]
    %v1149 = vunpack.c.l.b16 %v1143
    %v1150 = vunpack.c.h.b16 %v1143
    %v1151 = vunpack.c.l.b16 %v1144
    %v1152 = vpack.c.b16 %v1149, %v1149
    %v1153 = vpack.c.b16 %v1150, %v1150
    %v1154 = vpack.c.b16 %v1151, %v1151
    %1155 = vrot.lane.b32.xlu0 %v1152, 1
    %v1156 = vpop.permute.xlu0 %1155
    %1157 = vrot.lane.b32.xlu0 %v1153, 1
    %v1158 = vpop.permute.xlu0 %1157
    %1159 = vrot.lane.b32.xlu0 %v1154, 1
    %v1160 = vpop.permute.xlu0 %1159
    %v1161 = vsel %vm429, %v1156, %v1158
    %v1162 = vsel %vm429, %v1158, %v1160
    %v1164 = vsel %vm938, %v1146, 0
    %v1167 = vsel %vm942, %v1161, 0
    %v1170 = vsel %vm942, %v1162, 0
    %1172 = vmatprep.subr.bf16.mxu0 %v1170
    %1173 = vmatpush1.bf16.msra.mxu0 %v1167
    %1174 = vmatprep.subr.bf16.mxu0 0
    %1175 = vmatpush1.bf16.msra.mxu0 0
    %1176 = vmatprep.subr.bf16.mxu0 0
    %1177 = vmatpush1.bf16.msra.mxu0 0
    %1178 = vmatprep.subr.bf16.mxu0 0
    %1179 = vmatpush1.bf16.msra.mxu0 0
    %1180 = vmatprep.subr.bf16.mxu0 0
    %1181 = vmatpush1.bf16.msra.mxu0 0
    %1182 = vmatprep.subr.bf16.mxu0 0
    %1183 = vmatpush1.bf16.msra.mxu0 0
    %1184 = vmatprep.subr.bf16.mxu0 0
    %1185 = vmatpush1.bf16.msra.mxu0 0
    %1186 = vmatprep.subr.bf16.mxu0 0
    %1187 = vmatpush1.bf16.msra.mxu0 0
    %1188 = vmatprep.subr.bf16.mxu0 0
    %1189 = vmatpush1.bf16.msra.mxu0 0
    %1190 = vmatprep.subr.bf16.mxu0 0
    %1191 = vmatpush1.bf16.msra.mxu0 0
    %1192 = vmatprep.subr.bf16.mxu0 0
    %1193 = vmatpush1.bf16.msra.mxu0 0
    %1194 = vmatprep.subr.bf16.mxu0 0
    %1195 = vmatpush1.bf16.msra.mxu0 0
    %1196 = vmatprep.subr.bf16.mxu0 0
    %1197 = vmatpush1.bf16.msra.mxu0 0
    %1198 = vmatprep.subr.bf16.mxu0 0
    %1199 = vmatpush1.bf16.msra.mxu0 0
    %1200 = vmatprep.subr.bf16.mxu0 0
    %1201 = vmatpush1.bf16.msra.mxu0 0
    %1202 = vmatprep.subr.bf16.mxu0 0
    %1203 = vmatpush1.bf16.msra.mxu0 0
    %1204 = vmatprep.mubr.bf16.mxu0 0
    %1205 = vmatmul.mubr.bf16.gmra.mrb[0].mxu0 %v1164
    %v1206 = vpop.f32.mrb[0].mxu0
    %v1207 = vadd.f32 0.0, %v1206
    %v1208 = vpop.f32.mrb[0].mxu0
    %v1209 = vadd.f32 0.0, %v1208
    %v1210 = vpop.f32.mrb[0].mxu0
    %v1211 = vpop.f32.mrb[0].mxu0
    %1212 = vdwg.mxu0
    %v1213 = vadd.f32 %v1135, %v1207
    %v1214 = vadd.f32 %v1136, %v1209
    %v1215 = vld [vmem:[#allocation3 + $0x4] sm:$0xff]
    %s1216 = scalar_lea.vmem %s5, 16
    %v1217 = vld [vmem:[%s1216] sm:$0xf]
    %v1219 = vunpack.c.l.b16 %v1215
    %v1220 = vunpack.c.h.b16 %v1215
    %v1221 = vpack.c.b16 %v1219, %v1219
    %v1222 = vpack.c.b16 %v1220, %v1220
    %v1224 = vsel %vm938, %v1217, 0
    %v1227 = vsel %vm942, %v1221, 0
    %v1230 = vsel %vm942, %v1222, 0
    %1232 = vmatprep.subr.bf16.mxu0 %v1230
    %1233 = vmatpush1.bf16.msra.mxu0 %v1227
    %1234 = vmatprep.subr.bf16.mxu0 0
    %1235 = vmatpush1.bf16.msra.mxu0 0
    %1236 = vmatprep.subr.bf16.mxu0 0
    %1237 = vmatpush1.bf16.msra.mxu0 0
    %1238 = vmatprep.subr.bf16.mxu0 0
    %1239 = vmatpush1.bf16.msra.mxu0 0
    %1240 = vmatprep.subr.bf16.mxu0 0
    %1241 = vmatpush1.bf16.msra.mxu0 0
    %1242 = vmatprep.subr.bf16.mxu0 0
    %1243 = vmatpush1.bf16.msra.mxu0 0
    %1244 = vmatprep.subr.bf16.mxu0 0
    %1245 = vmatpush1.bf16.msra.mxu0 0
    %1246 = vmatprep.subr.bf16.mxu0 0
    %1247 = vmatpush1.bf16.msra.mxu0 0
    %1248 = vmatprep.subr.bf16.mxu0 0
    %1249 = vmatpush1.bf16.msra.mxu0 0
    %1250 = vmatprep.subr.bf16.mxu0 0
    %1251 = vmatpush1.bf16.msra.mxu0 0
    %1252 = vmatprep.subr.bf16.mxu0 0
    %1253 = vmatpush1.bf16.msra.mxu0 0
    %1254 = vmatprep.subr.bf16.mxu0 0
    %1255 = vmatpush1.bf16.msra.mxu0 0
    %1256 = vmatprep.subr.bf16.mxu0 0
    %1257 = vmatpush1.bf16.msra.mxu0 0
    %1258 = vmatprep.subr.bf16.mxu0 0
    %1259 = vmatpush1.bf16.msra.mxu0 0
    %1260 = vmatprep.subr.bf16.mxu0 0
    %1261 = vmatpush1.bf16.msra.mxu0 0
    %1262 = vmatprep.subr.bf16.mxu0 0
    %1263 = vmatpush1.bf16.msra.mxu0 0
    %1264 = vmatprep.mubr.bf16.mxu0 0
    %1265 = vmatmul.mubr.bf16.gmra.mrb[0].mxu0 %v1224
    %v1266 = vpop.f32.mrb[0].mxu0
    %v1267 = vadd.f32 0.0, %v1266
    %v1268 = vpop.f32.mrb[0].mxu0
    %v1269 = vadd.f32 0.0, %v1268
    %v1270 = vpop.f32.mrb[0].mxu0
    %v1271 = vpop.f32.mrb[0].mxu0
    %1272 = vdwg.mxu0
    %v1273 = vadd.f32 %v1213, %v1267
    %v1274 = vadd.f32 %v1214, %v1269
    %v1275 = vld [vmem:[#allocation3 + $0x4] sm:$0xff]
    %v1276 = vld [vmem:[#allocation3 + $0xc] sm:$0xf]
    %1277 = vrot.lane.b32.xlu0 %v1058, 1
    %v1278 = vpop.permute.xlu0 %1277
    %v1279 = vrot.slane %v1278, 4
    %v1280 = vsel %vm429, %v1279, %v1278
    %v1283 = vmul.bf16 %v1275, %v1280
    %v1284 = vmul.bf16 %v1276, %v1279
    %s1285 = scalar_lea.vmem %s5, 20
    %v1286 = vld [vmem:[%s1285] sm:$0xf]
    %v1289 = vunpack.c.l.b16 %v1283
    %v1290 = vunpack.c.h.b16 %v1283
    %v1291 = vunpack.c.l.b16 %v1284
    %v1292 = vpack.c.b16 %v1289, %v1289
    %v1293 = vpack.c.b16 %v1290, %v1290
    %v1294 = vpack.c.b16 %v1291, %v1291
    %1295 = vrot.lane.b32.xlu0 %v1292, 127
    %v1296 = vpop.permute.xlu0 %1295
    %1297 = vrot.lane.b32.xlu0 %v1293, 127
    %v1298 = vpop.permute.xlu0 %1297
    %1299 = vrot.lane.b32.xlu0 %v1294, 127
    %v1300 = vpop.permute.xlu0 %1299
    %v1301 = vsel %vm400, %v1296, %v1298
    %v1302 = vsel %vm400, %v1298, %v1300
    %v1304 = vsel %vm938, %v1286, 0
    %v1307 = vsel %vm942, %v1301, 0
    %v1310 = vsel %vm942, %v1302, 0
    %1312 = vmatprep.subr.bf16.mxu0 %v1310
    %1313 = vmatpush1.bf16.msra.mxu0 %v1307
    %1314 = vmatprep.subr.bf16.mxu0 0
    %1315 = vmatpush1.bf16.msra.mxu0 0
    %1316 = vmatprep.subr.bf16.mxu0 0
    %1317 = vmatpush1.bf16.msra.mxu0 0
    %1318 = vmatprep.subr.bf16.mxu0 0
    %1319 = vmatpush1.bf16.msra.mxu0 0
    %1320 = vmatprep.subr.bf16.mxu0 0
    %1321 = vmatpush1.bf16.msra.mxu0 0
    %1322 = vmatprep.subr.bf16.mxu0 0
    %1323 = vmatpush1.bf16.msra.mxu0 0
    %1324 = vmatprep.subr.bf16.mxu0 0
    %1325 = vmatpush1.bf16.msra.mxu0 0
    %1326 = vmatprep.subr.bf16.mxu0 0
    %1327 = vmatpush1.bf16.msra.mxu0 0
    %1328 = vmatprep.subr.bf16.mxu0 0
    %1329 = vmatpush1.bf16.msra.mxu0 0
    %1330 = vmatprep.subr.bf16.mxu0 0
    %1331 = vmatpush1.bf16.msra.mxu0 0
    %1332 = vmatprep.subr.bf16.mxu0 0
    %1333 = vmatpush1.bf16.msra.mxu0 0
    %1334 = vmatprep.subr.bf16.mxu0 0
    %1335 = vmatpush1.bf16.msra.mxu0 0
    %1336 = vmatprep.subr.bf16.mxu0 0
    %1337 = vmatpush1.bf16.msra.mxu0 0
    %1338 = vmatprep.subr.bf16.mxu0 0
    %1339 = vmatpush1.bf16.msra.mxu0 0
    %1340 = vmatprep.subr.bf16.mxu0 0
    %1341 = vmatpush1.bf16.msra.mxu0 0
    %1342 = vmatprep.subr.bf16.mxu0 0
    %1343 = vmatpush1.bf16.msra.mxu0 0
    %1344 = vmatprep.mubr.bf16.mxu0 0
    %1345 = vmatmul.mubr.bf16.gmra.mrb[0].mxu0 %v1304
    %v1346 = vpop.f32.mrb[0].mxu0
    %v1347 = vadd.f32 0.0, %v1346
    %v1348 = vpop.f32.mrb[0].mxu0
    %v1349 = vadd.f32 0.0, %v1348
    %v1350 = vpop.f32.mrb[0].mxu0
    %v1351 = vpop.f32.mrb[0].mxu0
    %1352 = vdwg.mxu0
    %v1353 = vadd.f32 %v1273, %v1347
    %v1354 = vadd.f32 %v1274, %v1349
    %1355 = vrot.lane.b32.xlu0 %v910, 15
    %v1356 = vpop.permute.xlu0 %1355
    %v1357 = vrot.slane %v1356, 4
    %v1358 = vsel %vm341, %v1357, %v1356
    %v1361 = vmul.bf16 %v1275, %v1358
    %v1362 = vmul.bf16 %v1276, %v1357
    %s1363 = scalar_lea.vmem %s5, 24
    %v1364 = vld [vmem:[%s1363] sm:$0xf]
    %v1367 = vunpack.c.l.b16 %v1361
    %v1368 = vunpack.c.h.b16 %v1361
    %v1369 = vunpack.c.l.b16 %v1362
    %v1370 = vpack.c.b16 %v1367, %v1367
    %v1371 = vpack.c.b16 %v1368, %v1368
    %v1372 = vpack.c.b16 %v1369, %v1369
    %1373 = vrot.lane.b32.xlu0 %v1370, 113
    %v1374 = vpop.permute.xlu0 %1373
    %1375 = vrot.lane.b32.xlu0 %v1371, 113
    %v1376 = vpop.permute.xlu0 %1375
    %1377 = vrot.lane.b32.xlu0 %v1372, 113
    %v1378 = vpop.permute.xlu0 %1377
    %v1379 = vsel %vm312, %v1374, %v1376
    %v1380 = vsel %vm312, %v1376, %v1378
    %v1382 = vsel %vm938, %v1364, 0
    %v1385 = vsel %vm942, %v1379, 0
    %v1388 = vsel %vm942, %v1380, 0
    %1390 = vmatprep.subr.bf16.mxu0 %v1388
    %1391 = vmatpush1.bf16.msra.mxu0 %v1385
    %1392 = vmatprep.subr.bf16.mxu0 0
    %1393 = vmatpush1.bf16.msra.mxu0 0
    %1394 = vmatprep.subr.bf16.mxu0 0
    %1395 = vmatpush1.bf16.msra.mxu0 0
    %1396 = vmatprep.subr.bf16.mxu0 0
    %1397 = vmatpush1.bf16.msra.mxu0 0
    %1398 = vmatprep.subr.bf16.mxu0 0
    %1399 = vmatpush1.bf16.msra.mxu0 0
    %1400 = vmatprep.subr.bf16.mxu0 0
    %1401 = vmatpush1.bf16.msra.mxu0 0
    %1402 = vmatprep.subr.bf16.mxu0 0
    %1403 = vmatpush1.bf16.msra.mxu0 0
    %1404 = vmatprep.subr.bf16.mxu0 0
    %1405 = vmatpush1.bf16.msra.mxu0 0
    %1406 = vmatprep.subr.bf16.mxu0 0
    %1407 = vmatpush1.bf16.msra.mxu0 0
    %1408 = vmatprep.subr.bf16.mxu0 0
    %1409 = vmatpush1.bf16.msra.mxu0 0
    %1410 = vmatprep.subr.bf16.mxu0 0
    %1411 = vmatpush1.bf16.msra.mxu0 0
    %1412 = vmatprep.subr.bf16.mxu0 0
    %1413 = vmatpush1.bf16.msra.mxu0 0
    %1414 = vmatprep.subr.bf16.mxu0 0
    %1415 = vmatpush1.bf16.msra.mxu0 0
    %1416 = vmatprep.subr.bf16.mxu0 0
    %1417 = vmatpush1.bf16.msra.mxu0 0
    %1418 = vmatprep.subr.bf16.mxu0 0
    %1419 = vmatpush1.bf16.msra.mxu0 0
    %1420 = vmatprep.subr.bf16.mxu0 0
    %1421 = vmatpush1.bf16.msra.mxu0 0
    %1422 = vmatprep.mubr.bf16.mxu0 0
    %1423 = vmatmul.mubr.bf16.gmra.mrb[0].mxu0 %v1382
    %v1424 = vpop.f32.mrb[0].mxu0
    %v1425 = vadd.f32 0.0, %v1424
    %v1426 = vpop.f32.mrb[0].mxu0
    %v1427 = vadd.f32 0.0, %v1426
    %v1428 = vpop.f32.mrb[0].mxu0
    %v1429 = vpop.f32.mrb[0].mxu0
    %1430 = vdwg.mxu0
    %v1431 = vadd.f32 %v1353, %v1425
    %v1432 = vadd.f32 %v1354, %v1427
    %s1433 = scalar_lea.vmem %s5, 28
    %v1434 = vld [vmem:[%s1433] sm:$0xf]
    %v1437 = vunpack.c.l.b16 %v1275
    %v1438 = vunpack.c.h.b16 %v1275
    %v1439 = vunpack.c.l.b16 %v1276
    %v1440 = vpack.c.b16 %v1437, %v1437
    %v1441 = vpack.c.b16 %v1438, %v1438
    %v1442 = vpack.c.b16 %v1439, %v1439
    %1443 = vrot.lane.b32.xlu0 %v1440, 112
    %v1444 = vpop.permute.xlu0 %1443
    %1445 = vrot.lane.b32.xlu0 %v1441, 112
    %v1446 = vpop.permute.xlu0 %1445
    %1447 = vrot.lane.b32.xlu0 %v1442, 112
    %v1448 = vpop.permute.xlu0 %1447
    %v1449 = vsel %vm746, %v1444, %v1446
    %v1450 = vsel %vm746, %v1446, %v1448
    %v1452 = vsel %vm938, %v1434, 0
    %v1455 = vsel %vm942, %v1449, 0
    %v1458 = vsel %vm942, %v1450, 0
    %1460 = vmatprep.subr.bf16.mxu0 %v1458
    %1461 = vmatpush1.bf16.msra.mxu0 %v1455
    %1462 = vmatprep.subr.bf16.mxu0 0
    %1463 = vmatpush1.bf16.msra.mxu0 0
    %1464 = vmatprep.subr.bf16.mxu0 0
    %1465 = vmatpush1.bf16.msra.mxu0 0
    %1466 = vmatprep.subr.bf16.mxu0 0
    %1467 = vmatpush1.bf16.msra.mxu0 0
    %1468 = vmatprep.subr.bf16.mxu0 0
    %1469 = vmatpush1.bf16.msra.mxu0 0
    %1470 = vmatprep.subr.bf16.mxu0 0
    %1471 = vmatpush1.bf16.msra.mxu0 0
    %1472 = vmatprep.subr.bf16.mxu0 0
    %1473 = vmatpush1.bf16.msra.mxu0 0
    %1474 = vmatprep.subr.bf16.mxu0 0
    %1475 = vmatpush1.bf16.msra.mxu0 0
    %1476 = vmatprep.subr.bf16.mxu0 0
    %1477 = vmatpush1.bf16.msra.mxu0 0
    %1478 = vmatprep.subr.bf16.mxu0 0
    %1479 = vmatpush1.bf16.msra.mxu0 0
    %1480 = vmatprep.subr.bf16.mxu0 0
    %1481 = vmatpush1.bf16.msra.mxu0 0
    %1482 = vmatprep.subr.bf16.mxu0 0
    %1483 = vmatpush1.bf16.msra.mxu0 0
    %1484 = vmatprep.subr.bf16.mxu0 0
    %1485 = vmatpush1.bf16.msra.mxu0 0
    %1486 = vmatprep.subr.bf16.mxu0 0
    %1487 = vmatpush1.bf16.msra.mxu0 0
    %1488 = vmatprep.subr.bf16.mxu0 0
    %1489 = vmatpush1.bf16.msra.mxu0 0
    %1490 = vmatprep.subr.bf16.mxu0 0
    %1491 = vmatpush1.bf16.msra.mxu0 0
    %1492 = vmatprep.mubr.bf16.mxu0 0
    %1493 = vmatmul.mubr.bf16.gmra.mrb[0].mxu0 %v1452
    %v1494 = vpop.f32.mrb[0].mxu0
    %v1495 = vadd.f32 0.0, %v1494
    %v1496 = vpop.f32.mrb[0].mxu0
    %v1497 = vadd.f32 0.0, %v1496
    %v1498 = vpop.f32.mrb[0].mxu0
    %v1499 = vpop.f32.mrb[0].mxu0
    %1500 = vdwg.mxu0
    %v1501 = vadd.f32 %v1431, %v1495
    %v1502 = vadd.f32 %v1432, %v1497
    %1503 = vrot.lane.b32.xlu0 %v1058, 17
    %v1504 = vpop.permute.xlu0 %1503
    %v1505 = vrot.slane %v1504, 4
    %v1506 = vsel %vm245, %v1505, %v1504
    %v1509 = vmul.bf16 %v1275, %v1506
    %v1510 = vmul.bf16 %v1276, %v1505
    %s1511 = scalar_lea.vmem %s5, 32
    %v1512 = vld [vmem:[%s1511] sm:$0xf]
    %v1515 = vunpack.c.l.b16 %v1509
    %v1516 = vunpack.c.h.b16 %v1509
    %v1517 = vunpack.c.l.b16 %v1510
    %v1518 = vpack.c.b16 %v1515, %v1515
    %v1519 = vpack.c.b16 %v1516, %v1516
    %v1520 = vpack.c.b16 %v1517, %v1517
    %1521 = vrot.lane.b32.xlu0 %v1518, 111
    %v1522 = vpop.permute.xlu0 %1521
    %1523 = vrot.lane.b32.xlu0 %v1519, 111
    %v1524 = vpop.permute.xlu0 %1523
    %1525 = vrot.lane.b32.xlu0 %v1520, 111
    %v1526 = vpop.permute.xlu0 %1525
    %v1527 = vsel %vm137, %v1522, %v1524
    %v1528 = vsel %vm137, %v1524, %v1526
    %v1530 = vsel %vm938, %v1512, 0
    %v1533 = vsel %vm942, %v1527, 0
    %v1536 = vsel %vm942, %v1528, 0
    %1538 = vmatprep.subr.bf16.mxu0 %v1536
    %1539 = vmatpush1.bf16.msra.mxu0 %v1533
    %1540 = vmatprep.subr.bf16.mxu0 0
    %1541 = vmatpush1.bf16.msra.mxu0 0
    %1542 = vmatprep.subr.bf16.mxu0 0
    %1543 = vmatpush1.bf16.msra.mxu0 0
    %1544 = vmatprep.subr.bf16.mxu0 0
    %1545 = vmatpush1.bf16.msra.mxu0 0
    %1546 = vmatprep.subr.bf16.mxu0 0
    %1547 = vmatpush1.bf16.msra.mxu0 0
    %1548 = vmatprep.subr.bf16.mxu0 0
    %1549 = vmatpush1.bf16.msra.mxu0 0
    %1550 = vmatprep.subr.bf16.mxu0 0
    %1551 = vmatpush1.bf16.msra.mxu0 0
    %1552 = vmatprep.subr.bf16.mxu0 0
    %1553 = vmatpush1.bf16.msra.mxu0 0
    %1554 = vmatprep.subr.bf16.mxu0 0
    %1555 = vmatpush1.bf16.msra.mxu0 0
    %1556 = vmatprep.subr.bf16.mxu0 0
    %1557 = vmatpush1.bf16.msra.mxu0 0
    %1558 = vmatprep.subr.bf16.mxu0 0
    %1559 = vmatpush1.bf16.msra.mxu0 0
    %1560 = vmatprep.subr.bf16.mxu0 0
    %1561 = vmatpush1.bf16.msra.mxu0 0
    %1562 = vmatprep.subr.bf16.mxu0 0
    %1563 = vmatpush1.bf16.msra.mxu0 0
    %1564 = vmatprep.subr.bf16.mxu0 0
    %1565 = vmatpush1.bf16.msra.mxu0 0
    %1566 = vmatprep.subr.bf16.mxu0 0
    %1567 = vmatpush1.bf16.msra.mxu0 0
    %1568 = vmatprep.subr.bf16.mxu0 0
    %1569 = vmatpush1.bf16.msra.mxu0 0
    %1570 = vmatprep.mubr.bf16.mxu0 0
    %1571 = vmatmul.mubr.bf16.gmra.mrb[0].mxu0 %v1530
    %v1572 = vpop.f32.mrb[0].mxu0
    %v1573 = vadd.f32 0.0, %v1572
    %v1574 = vpop.f32.mrb[0].mxu0
    %v1575 = vadd.f32 0.0, %v1574
    %v1576 = vpop.f32.mrb[0].mxu0
    %v1577 = vpop.f32.mrb[0].mxu0
    %1578 = vdwg.mxu0
    %v1579 = vadd.f32 %v1501, %v1573
    %v1580 = vadd.f32 %v1502, %v1575
    %v1581 = vld [vmem:[%s6] sm:$0xff]
    %1583 = vset.pattern.permute.xlu0 0
    %1584 = vperm.xlu0 %1583, %v1581
    %v1585 = vpop.permute.xlu0 %1584
    %v1587 = vadd.f32 %v1579, %v1585
    %v1588 = vadd.f32 %v1580, %v1585
    %v1589 = vld [vmem:[%s1] sm:$0xff]
    %v1590 = vld [vmem:[%s1 + $0x8] sm:$0xff]
    %v1591 = vsub.f32 %v1587, %v1589
    %v1592 = vsub.f32 %v1588, %v1590
    %v1593 = vmul.f32 %v1591, %v1591
    %v1594 = vmul.f32 %v1592, %v1592
    %v1595 = vrot.slane %v1593, 4
    %v1596 = vadd.f32 %v1593, %v1595
    %v1597 = vrot.slane %v1596, 2
    %v1598 = vadd.f32 %v1596, %v1597
    %v1599 = vrot.slane %v1598, 1
    %v1600 = vadd.f32 %v1598, %v1599
    %v1601 = vrot.slane %v1594, 4
    %v1602 = vadd.f32 %v1594, %v1601
    %v1603 = vrot.slane %v1602, 2
    %v1604 = vadd.f32 %v1602, %v1603
    %v1605 = vrot.slane %v1604, 1
    %v1606 = vadd.f32 %v1604, %v1605
    %v1609 = vcombine.low %v1600, %v1606
    %v1611 = vunpack.c.l.s4 1966171168
    %v1612 = vunpack.c.0.s8 %v1611
    %v1613 = vlaneseq
    %v1614 = vshrl.u32 %v1613, 7
    %v1615 = vsub.s32 %v1612, %v1614
    %v1616 = vrot.slane %v1609, %v1615
    %v1618 = vunpack.c.l.s4 1966171168
    %v1619 = vunpack.c.0.s8 %v1618
    %v1620 = vlaneseq
    %v1621 = vshrl.u32 %v1620, 7
    %v1622 = vsub.s32 %v1619, %v1621
    %v1623 = vrot.slane %v1616, %v1622
    %v1625 = vlaneseq
    %vm1626 = vcmp.ge.s32.totalorder %v1625, 0
    %vm1627 = vcmp.lt.s32.totalorder %v1625, 256
    %vm1628 = vmand %vm1626, %vm1627
    %1629 = vst.msk [vmem:[#allocation4] sm:$0x3] %vm1628, %v1623
    %s1630 = scalar_lea.vmem %s0, 4
    %v1631 = vld [vmem:[%s1630] sm:$0xf]
    %s1632 = scalar_lea.vmem %s2, 2
    %v1633 = vld [vmem:[%s1632] sm:$0x3]
    %v1636 = vunpack.c.l.s4 1966171168
    %v1637 = vunpack.c.0.s8 %v1636
    %v1638 = vlaneseq
    %v1639 = vshrl.u32 %v1638, 7
    %v1640 = vsub.s32 %v1637, %v1639
    %v1641 = vrot.slane %v1633, %v1640
    %v1642 = vcombine.high %v1641, %v1641
    %v1644 = vunpack.c.l.s4 1966171168
    %v1645 = vunpack.c.0.s8 %v1644
    %v1646 = vlaneseq
    %v1647 = vshrl.u32 %v1646, 7
    %v1648 = vsub.s32 %v1645, %v1647
    %v1649 = vrot.slane %v1641, %v1648
    %v1651 = vunpack.c.l.s4 1966171168
    %v1652 = vunpack.c.0.s8 %v1651
    %v1653 = vlaneseq
    %v1654 = vshrl.u32 %v1653, 7
    %v1655 = vsub.s32 %v1652, %v1654
    %v1656 = vrot.slane %v1642, %v1655
    %v1658 = vpack.i.b16 %v1649, %v1649
    %v1660 = vlaneseq
    %v1661 = vshrl.u32 %v1660, 7
    %v1662 = vsub.s32 0, %v1661
    %v1663 = vrot.slane %v1658, %v1662
    %v1665 = vpack.i.b16 %v1656, %v1656
    %v1667 = vlaneseq
    %v1668 = vshrl.u32 %v1667, 7
    %v1669 = vsub.s32 0, %v1668
    %v1670 = vrot.slane %v1665, %v1669
    %v1673 = vcombine.low %v1663, %v1670
    %v1675 = vunpack.c.l.s4 1983009808
    %v1676 = vunpack.c.0.s8 %v1675
    %v1677 = vlaneseq
    %v1678 = vshrl.u32 %v1677, 7
    %v1679 = vsub.s32 %v1676, %v1678
    %v1680 = vrot.slane %v1673, %v1679
    %v1682 = vmul.bf16 %v1631, %v1680
    %1683 = vst [vmem:[#allocation2 + $0x2] sm:$0xf] %v1682
    %v1684 = vld [vmem:[#allocation2] sm:$0x3f]
    %v1685 = vmul.bf16 %v1684, %v138
    %v1686 = vld [vmem:[%s3] sm:$0xf]
    %v1687 = vld [vmem:[%s142] sm:$0xf]
    %v1689 = vcombine.high %v1684, %v1684
    %v1691 = vunpack.c.l.s4 1983009808
    %v1692 = vunpack.c.0.s8 %v1691
    %v1693 = vlaneseq
    %v1694 = vshrl.u32 %v1693, 7
    %v1695 = vsub.s32 %v1692, %v1694
    %v1696 = vrot.slane %v1684, %v1695
    %v1698 = vunpack.c.l.s4 1983009808
    %v1699 = vunpack.c.0.s8 %v1698
    %v1700 = vlaneseq
    %v1701 = vshrl.u32 %v1700, 7
    %v1702 = vsub.s32 %v1699, %v1701
    %v1703 = vrot.slane %v1689, %v1702
    %v1704 = vcombine.high %v1696, %v1696
    %1705 = vrot.lane.b32.xlu0 %v1696, 16
    %v1706 = vpop.permute.xlu0 %1705
    %1707 = vrot.lane.b32.xlu0 %v1704, 16
    %v1708 = vpop.permute.xlu0 %1707
    %1709 = vrot.lane.b32.xlu0 %v1703, 16
    %v1710 = vpop.permute.xlu0 %1709
    %v1711 = vsel %vm167, %v1706, %v1708
    %v1712 = vsel %vm167, %v1708, %v1710
    %v1714 = vsel %vm170, %v1687, 0
    %v1717 = vsel %vm174, %v1711, 0
    %v1720 = vsel %vm174, %v1712, 0
    %1722 = vmatprep.subr.bf16.mxu0 %v1720
    %1723 = vmatpush1.bf16.msra.mxu0 %v1717
    %1724 = vmatprep.subr.bf16.mxu0 0
    %1725 = vmatpush1.bf16.msra.mxu0 0
    %1726 = vmatprep.subr.bf16.mxu0 0
    %1727 = vmatpush1.bf16.msra.mxu0 0
    %1728 = vmatprep.subr.bf16.mxu0 0
    %1729 = vmatpush1.bf16.msra.mxu0 0
    %1730 = vmatprep.subr.bf16.mxu0 0
    %1731 = vmatpush1.bf16.msra.mxu0 0
    %1732 = vmatprep.subr.bf16.mxu0 0
    %1733 = vmatpush1.bf16.msra.mxu0 0
    %1734 = vmatprep.subr.bf16.mxu0 0
    %1735 = vmatpush1.bf16.msra.mxu0 0
    %1736 = vmatprep.subr.bf16.mxu0 0
    %1737 = vmatpush1.bf16.msra.mxu0 0
    %1738 = vmatprep.subr.bf16.mxu0 0
    %1739 = vmatpush1.bf16.msra.mxu0 0
    %1740 = vmatprep.subr.bf16.mxu0 0
    %1741 = vmatpush1.bf16.msra.mxu0 0
    %1742 = vmatprep.subr.bf16.mxu0 0
    %1743 = vmatpush1.bf16.msra.mxu0 0
    %1744 = vmatprep.subr.bf16.mxu0 0
    %1745 = vmatpush1.bf16.msra.mxu0 0
    %1746 = vmatprep.subr.bf16.mxu0 0
    %1747 = vmatpush1.bf16.msra.mxu0 0
    %1748 = vmatprep.subr.bf16.mxu0 0
    %1749 = vmatpush1.bf16.msra.mxu0 0
    %1750 = vmatprep.subr.bf16.mxu0 0
    %1751 = vmatpush1.bf16.msra.mxu0 0
    %1752 = vmatprep.subr.bf16.mxu0 0
    %1753 = vmatpush1.bf16.msra.mxu0 0
    %1754 = vmatprep.mubr.bf16.mxu0 0
    %1755 = vmatmul.mubr.bf16.gmra.mrb[0].mxu0 %v1714
    %v1756 = vpop.f32.mrb[0].mxu0
    %v1757 = vadd.f32 0.0, %v1756
    %v1758 = vpop.f32.mrb[0].mxu0
    %v1759 = vadd.f32 0.0, %v1758
    %v1760 = vpop.f32.mrb[0].mxu0
    %v1761 = vpop.f32.mrb[0].mxu0
    %1762 = vdwg.mxu0
    %v1764 = vcombine.high %v1685, %v1685
    %v1766 = vunpack.c.l.s4 1983009808
    %v1767 = vunpack.c.0.s8 %v1766
    %v1768 = vlaneseq
    %v1769 = vshrl.u32 %v1768, 7
    %v1770 = vsub.s32 %v1767, %v1769
    %v1771 = vrot.slane %v1685, %v1770
    %v1773 = vunpack.c.l.s4 1983009808
    %v1774 = vunpack.c.0.s8 %v1773
    %v1775 = vlaneseq
    %v1776 = vshrl.u32 %v1775, 7
    %v1777 = vsub.s32 %v1774, %v1776
    %v1778 = vrot.slane %v1764, %v1777
    %v1779 = vcombine.high %v1771, %v1771
    %1780 = vrot.lane.b32.xlu0 %v1771, 17
    %v1781 = vpop.permute.xlu0 %1780
    %1782 = vrot.lane.b32.xlu0 %v1779, 17
    %v1783 = vpop.permute.xlu0 %1782
    %1784 = vrot.lane.b32.xlu0 %v1778, 17
    %v1785 = vpop.permute.xlu0 %1784
    %v1786 = vsel %vm245, %v1781, %v1783
    %v1787 = vsel %vm245, %v1783, %v1785
    %v1789 = vsel %vm170, %v1686, 0
    %v1792 = vsel %vm174, %v1786, 0
    %v1795 = vsel %vm174, %v1787, 0
    %1797 = vmatprep.subr.bf16.mxu0 %v1795
    %1798 = vmatpush1.bf16.msra.mxu0 %v1792
    %1799 = vmatprep.subr.bf16.mxu0 0
    %1800 = vmatpush1.bf16.msra.mxu0 0
    %1801 = vmatprep.subr.bf16.mxu0 0
    %1802 = vmatpush1.bf16.msra.mxu0 0
    %1803 = vmatprep.subr.bf16.mxu0 0
    %1804 = vmatpush1.bf16.msra.mxu0 0
    %1805 = vmatprep.subr.bf16.mxu0 0
    %1806 = vmatpush1.bf16.msra.mxu0 0
    %1807 = vmatprep.subr.bf16.mxu0 0
    %1808 = vmatpush1.bf16.msra.mxu0 0
    %1809 = vmatprep.subr.bf16.mxu0 0
    %1810 = vmatpush1.bf16.msra.mxu0 0
    %1811 = vmatprep.subr.bf16.mxu0 0
    %1812 = vmatpush1.bf16.msra.mxu0 0
    %1813 = vmatprep.subr.bf16.mxu0 0
    %1814 = vmatpush1.bf16.msra.mxu0 0
    %1815 = vmatprep.subr.bf16.mxu0 0
    %1816 = vmatpush1.bf16.msra.mxu0 0
    %1817 = vmatprep.subr.bf16.mxu0 0
    %1818 = vmatpush1.bf16.msra.mxu0 0
    %1819 = vmatprep.subr.bf16.mxu0 0
    %1820 = vmatpush1.bf16.msra.mxu0 0
    %1821 = vmatprep.subr.bf16.mxu0 0
    %1822 = vmatpush1.bf16.msra.mxu0 0
    %1823 = vmatprep.subr.bf16.mxu0 0
    %1824 = vmatpush1.bf16.msra.mxu0 0
    %1825 = vmatprep.subr.bf16.mxu0 0
    %1826 = vmatpush1.bf16.msra.mxu0 0
    %1827 = vmatprep.subr.bf16.mxu0 0
    %1828 = vmatpush1.bf16.msra.mxu0 0
    %1829 = vmatprep.mubr.bf16.mxu0 0
    %1830 = vmatmul.mubr.bf16.gmra.mrb[0].mxu0 %v1789
    %v1831 = vpop.f32.mrb[0].mxu0
    %v1832 = vadd.f32 %v1757, %v1831
    %v1833 = vpop.f32.mrb[0].mxu0
    %v1834 = vadd.f32 %v1759, %v1833
    %v1835 = vpop.f32.mrb[0].mxu0
    %v1836 = vpop.f32.mrb[0].mxu0
    %1837 = vdwg.mxu0
    %v1838 = vld [vmem:[#allocation2] sm:$0x3f]
    %v1839 = vmul.bf16 %v1838, %v313
    %v1840 = vld [vmem:[%s316] sm:$0xf]
    %v1842 = vcombine.high %v1839, %v1839
    %v1844 = vunpack.c.l.s4 1983009808
    %v1845 = vunpack.c.0.s8 %v1844
    %v1846 = vlaneseq
    %v1847 = vshrl.u32 %v1846, 7
    %v1848 = vsub.s32 %v1845, %v1847
    %v1849 = vrot.slane %v1839, %v1848
    %v1851 = vunpack.c.l.s4 1983009808
    %v1852 = vunpack.c.0.s8 %v1851
    %v1853 = vlaneseq
    %v1854 = vshrl.u32 %v1853, 7
    %v1855 = vsub.s32 %v1852, %v1854
    %v1856 = vrot.slane %v1842, %v1855
    %v1857 = vcombine.high %v1849, %v1849
    %1858 = vrot.lane.b32.xlu0 %v1849, 15
    %v1859 = vpop.permute.xlu0 %1858
    %1860 = vrot.lane.b32.xlu0 %v1857, 15
    %v1861 = vpop.permute.xlu0 %1860
    %1862 = vrot.lane.b32.xlu0 %v1856, 15
    %v1863 = vpop.permute.xlu0 %1862
    %v1864 = vsel %vm341, %v1859, %v1861
    %v1865 = vsel %vm341, %v1861, %v1863
    %v1867 = vsel %vm170, %v1840, 0
    %v1870 = vsel %vm174, %v1864, 0
    %v1873 = vsel %vm174, %v1865, 0
    %1875 = vmatprep.subr.bf16.mxu0 %v1873
    %1876 = vmatpush1.bf16.msra.mxu0 %v1870
    %1877 = vmatprep.subr.bf16.mxu0 0
    %1878 = vmatpush1.bf16.msra.mxu0 0
    %1879 = vmatprep.subr.bf16.mxu0 0
    %1880 = vmatpush1.bf16.msra.mxu0 0
    %1881 = vmatprep.subr.bf16.mxu0 0
    %1882 = vmatpush1.bf16.msra.mxu0 0
    %1883 = vmatprep.subr.bf16.mxu0 0
    %1884 = vmatpush1.bf16.msra.mxu0 0
    %1885 = vmatprep.subr.bf16.mxu0 0
    %1886 = vmatpush1.bf16.msra.mxu0 0
    %1887 = vmatprep.subr.bf16.mxu0 0
    %1888 = vmatpush1.bf16.msra.mxu0 0
    %1889 = vmatprep.subr.bf16.mxu0 0
    %1890 = vmatpush1.bf16.msra.mxu0 0
    %1891 = vmatprep.subr.bf16.mxu0 0
    %1892 = vmatpush1.bf16.msra.mxu0 0
    %1893 = vmatprep.subr.bf16.mxu0 0
    %1894 = vmatpush1.bf16.msra.mxu0 0
    %1895 = vmatprep.subr.bf16.mxu0 0
    %1896 = vmatpush1.bf16.msra.mxu0 0
    %1897 = vmatprep.subr.bf16.mxu0 0
    %1898 = vmatpush1.bf16.msra.mxu0 0
    %1899 = vmatprep.subr.bf16.mxu0 0
    %1900 = vmatpush1.bf16.msra.mxu0 0
    %1901 = vmatprep.subr.bf16.mxu0 0
    %1902 = vmatpush1.bf16.msra.mxu0 0
    %1903 = vmatprep.subr.bf16.mxu0 0
    %1904 = vmatpush1.bf16.msra.mxu0 0
    %1905 = vmatprep.subr.bf16.mxu0 0
    %1906 = vmatpush1.bf16.msra.mxu0 0
    %1907 = vmatprep.mubr.bf16.mxu0 0
    %1908 = vmatmul.mubr.bf16.gmra.mrb[0].mxu0 %v1867
    %v1909 = vpop.f32.mrb[0].mxu0
    %v1910 = vadd.f32 0.0, %v1909
    %v1911 = vpop.f32.mrb[0].mxu0
    %v1912 = vadd.f32 0.0, %v1911
    %v1913 = vpop.f32.mrb[0].mxu0
    %v1914 = vpop.f32.mrb[0].mxu0
    %1915 = vdwg.mxu0
    %v1916 = vadd.f32 %v1832, %v1910
    %v1917 = vadd.f32 %v1834, %v1912
    %v1918 = vld [vmem:[#allocation2] sm:$0x3f]
    %v1919 = vmul.bf16 %v1918, %v401
    %v1920 = vld [vmem:[%s404] sm:$0xf]
    %v1922 = vcombine.high %v1919, %v1919
    %v1924 = vunpack.c.l.s4 1983009808
    %v1925 = vunpack.c.0.s8 %v1924
    %v1926 = vlaneseq
    %v1927 = vshrl.u32 %v1926, 7
    %v1928 = vsub.s32 %v1925, %v1927
    %v1929 = vrot.slane %v1919, %v1928
    %v1931 = vunpack.c.l.s4 1983009808
    %v1932 = vunpack.c.0.s8 %v1931
    %v1933 = vlaneseq
    %v1934 = vshrl.u32 %v1933, 7
    %v1935 = vsub.s32 %v1932, %v1934
    %v1936 = vrot.slane %v1922, %v1935
    %v1937 = vcombine.high %v1929, %v1929
    %1938 = vrot.lane.b32.xlu0 %v1929, 1
    %v1939 = vpop.permute.xlu0 %1938
    %1940 = vrot.lane.b32.xlu0 %v1937, 1
    %v1941 = vpop.permute.xlu0 %1940
    %1942 = vrot.lane.b32.xlu0 %v1936, 1
    %v1943 = vpop.permute.xlu0 %1942
    %v1944 = vsel %vm429, %v1939, %v1941
    %v1945 = vsel %vm429, %v1941, %v1943
    %v1947 = vsel %vm170, %v1920, 0
    %v1950 = vsel %vm174, %v1944, 0
    %v1953 = vsel %vm174, %v1945, 0
    %1955 = vmatprep.subr.bf16.mxu0 %v1953
    %1956 = vmatpush1.bf16.msra.mxu0 %v1950
    %1957 = vmatprep.subr.bf16.mxu0 0
    %1958 = vmatpush1.bf16.msra.mxu0 0
    %1959 = vmatprep.subr.bf16.mxu0 0
    %1960 = vmatpush1.bf16.msra.mxu0 0
    %1961 = vmatprep.subr.bf16.mxu0 0
    %1962 = vmatpush1.bf16.msra.mxu0 0
    %1963 = vmatprep.subr.bf16.mxu0 0
    %1964 = vmatpush1.bf16.msra.mxu0 0
    %1965 = vmatprep.subr.bf16.mxu0 0
    %1966 = vmatpush1.bf16.msra.mxu0 0
    %1967 = vmatprep.subr.bf16.mxu0 0
    %1968 = vmatpush1.bf16.msra.mxu0 0
    %1969 = vmatprep.subr.bf16.mxu0 0
    %1970 = vmatpush1.bf16.msra.mxu0 0
    %1971 = vmatprep.subr.bf16.mxu0 0
    %1972 = vmatpush1.bf16.msra.mxu0 0
    %1973 = vmatprep.subr.bf16.mxu0 0
    %1974 = vmatpush1.bf16.msra.mxu0 0
    %1975 = vmatprep.subr.bf16.mxu0 0
    %1976 = vmatpush1.bf16.msra.mxu0 0
    %1977 = vmatprep.subr.bf16.mxu0 0
    %1978 = vmatpush1.bf16.msra.mxu0 0
    %1979 = vmatprep.subr.bf16.mxu0 0
    %1980 = vmatpush1.bf16.msra.mxu0 0
    %1981 = vmatprep.subr.bf16.mxu0 0
    %1982 = vmatpush1.bf16.msra.mxu0 0
    %1983 = vmatprep.subr.bf16.mxu0 0
    %1984 = vmatpush1.bf16.msra.mxu0 0
    %1985 = vmatprep.subr.bf16.mxu0 0
    %1986 = vmatpush1.bf16.msra.mxu0 0
    %1987 = vmatprep.mubr.bf16.mxu0 0
    %1988 = vmatmul.mubr.bf16.gmra.mrb[0].mxu0 %v1947
    %v1989 = vpop.f32.mrb[0].mxu0
    %v1990 = vadd.f32 0.0, %v1989
    %v1991 = vpop.f32.mrb[0].mxu0
    %v1992 = vadd.f32 0.0, %v1991
    %v1993 = vpop.f32.mrb[0].mxu0
    %v1994 = vpop.f32.mrb[0].mxu0
    %1995 = vdwg.mxu0
    %v1996 = vadd.f32 %v1916, %v1990
    %v1997 = vadd.f32 %v1917, %v1992
    %v1998 = vld [vmem:[#allocation2 + $0x2] sm:$0xf]
    %v1999 = vld [vmem:[%s485] sm:$0xf]
    %v2002 = vunpack.c.l.s4 1983009808
    %v2003 = vunpack.c.0.s8 %v2002
    %v2004 = vlaneseq
    %v2005 = vshrl.u32 %v2004, 7
    %v2006 = vsub.s32 %v2003, %v2005
    %v2007 = vrot.slane %v1998, %v2006
    %v2008 = vcombine.high %v2007, %v2007
    %v2010 = vsel %vm170, %v1999, 0
    %v2013 = vsel %vm174, %v2007, 0
    %v2016 = vsel %vm174, %v2008, 0
    %2018 = vmatprep.subr.bf16.mxu0 %v2016
    %2019 = vmatpush1.bf16.msra.mxu0 %v2013
    %2020 = vmatprep.subr.bf16.mxu0 0
    %2021 = vmatpush1.bf16.msra.mxu0 0
    %2022 = vmatprep.subr.bf16.mxu0 0
    %2023 = vmatpush1.bf16.msra.mxu0 0
    %2024 = vmatprep.subr.bf16.mxu0 0
    %2025 = vmatpush1.bf16.msra.mxu0 0
    %2026 = vmatprep.subr.bf16.mxu0 0
    %2027 = vmatpush1.bf16.msra.mxu0 0
    %2028 = vmatprep.subr.bf16.mxu0 0
    %2029 = vmatpush1.bf16.msra.mxu0 0
    %2030 = vmatprep.subr.bf16.mxu0 0
    %2031 = vmatpush1.bf16.msra.mxu0 0
    %2032 = vmatprep.subr.bf16.mxu0 0
    %2033 = vmatpush1.bf16.msra.mxu0 0
    %2034 = vmatprep.subr.bf16.mxu0 0
    %2035 = vmatpush1.bf16.msra.mxu0 0
    %2036 = vmatprep.subr.bf16.mxu0 0
    %2037 = vmatpush1.bf16.msra.mxu0 0
    %2038 = vmatprep.subr.bf16.mxu0 0
    %2039 = vmatpush1.bf16.msra.mxu0 0
    %2040 = vmatprep.subr.bf16.mxu0 0
    %2041 = vmatpush1.bf16.msra.mxu0 0
    %2042 = vmatprep.subr.bf16.mxu0 0
    %2043 = vmatpush1.bf16.msra.mxu0 0
    %2044 = vmatprep.subr.bf16.mxu0 0
    %2045 = vmatpush1.bf16.msra.mxu0 0
    %2046 = vmatprep.subr.bf16.mxu0 0
    %2047 = vmatpush1.bf16.msra.mxu0 0
    %2048 = vmatprep.subr.bf16.mxu0 0
    %2049 = vmatpush1.bf16.msra.mxu0 0
    %2050 = vmatprep.mubr.bf16.mxu0 0
    %2051 = vmatmul.mubr.bf16.gmra.mrb[0].mxu0 %v2010
    %v2052 = vpop.f32.mrb[0].mxu0
    %v2053 = vadd.f32 0.0, %v2052
    %v2054 = vpop.f32.mrb[0].mxu0
    %v2055 = vadd.f32 0.0, %v2054
    %v2056 = vpop.f32.mrb[0].mxu0
    %v2057 = vpop.f32.mrb[0].mxu0
    %2058 = vdwg.mxu0
    %v2059 = vadd.f32 %v1996, %v2053
    %v2060 = vadd.f32 %v1997, %v2055
    %v2061 = vld [vmem:[#allocation2 + $0x2] sm:$0x3f]
    %v2062 = vmul.bf16 %v2061, %v552
    %v2063 = vld [vmem:[%s555] sm:$0xf]
    %v2065 = vcombine.high %v2062, %v2062
    %v2067 = vunpack.c.l.s4 1983009808
    %v2068 = vunpack.c.0.s8 %v2067
    %v2069 = vlaneseq
    %v2070 = vshrl.u32 %v2069, 7
    %v2071 = vsub.s32 %v2068, %v2070
    %v2072 = vrot.slane %v2062, %v2071
    %v2074 = vunpack.c.l.s4 1983009808
    %v2075 = vunpack.c.0.s8 %v2074
    %v2076 = vlaneseq
    %v2077 = vshrl.u32 %v2076, 7
    %v2078 = vsub.s32 %v2075, %v2077
    %v2079 = vrot.slane %v2065, %v2078
    %v2080 = vcombine.high %v2072, %v2072
    %2081 = vrot.lane.b32.xlu0 %v2072, 127
    %v2082 = vpop.permute.xlu0 %2081
    %2083 = vrot.lane.b32.xlu0 %v2080, 127
    %v2084 = vpop.permute.xlu0 %2083
    %2085 = vrot.lane.b32.xlu0 %v2079, 127
    %v2086 = vpop.permute.xlu0 %2085
    %v2087 = vsel %vm400, %v2082, %v2084
    %v2088 = vsel %vm400, %v2084, %v2086
    %v2090 = vsel %vm170, %v2063, 0
    %v2093 = vsel %vm174, %v2087, 0
    %v2096 = vsel %vm174, %v2088, 0
    %2098 = vmatprep.subr.bf16.mxu0 %v2096
    %2099 = vmatpush1.bf16.msra.mxu0 %v2093
    %2100 = vmatprep.subr.bf16.mxu0 0
    %2101 = vmatpush1.bf16.msra.mxu0 0
    %2102 = vmatprep.subr.bf16.mxu0 0
    %2103 = vmatpush1.bf16.msra.mxu0 0
    %2104 = vmatprep.subr.bf16.mxu0 0
    %2105 = vmatpush1.bf16.msra.mxu0 0
    %2106 = vmatprep.subr.bf16.mxu0 0
    %2107 = vmatpush1.bf16.msra.mxu0 0
    %2108 = vmatprep.subr.bf16.mxu0 0
    %2109 = vmatpush1.bf16.msra.mxu0 0
    %2110 = vmatprep.subr.bf16.mxu0 0
    %2111 = vmatpush1.bf16.msra.mxu0 0
    %2112 = vmatprep.subr.bf16.mxu0 0
    %2113 = vmatpush1.bf16.msra.mxu0 0
    %2114 = vmatprep.subr.bf16.mxu0 0
    %2115 = vmatpush1.bf16.msra.mxu0 0
    %2116 = vmatprep.subr.bf16.mxu0 0
    %2117 = vmatpush1.bf16.msra.mxu0 0
    %2118 = vmatprep.subr.bf16.mxu0 0
    %2119 = vmatpush1.bf16.msra.mxu0 0
    %2120 = vmatprep.subr.bf16.mxu0 0
    %2121 = vmatpush1.bf16.msra.mxu0 0
    %2122 = vmatprep.subr.bf16.mxu0 0
    %2123 = vmatpush1.bf16.msra.mxu0 0
    %2124 = vmatprep.subr.bf16.mxu0 0
    %2125 = vmatpush1.bf16.msra.mxu0 0
    %2126 = vmatprep.subr.bf16.mxu0 0
    %2127 = vmatpush1.bf16.msra.mxu0 0
    %2128 = vmatprep.subr.bf16.mxu0 0
    %2129 = vmatpush1.bf16.msra.mxu0 0
    %2130 = vmatprep.mubr.bf16.mxu0 0
    %2131 = vmatmul.mubr.bf16.gmra.mrb[0].mxu0 %v2090
    %v2132 = vpop.f32.mrb[0].mxu0
    %v2133 = vadd.f32 0.0, %v2132
    %v2134 = vpop.f32.mrb[0].mxu0
    %v2135 = vadd.f32 0.0, %v2134
    %v2136 = vpop.f32.mrb[0].mxu0
    %v2137 = vpop.f32.mrb[0].mxu0
    %2138 = vdwg.mxu0
    %v2139 = vadd.f32 %v2059, %v2133
    %v2140 = vadd.f32 %v2060, %v2135
    %v2141 = vld [vmem:[#allocation2 + $0x2] sm:$0x3f]
    %v2142 = vmul.bf16 %v2141, %v638
    %v2143 = vld [vmem:[%s641] sm:$0xf]
    %v2145 = vcombine.high %v2142, %v2142
    %v2147 = vunpack.c.l.s4 1983009808
    %v2148 = vunpack.c.0.s8 %v2147
    %v2149 = vlaneseq
    %v2150 = vshrl.u32 %v2149, 7
    %v2151 = vsub.s32 %v2148, %v2150
    %v2152 = vrot.slane %v2142, %v2151
    %v2154 = vunpack.c.l.s4 1983009808
    %v2155 = vunpack.c.0.s8 %v2154
    %v2156 = vlaneseq
    %v2157 = vshrl.u32 %v2156, 7
    %v2158 = vsub.s32 %v2155, %v2157
    %v2159 = vrot.slane %v2145, %v2158
    %v2160 = vcombine.high %v2152, %v2152
    %2161 = vrot.lane.b32.xlu0 %v2152, 113
    %v2162 = vpop.permute.xlu0 %2161
    %2163 = vrot.lane.b32.xlu0 %v2160, 113
    %v2164 = vpop.permute.xlu0 %2163
    %2165 = vrot.lane.b32.xlu0 %v2159, 113
    %v2166 = vpop.permute.xlu0 %2165
    %v2167 = vsel %vm312, %v2162, %v2164
    %v2168 = vsel %vm312, %v2164, %v2166
    %v2170 = vsel %vm170, %v2143, 0
    %v2173 = vsel %vm174, %v2167, 0
    %v2176 = vsel %vm174, %v2168, 0
    %2178 = vmatprep.subr.bf16.mxu0 %v2176
    %2179 = vmatpush1.bf16.msra.mxu0 %v2173
    %2180 = vmatprep.subr.bf16.mxu0 0
    %2181 = vmatpush1.bf16.msra.mxu0 0
    %2182 = vmatprep.subr.bf16.mxu0 0
    %2183 = vmatpush1.bf16.msra.mxu0 0
    %2184 = vmatprep.subr.bf16.mxu0 0
    %2185 = vmatpush1.bf16.msra.mxu0 0
    %2186 = vmatprep.subr.bf16.mxu0 0
    %2187 = vmatpush1.bf16.msra.mxu0 0
    %2188 = vmatprep.subr.bf16.mxu0 0
    %2189 = vmatpush1.bf16.msra.mxu0 0
    %2190 = vmatprep.subr.bf16.mxu0 0
    %2191 = vmatpush1.bf16.msra.mxu0 0
    %2192 = vmatprep.subr.bf16.mxu0 0
    %2193 = vmatpush1.bf16.msra.mxu0 0
    %2194 = vmatprep.subr.bf16.mxu0 0
    %2195 = vmatpush1.bf16.msra.mxu0 0
    %2196 = vmatprep.subr.bf16.mxu0 0
    %2197 = vmatpush1.bf16.msra.mxu0 0
    %2198 = vmatprep.subr.bf16.mxu0 0
    %2199 = vmatpush1.bf16.msra.mxu0 0
    %2200 = vmatprep.subr.bf16.mxu0 0
    %2201 = vmatpush1.bf16.msra.mxu0 0
    %2202 = vmatprep.subr.bf16.mxu0 0
    %2203 = vmatpush1.bf16.msra.mxu0 0
    %2204 = vmatprep.subr.bf16.mxu0 0
    %2205 = vmatpush1.bf16.msra.mxu0 0
    %2206 = vmatprep.subr.bf16.mxu0 0
    %2207 = vmatpush1.bf16.msra.mxu0 0
    %2208 = vmatprep.subr.bf16.mxu0 0
    %2209 = vmatpush1.bf16.msra.mxu0 0
    %2210 = vmatprep.mubr.bf16.mxu0 0
    %2211 = vmatmul.mubr.bf16.gmra.mrb[0].mxu0 %v2170
    %v2212 = vpop.f32.mrb[0].mxu0
    %v2213 = vadd.f32 0.0, %v2212
    %v2214 = vpop.f32.mrb[0].mxu0
    %v2215 = vadd.f32 0.0, %v2214
    %v2216 = vpop.f32.mrb[0].mxu0
    %v2217 = vpop.f32.mrb[0].mxu0
    %2218 = vdwg.mxu0
    %v2219 = vadd.f32 %v2139, %v2213
    %v2220 = vadd.f32 %v2140, %v2215
    %v2221 = vld [vmem:[#allocation2 + $0x2] sm:$0x3f]
    %v2222 = vld [vmem:[%s721] sm:$0xf]
    %v2224 = vcombine.high %v2221, %v2221
    %v2226 = vunpack.c.l.s4 1983009808
    %v2227 = vunpack.c.0.s8 %v2226
    %v2228 = vlaneseq
    %v2229 = vshrl.u32 %v2228, 7
    %v2230 = vsub.s32 %v2227, %v2229
    %v2231 = vrot.slane %v2221, %v2230
    %v2233 = vunpack.c.l.s4 1983009808
    %v2234 = vunpack.c.0.s8 %v2233
    %v2235 = vlaneseq
    %v2236 = vshrl.u32 %v2235, 7
    %v2237 = vsub.s32 %v2234, %v2236
    %v2238 = vrot.slane %v2224, %v2237
    %v2239 = vcombine.high %v2231, %v2231
    %2240 = vrot.lane.b32.xlu0 %v2231, 112
    %v2241 = vpop.permute.xlu0 %2240
    %2242 = vrot.lane.b32.xlu0 %v2239, 112
    %v2243 = vpop.permute.xlu0 %2242
    %2244 = vrot.lane.b32.xlu0 %v2238, 112
    %v2245 = vpop.permute.xlu0 %2244
    %v2246 = vsel %vm746, %v2241, %v2243
    %v2247 = vsel %vm746, %v2243, %v2245
    %v2249 = vsel %vm170, %v2222, 0
    %v2252 = vsel %vm174, %v2246, 0
    %v2255 = vsel %vm174, %v2247, 0
    %2257 = vmatprep.subr.bf16.mxu0 %v2255
    %2258 = vmatpush1.bf16.msra.mxu0 %v2252
    %2259 = vmatprep.subr.bf16.mxu0 0
    %2260 = vmatpush1.bf16.msra.mxu0 0
    %2261 = vmatprep.subr.bf16.mxu0 0
    %2262 = vmatpush1.bf16.msra.mxu0 0
    %2263 = vmatprep.subr.bf16.mxu0 0
    %2264 = vmatpush1.bf16.msra.mxu0 0
    %2265 = vmatprep.subr.bf16.mxu0 0
    %2266 = vmatpush1.bf16.msra.mxu0 0
    %2267 = vmatprep.subr.bf16.mxu0 0
    %2268 = vmatpush1.bf16.msra.mxu0 0
    %2269 = vmatprep.subr.bf16.mxu0 0
    %2270 = vmatpush1.bf16.msra.mxu0 0
    %2271 = vmatprep.subr.bf16.mxu0 0
    %2272 = vmatpush1.bf16.msra.mxu0 0
    %2273 = vmatprep.subr.bf16.mxu0 0
    %2274 = vmatpush1.bf16.msra.mxu0 0
    %2275 = vmatprep.subr.bf16.mxu0 0
    %2276 = vmatpush1.bf16.msra.mxu0 0
    %2277 = vmatprep.subr.bf16.mxu0 0
    %2278 = vmatpush1.bf16.msra.mxu0 0
    %2279 = vmatprep.subr.bf16.mxu0 0
    %2280 = vmatpush1.bf16.msra.mxu0 0
    %2281 = vmatprep.subr.bf16.mxu0 0
    %2282 = vmatpush1.bf16.msra.mxu0 0
    %2283 = vmatprep.subr.bf16.mxu0 0
    %2284 = vmatpush1.bf16.msra.mxu0 0
    %2285 = vmatprep.subr.bf16.mxu0 0
    %2286 = vmatpush1.bf16.msra.mxu0 0
    %2287 = vmatprep.subr.bf16.mxu0 0
    %2288 = vmatpush1.bf16.msra.mxu0 0
    %2289 = vmatprep.mubr.bf16.mxu0 0
    %2290 = vmatmul.mubr.bf16.gmra.mrb[0].mxu0 %v2249
    %v2291 = vpop.f32.mrb[0].mxu0
    %v2292 = vadd.f32 0.0, %v2291
    %v2293 = vpop.f32.mrb[0].mxu0
    %v2294 = vadd.f32 0.0, %v2293
    %v2295 = vpop.f32.mrb[0].mxu0
    %v2296 = vpop.f32.mrb[0].mxu0
    %2297 = vdwg.mxu0
    %v2298 = vadd.f32 %v2219, %v2292
    %v2299 = vadd.f32 %v2220, %v2294
    %v2300 = vld [vmem:[#allocation2 + $0x2] sm:$0x3f]
    %v2301 = vmul.bf16 %v2300, %v805
    %v2302 = vld [vmem:[%s808] sm:$0xf]
    %v2304 = vcombine.high %v2301, %v2301
    %v2306 = vunpack.c.l.s4 1983009808
    %v2307 = vunpack.c.0.s8 %v2306
    %v2308 = vlaneseq
    %v2309 = vshrl.u32 %v2308, 7
    %v2310 = vsub.s32 %v2307, %v2309
    %v2311 = vrot.slane %v2301, %v2310
    %v2313 = vunpack.c.l.s4 1983009808
    %v2314 = vunpack.c.0.s8 %v2313
    %v2315 = vlaneseq
    %v2316 = vshrl.u32 %v2315, 7
    %v2317 = vsub.s32 %v2314, %v2316
    %v2318 = vrot.slane %v2304, %v2317
    %v2319 = vcombine.high %v2311, %v2311
    %2320 = vrot.lane.b32.xlu0 %v2311, 111
    %v2321 = vpop.permute.xlu0 %2320
    %2322 = vrot.lane.b32.xlu0 %v2319, 111
    %v2323 = vpop.permute.xlu0 %2322
    %2324 = vrot.lane.b32.xlu0 %v2318, 111
    %v2325 = vpop.permute.xlu0 %2324
    %v2326 = vsel %vm137, %v2321, %v2323
    %v2327 = vsel %vm137, %v2323, %v2325
    %v2329 = vsel %vm170, %v2302, 0
    %v2332 = vsel %vm174, %v2326, 0
    %v2335 = vsel %vm174, %v2327, 0
    %2337 = vmatprep.subr.bf16.mxu0 %v2335
    %2338 = vmatpush1.bf16.msra.mxu0 %v2332
    %2339 = vmatprep.subr.bf16.mxu0 0
    %2340 = vmatpush1.bf16.msra.mxu0 0
    %2341 = vmatprep.subr.bf16.mxu0 0
    %2342 = vmatpush1.bf16.msra.mxu0 0
    %2343 = vmatprep.subr.bf16.mxu0 0
    %2344 = vmatpush1.bf16.msra.mxu0 0
    %2345 = vmatprep.subr.bf16.mxu0 0
    %2346 = vmatpush1.bf16.msra.mxu0 0
    %2347 = vmatprep.subr.bf16.mxu0 0
    %2348 = vmatpush1.bf16.msra.mxu0 0
    %2349 = vmatprep.subr.bf16.mxu0 0
    %2350 = vmatpush1.bf16.msra.mxu0 0
    %2351 = vmatprep.subr.bf16.mxu0 0
    %2352 = vmatpush1.bf16.msra.mxu0 0
    %2353 = vmatprep.subr.bf16.mxu0 0
    %2354 = vmatpush1.bf16.msra.mxu0 0
    %2355 = vmatprep.subr.bf16.mxu0 0
    %2356 = vmatpush1.bf16.msra.mxu0 0
    %2357 = vmatprep.subr.bf16.mxu0 0
    %2358 = vmatpush1.bf16.msra.mxu0 0
    %2359 = vmatprep.subr.bf16.mxu0 0
    %2360 = vmatpush1.bf16.msra.mxu0 0
    %2361 = vmatprep.subr.bf16.mxu0 0
    %2362 = vmatpush1.bf16.msra.mxu0 0
    %2363 = vmatprep.subr.bf16.mxu0 0
    %2364 = vmatpush1.bf16.msra.mxu0 0
    %2365 = vmatprep.subr.bf16.mxu0 0
    %2366 = vmatpush1.bf16.msra.mxu0 0
    %2367 = vmatprep.subr.bf16.mxu0 0
    %2368 = vmatpush1.bf16.msra.mxu0 0
    %2369 = vmatprep.mubr.bf16.mxu0 0
    %2370 = vmatmul.mubr.bf16.gmra.mrb[0].mxu0 %v2329
    %v2371 = vpop.f32.mrb[0].mxu0
    %v2372 = vadd.f32 0.0, %v2371
    %v2373 = vpop.f32.mrb[0].mxu0
    %v2374 = vadd.f32 0.0, %v2373
    %v2375 = vpop.f32.mrb[0].mxu0
    %v2376 = vpop.f32.mrb[0].mxu0
    %2377 = vdwg.mxu0
    %v2378 = vadd.f32 %v2298, %v2372
    %v2379 = vadd.f32 %v2299, %v2374
    %v2380 = vld [vmem:[%s4] sm:$0xff]
    %2382 = vset.pattern.permute.xlu0 0
    %2383 = vperm.xlu0 %2382, %v2380
    %v2384 = vpop.permute.xlu0 %2383
    %v2386 = vadd.f32 %v2378, %v2384
    %v2387 = vadd.f32 %v2379, %v2384
    %v2388 = vmax.f32 %v2386, 0.0
    %v2389 = vmax.f32 %v2387, 0.0
    %v2390 = vpack.c.bf16 %v2388, %v2388
    %v2391 = vpack.c.bf16 %v2389, %v2389
    %v2394 = vunpack.c.l.b16 %v2390
    %v2395 = vunpack.c.l.b16 %v2391
    %v2396 = vpack.c.b16 %v2395, %v2394
    %2398 = vst [vmem:[#allocation3 + $0x4] sm:$0xff] %v2396
    %v2399 = vld [vmem:[#allocation3] sm:$0xff]
    %v2400 = vld [vmem:[#allocation3 + $0x8] sm:$0xf]
    %v2401 = vmul.bf16 %v2399, %v914
    %v2402 = vmul.bf16 %v2400, %v913
    %v2403 = vld [vmem:[%s5] sm:$0xf]
    %v2404 = vld [vmem:[%s920] sm:$0xf]
    %v2407 = vunpack.c.l.b16 %v2399
    %v2408 = vunpack.c.h.b16 %v2399
    %v2409 = vunpack.c.l.b16 %v2400
    %v2410 = vpack.c.b16 %v2407, %v2407
    %v2411 = vpack.c.b16 %v2408, %v2408
    %v2412 = vpack.c.b16 %v2409, %v2409
    %2413 = vrot.lane.b32.xlu0 %v2410, 16
    %v2414 = vpop.permute.xlu0 %2413
    %2415 = vrot.lane.b32.xlu0 %v2411, 16
    %v2416 = vpop.permute.xlu0 %2415
    %2417 = vrot.lane.b32.xlu0 %v2412, 16
    %v2418 = vpop.permute.xlu0 %2417
    %v2419 = vsel %vm167, %v2414, %v2416
    %v2420 = vsel %vm167, %v2416, %v2418
    %v2422 = vsel %vm938, %v2404, 0
    %v2425 = vsel %vm942, %v2419, 0
    %v2428 = vsel %vm942, %v2420, 0
    %2430 = vmatprep.subr.bf16.mxu0 %v2428
    %2431 = vmatpush1.bf16.msra.mxu0 %v2425
    %2432 = vmatprep.subr.bf16.mxu0 0
    %2433 = vmatpush1.bf16.msra.mxu0 0
    %2434 = vmatprep.subr.bf16.mxu0 0
    %2435 = vmatpush1.bf16.msra.mxu0 0
    %2436 = vmatprep.subr.bf16.mxu0 0
    %2437 = vmatpush1.bf16.msra.mxu0 0
    %2438 = vmatprep.subr.bf16.mxu0 0
    %2439 = vmatpush1.bf16.msra.mxu0 0
    %2440 = vmatprep.subr.bf16.mxu0 0
    %2441 = vmatpush1.bf16.msra.mxu0 0
    %2442 = vmatprep.subr.bf16.mxu0 0
    %2443 = vmatpush1.bf16.msra.mxu0 0
    %2444 = vmatprep.subr.bf16.mxu0 0
    %2445 = vmatpush1.bf16.msra.mxu0 0
    %2446 = vmatprep.subr.bf16.mxu0 0
    %2447 = vmatpush1.bf16.msra.mxu0 0
    %2448 = vmatprep.subr.bf16.mxu0 0
    %2449 = vmatpush1.bf16.msra.mxu0 0
    %2450 = vmatprep.subr.bf16.mxu0 0
    %2451 = vmatpush1.bf16.msra.mxu0 0
    %2452 = vmatprep.subr.bf16.mxu0 0
    %2453 = vmatpush1.bf16.msra.mxu0 0
    %2454 = vmatprep.subr.bf16.mxu0 0
    %2455 = vmatpush1.bf16.msra.mxu0 0
    %2456 = vmatprep.subr.bf16.mxu0 0
    %2457 = vmatpush1.bf16.msra.mxu0 0
    %2458 = vmatprep.subr.bf16.mxu0 0
    %2459 = vmatpush1.bf16.msra.mxu0 0
    %2460 = vmatprep.subr.bf16.mxu0 0
    %2461 = vmatpush1.bf16.msra.mxu0 0
    %2462 = vmatprep.mubr.bf16.mxu0 0
    %2463 = vmatmul.mubr.bf16.gmra.mrb[0].mxu0 %v2422
    %v2464 = vpop.f32.mrb[0].mxu0
    %v2465 = vadd.f32 0.0, %v2464
    %v2466 = vpop.f32.mrb[0].mxu0
    %v2467 = vadd.f32 0.0, %v2466
    %v2468 = vpop.f32.mrb[0].mxu0
    %v2469 = vpop.f32.mrb[0].mxu0
    %2470 = vdwg.mxu0
    %v2473 = vunpack.c.l.b16 %v2401
    %v2474 = vunpack.c.h.b16 %v2401
    %v2475 = vunpack.c.l.b16 %v2402
    %v2476 = vpack.c.b16 %v2473, %v2473
    %v2477 = vpack.c.b16 %v2474, %v2474
    %v2478 = vpack.c.b16 %v2475, %v2475
    %2479 = vrot.lane.b32.xlu0 %v2476, 17
    %v2480 = vpop.permute.xlu0 %2479
    %2481 = vrot.lane.b32.xlu0 %v2477, 17
    %v2482 = vpop.permute.xlu0 %2481
    %2483 = vrot.lane.b32.xlu0 %v2478, 17
    %v2484 = vpop.permute.xlu0 %2483
    %v2485 = vsel %vm245, %v2480, %v2482
    %v2486 = vsel %vm245, %v2482, %v2484
    %v2488 = vsel %vm938, %v2403, 0
    %v2491 = vsel %vm942, %v2485, 0
    %v2494 = vsel %vm942, %v2486, 0
    %2496 = vmatprep.subr.bf16.mxu0 %v2494
    %2497 = vmatpush1.bf16.msra.mxu0 %v2491
    %2498 = vmatprep.subr.bf16.mxu0 0
    %2499 = vmatpush1.bf16.msra.mxu0 0
    %2500 = vmatprep.subr.bf16.mxu0 0
    %2501 = vmatpush1.bf16.msra.mxu0 0
    %2502 = vmatprep.subr.bf16.mxu0 0
    %2503 = vmatpush1.bf16.msra.mxu0 0
    %2504 = vmatprep.subr.bf16.mxu0 0
    %2505 = vmatpush1.bf16.msra.mxu0 0
    %2506 = vmatprep.subr.bf16.mxu0 0
    %2507 = vmatpush1.bf16.msra.mxu0 0
    %2508 = vmatprep.subr.bf16.mxu0 0
    %2509 = vmatpush1.bf16.msra.mxu0 0
    %2510 = vmatprep.subr.bf16.mxu0 0
    %2511 = vmatpush1.bf16.msra.mxu0 0
    %2512 = vmatprep.subr.bf16.mxu0 0
    %2513 = vmatpush1.bf16.msra.mxu0 0
    %2514 = vmatprep.subr.bf16.mxu0 0
    %2515 = vmatpush1.bf16.msra.mxu0 0
    %2516 = vmatprep.subr.bf16.mxu0 0
    %2517 = vmatpush1.bf16.msra.mxu0 0
    %2518 = vmatprep.subr.bf16.mxu0 0
    %2519 = vmatpush1.bf16.msra.mxu0 0
    %2520 = vmatprep.subr.bf16.mxu0 0
    %2521 = vmatpush1.bf16.msra.mxu0 0
    %2522 = vmatprep.subr.bf16.mxu0 0
    %2523 = vmatpush1.bf16.msra.mxu0 0
    %2524 = vmatprep.subr.bf16.mxu0 0
    %2525 = vmatpush1.bf16.msra.mxu0 0
    %2526 = vmatprep.subr.bf16.mxu0 0
    %2527 = vmatpush1.bf16.msra.mxu0 0
    %2528 = vmatprep.mubr.bf16.mxu0 0
    %2529 = vmatmul.mubr.bf16.gmra.mrb[0].mxu0 %v2488
    %v2530 = vpop.f32.mrb[0].mxu0
    %v2531 = vadd.f32 %v2465, %v2530
    %v2532 = vpop.f32.mrb[0].mxu0
    %v2533 = vadd.f32 %v2467, %v2532
    %v2534 = vpop.f32.mrb[0].mxu0
    %v2535 = vpop.f32.mrb[0].mxu0
    %2536 = vdwg.mxu0
    %v2537 = vmul.bf16 %v2399, %v1062
    %v2538 = vmul.bf16 %v2400, %v1061
    %v2539 = vld [vmem:[%s1067] sm:$0xf]
    %v2542 = vunpack.c.l.b16 %v2537
    %v2543 = vunpack.c.h.b16 %v2537
    %v2544 = vunpack.c.l.b16 %v2538
    %v2545 = vpack.c.b16 %v2542, %v2542
    %v2546 = vpack.c.b16 %v2543, %v2543
    %v2547 = vpack.c.b16 %v2544, %v2544
    %2548 = vrot.lane.b32.xlu0 %v2545, 15
    %v2549 = vpop.permute.xlu0 %2548
    %2550 = vrot.lane.b32.xlu0 %v2546, 15
    %v2551 = vpop.permute.xlu0 %2550
    %2552 = vrot.lane.b32.xlu0 %v2547, 15
    %v2553 = vpop.permute.xlu0 %2552
    %v2554 = vsel %vm341, %v2549, %v2551
    %v2555 = vsel %vm341, %v2551, %v2553
    %v2557 = vsel %vm938, %v2539, 0
    %v2560 = vsel %vm942, %v2554, 0
    %v2563 = vsel %vm942, %v2555, 0
    %2565 = vmatprep.subr.bf16.mxu0 %v2563
    %2566 = vmatpush1.bf16.msra.mxu0 %v2560
    %2567 = vmatprep.subr.bf16.mxu0 0
    %2568 = vmatpush1.bf16.msra.mxu0 0
    %2569 = vmatprep.subr.bf16.mxu0 0
    %2570 = vmatpush1.bf16.msra.mxu0 0
    %2571 = vmatprep.subr.bf16.mxu0 0
    %2572 = vmatpush1.bf16.msra.mxu0 0
    %2573 = vmatprep.subr.bf16.mxu0 0
    %2574 = vmatpush1.bf16.msra.mxu0 0
    %2575 = vmatprep.subr.bf16.mxu0 0
    %2576 = vmatpush1.bf16.msra.mxu0 0
    %2577 = vmatprep.subr.bf16.mxu0 0
    %2578 = vmatpush1.bf16.msra.mxu0 0
    %2579 = vmatprep.subr.bf16.mxu0 0
    %2580 = vmatpush1.bf16.msra.mxu0 0
    %2581 = vmatprep.subr.bf16.mxu0 0
    %2582 = vmatpush1.bf16.msra.mxu0 0
    %2583 = vmatprep.subr.bf16.mxu0 0
    %2584 = vmatpush1.bf16.msra.mxu0 0
    %2585 = vmatprep.subr.bf16.mxu0 0
    %2586 = vmatpush1.bf16.msra.mxu0 0
    %2587 = vmatprep.subr.bf16.mxu0 0
    %2588 = vmatpush1.bf16.msra.mxu0 0
    %2589 = vmatprep.subr.bf16.mxu0 0
    %2590 = vmatpush1.bf16.msra.mxu0 0
    %2591 = vmatprep.subr.bf16.mxu0 0
    %2592 = vmatpush1.bf16.msra.mxu0 0
    %2593 = vmatprep.subr.bf16.mxu0 0
    %2594 = vmatpush1.bf16.msra.mxu0 0
    %2595 = vmatprep.subr.bf16.mxu0 0
    %2596 = vmatpush1.bf16.msra.mxu0 0
    %2597 = vmatprep.mubr.bf16.mxu0 0
    %2598 = vmatmul.mubr.bf16.gmra.mrb[0].mxu0 %v2557
    %v2599 = vpop.f32.mrb[0].mxu0
    %v2600 = vadd.f32 0.0, %v2599
    %v2601 = vpop.f32.mrb[0].mxu0
    %v2602 = vadd.f32 0.0, %v2601
    %v2603 = vpop.f32.mrb[0].mxu0
    %v2604 = vpop.f32.mrb[0].mxu0
    %2605 = vdwg.mxu0
    %v2606 = vadd.f32 %v2531, %v2600
    %v2607 = vadd.f32 %v2533, %v2602
    %v2608 = vmul.bf16 %v2399, %v1140
    %v2609 = vmul.bf16 %v2400, %v1139
    %v2610 = vld [vmem:[%s1145] sm:$0xf]
    %v2613 = vunpack.c.l.b16 %v2608
    %v2614 = vunpack.c.h.b16 %v2608
    %v2615 = vunpack.c.l.b16 %v2609
    %v2616 = vpack.c.b16 %v2613, %v2613
    %v2617 = vpack.c.b16 %v2614, %v2614
    %v2618 = vpack.c.b16 %v2615, %v2615
    %2619 = vrot.lane.b32.xlu0 %v2616, 1
    %v2620 = vpop.permute.xlu0 %2619
    %2621 = vrot.lane.b32.xlu0 %v2617, 1
    %v2622 = vpop.permute.xlu0 %2621
    %2623 = vrot.lane.b32.xlu0 %v2618, 1
    %v2624 = vpop.permute.xlu0 %2623
    %v2625 = vsel %vm429, %v2620, %v2622
    %v2626 = vsel %vm429, %v2622, %v2624
    %v2628 = vsel %vm938, %v2610, 0
    %v2631 = vsel %vm942, %v2625, 0
    %v2634 = vsel %vm942, %v2626, 0
    %2636 = vmatprep.subr.bf16.mxu0 %v2634
    %2637 = vmatpush1.bf16.msra.mxu0 %v2631
    %2638 = vmatprep.subr.bf16.mxu0 0
    %2639 = vmatpush1.bf16.msra.mxu0 0
    %2640 = vmatprep.subr.bf16.mxu0 0
    %2641 = vmatpush1.bf16.msra.mxu0 0
    %2642 = vmatprep.subr.bf16.mxu0 0
    %2643 = vmatpush1.bf16.msra.mxu0 0
    %2644 = vmatprep.subr.bf16.mxu0 0
    %2645 = vmatpush1.bf16.msra.mxu0 0
    %2646 = vmatprep.subr.bf16.mxu0 0
    %2647 = vmatpush1.bf16.msra.mxu0 0
    %2648 = vmatprep.subr.bf16.mxu0 0
    %2649 = vmatpush1.bf16.msra.mxu0 0
    %2650 = vmatprep.subr.bf16.mxu0 0
    %2651 = vmatpush1.bf16.msra.mxu0 0
    %2652 = vmatprep.subr.bf16.mxu0 0
    %2653 = vmatpush1.bf16.msra.mxu0 0
    %2654 = vmatprep.subr.bf16.mxu0 0
    %2655 = vmatpush1.bf16.msra.mxu0 0
    %2656 = vmatprep.subr.bf16.mxu0 0
    %2657 = vmatpush1.bf16.msra.mxu0 0
    %2658 = vmatprep.subr.bf16.mxu0 0
    %2659 = vmatpush1.bf16.msra.mxu0 0
    %2660 = vmatprep.subr.bf16.mxu0 0
    %2661 = vmatpush1.bf16.msra.mxu0 0
    %2662 = vmatprep.subr.bf16.mxu0 0
    %2663 = vmatpush1.bf16.msra.mxu0 0
    %2664 = vmatprep.subr.bf16.mxu0 0
    %2665 = vmatpush1.bf16.msra.mxu0 0
    %2666 = vmatprep.subr.bf16.mxu0 0
    %2667 = vmatpush1.bf16.msra.mxu0 0
    %2668 = vmatprep.mubr.bf16.mxu0 0
    %2669 = vmatmul.mubr.bf16.gmra.mrb[0].mxu0 %v2628
    %v2670 = vpop.f32.mrb[0].mxu0
    %v2671 = vadd.f32 0.0, %v2670
    %v2672 = vpop.f32.mrb[0].mxu0
    %v2673 = vadd.f32 0.0, %v2672
    %v2674 = vpop.f32.mrb[0].mxu0
    %v2675 = vpop.f32.mrb[0].mxu0
    %2676 = vdwg.mxu0
    %v2677 = vadd.f32 %v2606, %v2671
    %v2678 = vadd.f32 %v2607, %v2673
    %v2679 = vld [vmem:[#allocation3 + $0x4] sm:$0xff]
    %v2680 = vld [vmem:[%s1216] sm:$0xf]
    %v2682 = vunpack.c.l.b16 %v2679
    %v2683 = vunpack.c.h.b16 %v2679
    %v2684 = vpack.c.b16 %v2682, %v2682
    %v2685 = vpack.c.b16 %v2683, %v2683
    %v2687 = vsel %vm938, %v2680, 0
    %v2690 = vsel %vm942, %v2684, 0
    %v2693 = vsel %vm942, %v2685, 0
    %2695 = vmatprep.subr.bf16.mxu0 %v2693
    %2696 = vmatpush1.bf16.msra.mxu0 %v2690
    %2697 = vmatprep.subr.bf16.mxu0 0
    %2698 = vmatpush1.bf16.msra.mxu0 0
    %2699 = vmatprep.subr.bf16.mxu0 0
    %2700 = vmatpush1.bf16.msra.mxu0 0
    %2701 = vmatprep.subr.bf16.mxu0 0
    %2702 = vmatpush1.bf16.msra.mxu0 0
    %2703 = vmatprep.subr.bf16.mxu0 0
    %2704 = vmatpush1.bf16.msra.mxu0 0
    %2705 = vmatprep.subr.bf16.mxu0 0
    %2706 = vmatpush1.bf16.msra.mxu0 0
    %2707 = vmatprep.subr.bf16.mxu0 0
    %2708 = vmatpush1.bf16.msra.mxu0 0
    %2709 = vmatprep.subr.bf16.mxu0 0
    %2710 = vmatpush1.bf16.msra.mxu0 0
    %2711 = vmatprep.subr.bf16.mxu0 0
    %2712 = vmatpush1.bf16.msra.mxu0 0
    %2713 = vmatprep.subr.bf16.mxu0 0
    %2714 = vmatpush1.bf16.msra.mxu0 0
    %2715 = vmatprep.subr.bf16.mxu0 0
    %2716 = vmatpush1.bf16.msra.mxu0 0
    %2717 = vmatprep.subr.bf16.mxu0 0
    %2718 = vmatpush1.bf16.msra.mxu0 0
    %2719 = vmatprep.subr.bf16.mxu0 0
    %2720 = vmatpush1.bf16.msra.mxu0 0
    %2721 = vmatprep.subr.bf16.mxu0 0
    %2722 = vmatpush1.bf16.msra.mxu0 0
    %2723 = vmatprep.subr.bf16.mxu0 0
    %2724 = vmatpush1.bf16.msra.mxu0 0
    %2725 = vmatprep.subr.bf16.mxu0 0
    %2726 = vmatpush1.bf16.msra.mxu0 0
    %2727 = vmatprep.mubr.bf16.mxu0 0
    %2728 = vmatmul.mubr.bf16.gmra.mrb[0].mxu0 %v2687
    %v2729 = vpop.f32.mrb[0].mxu0
    %v2730 = vadd.f32 0.0, %v2729
    %v2731 = vpop.f32.mrb[0].mxu0
    %v2732 = vadd.f32 0.0, %v2731
    %v2733 = vpop.f32.mrb[0].mxu0
    %v2734 = vpop.f32.mrb[0].mxu0
    %2735 = vdwg.mxu0
    %v2736 = vadd.f32 %v2677, %v2730
    %v2737 = vadd.f32 %v2678, %v2732
    %v2738 = vld [vmem:[#allocation3 + $0x4] sm:$0xff]
    %v2739 = vld [vmem:[#allocation3 + $0xc] sm:$0xf]
    %v2740 = vmul.bf16 %v2738, %v1280
    %v2741 = vmul.bf16 %v2739, %v1279
    %v2742 = vld [vmem:[%s1285] sm:$0xf]
    %v2745 = vunpack.c.l.b16 %v2740
    %v2746 = vunpack.c.h.b16 %v2740
    %v2747 = vunpack.c.l.b16 %v2741
    %v2748 = vpack.c.b16 %v2745, %v2745
    %v2749 = vpack.c.b16 %v2746, %v2746
    %v2750 = vpack.c.b16 %v2747, %v2747
    %2751 = vrot.lane.b32.xlu0 %v2748, 127
    %v2752 = vpop.permute.xlu0 %2751
    %2753 = vrot.lane.b32.xlu0 %v2749, 127
    %v2754 = vpop.permute.xlu0 %2753
    %2755 = vrot.lane.b32.xlu0 %v2750, 127
    %v2756 = vpop.permute.xlu0 %2755
    %v2757 = vsel %vm400, %v2752, %v2754
    %v2758 = vsel %vm400, %v2754, %v2756
    %v2760 = vsel %vm938, %v2742, 0
    %v2763 = vsel %vm942, %v2757, 0
    %v2766 = vsel %vm942, %v2758, 0
    %2768 = vmatprep.subr.bf16.mxu0 %v2766
    %2769 = vmatpush1.bf16.msra.mxu0 %v2763
    %2770 = vmatprep.subr.bf16.mxu0 0
    %2771 = vmatpush1.bf16.msra.mxu0 0
    %2772 = vmatprep.subr.bf16.mxu0 0
    %2773 = vmatpush1.bf16.msra.mxu0 0
    %2774 = vmatprep.subr.bf16.mxu0 0
    %2775 = vmatpush1.bf16.msra.mxu0 0
    %2776 = vmatprep.subr.bf16.mxu0 0
    %2777 = vmatpush1.bf16.msra.mxu0 0
    %2778 = vmatprep.subr.bf16.mxu0 0
    %2779 = vmatpush1.bf16.msra.mxu0 0
    %2780 = vmatprep.subr.bf16.mxu0 0
    %2781 = vmatpush1.bf16.msra.mxu0 0
    %2782 = vmatprep.subr.bf16.mxu0 0
    %2783 = vmatpush1.bf16.msra.mxu0 0
    %2784 = vmatprep.subr.bf16.mxu0 0
    %2785 = vmatpush1.bf16.msra.mxu0 0
    %2786 = vmatprep.subr.bf16.mxu0 0
    %2787 = vmatpush1.bf16.msra.mxu0 0
    %2788 = vmatprep.subr.bf16.mxu0 0
    %2789 = vmatpush1.bf16.msra.mxu0 0
    %2790 = vmatprep.subr.bf16.mxu0 0
    %2791 = vmatpush1.bf16.msra.mxu0 0
    %2792 = vmatprep.subr.bf16.mxu0 0
    %2793 = vmatpush1.bf16.msra.mxu0 0
    %2794 = vmatprep.subr.bf16.mxu0 0
    %2795 = vmatpush1.bf16.msra.mxu0 0
    %2796 = vmatprep.subr.bf16.mxu0 0
    %2797 = vmatpush1.bf16.msra.mxu0 0
    %2798 = vmatprep.subr.bf16.mxu0 0
    %2799 = vmatpush1.bf16.msra.mxu0 0
    %2800 = vmatprep.mubr.bf16.mxu0 0
    %2801 = vmatmul.mubr.bf16.gmra.mrb[0].mxu0 %v2760
    %v2802 = vpop.f32.mrb[0].mxu0
    %v2803 = vadd.f32 0.0, %v2802
    %v2804 = vpop.f32.mrb[0].mxu0
    %v2805 = vadd.f32 0.0, %v2804
    %v2806 = vpop.f32.mrb[0].mxu0
    %v2807 = vpop.f32.mrb[0].mxu0
    %2808 = vdwg.mxu0
    %v2809 = vadd.f32 %v2736, %v2803
    %v2810 = vadd.f32 %v2737, %v2805
    %v2811 = vmul.bf16 %v2738, %v1358
    %v2812 = vmul.bf16 %v2739, %v1357
    %v2813 = vld [vmem:[%s1363] sm:$0xf]
    %v2816 = vunpack.c.l.b16 %v2811
    %v2817 = vunpack.c.h.b16 %v2811
    %v2818 = vunpack.c.l.b16 %v2812
    %v2819 = vpack.c.b16 %v2816, %v2816
    %v2820 = vpack.c.b16 %v2817, %v2817
    %v2821 = vpack.c.b16 %v2818, %v2818
    %2822 = vrot.lane.b32.xlu0 %v2819, 113
    %v2823 = vpop.permute.xlu0 %2822
    %2824 = vrot.lane.b32.xlu0 %v2820, 113
    %v2825 = vpop.permute.xlu0 %2824
    %2826 = vrot.lane.b32.xlu0 %v2821, 113
    %v2827 = vpop.permute.xlu0 %2826
    %v2828 = vsel %vm312, %v2823, %v2825
    %v2829 = vsel %vm312, %v2825, %v2827
    %v2831 = vsel %vm938, %v2813, 0
    %v2834 = vsel %vm942, %v2828, 0
    %v2837 = vsel %vm942, %v2829, 0
    %2839 = vmatprep.subr.bf16.mxu0 %v2837
    %2840 = vmatpush1.bf16.msra.mxu0 %v2834
    %2841 = vmatprep.subr.bf16.mxu0 0
    %2842 = vmatpush1.bf16.msra.mxu0 0
    %2843 = vmatprep.subr.bf16.mxu0 0
    %2844 = vmatpush1.bf16.msra.mxu0 0
    %2845 = vmatprep.subr.bf16.mxu0 0
    %2846 = vmatpush1.bf16.msra.mxu0 0
    %2847 = vmatprep.subr.bf16.mxu0 0
    %2848 = vmatpush1.bf16.msra.mxu0 0
    %2849 = vmatprep.subr.bf16.mxu0 0
    %2850 = vmatpush1.bf16.msra.mxu0 0
    %2851 = vmatprep.subr.bf16.mxu0 0
    %2852 = vmatpush1.bf16.msra.mxu0 0
    %2853 = vmatprep.subr.bf16.mxu0 0
    %2854 = vmatpush1.bf16.msra.mxu0 0
    %2855 = vmatprep.subr.bf16.mxu0 0
    %2856 = vmatpush1.bf16.msra.mxu0 0
    %2857 = vmatprep.subr.bf16.mxu0 0
    %2858 = vmatpush1.bf16.msra.mxu0 0
    %2859 = vmatprep.subr.bf16.mxu0 0
    %2860 = vmatpush1.bf16.msra.mxu0 0
    %2861 = vmatprep.subr.bf16.mxu0 0
    %2862 = vmatpush1.bf16.msra.mxu0 0
    %2863 = vmatprep.subr.bf16.mxu0 0
    %2864 = vmatpush1.bf16.msra.mxu0 0
    %2865 = vmatprep.subr.bf16.mxu0 0
    %2866 = vmatpush1.bf16.msra.mxu0 0
    %2867 = vmatprep.subr.bf16.mxu0 0
    %2868 = vmatpush1.bf16.msra.mxu0 0
    %2869 = vmatprep.subr.bf16.mxu0 0
    %2870 = vmatpush1.bf16.msra.mxu0 0
    %2871 = vmatprep.mubr.bf16.mxu0 0
    %2872 = vmatmul.mubr.bf16.gmra.mrb[0].mxu0 %v2831
    %v2873 = vpop.f32.mrb[0].mxu0
    %v2874 = vadd.f32 0.0, %v2873
    %v2875 = vpop.f32.mrb[0].mxu0
    %v2876 = vadd.f32 0.0, %v2875
    %v2877 = vpop.f32.mrb[0].mxu0
    %v2878 = vpop.f32.mrb[0].mxu0
    %2879 = vdwg.mxu0
    %v2880 = vadd.f32 %v2809, %v2874
    %v2881 = vadd.f32 %v2810, %v2876
    %v2882 = vld [vmem:[%s1433] sm:$0xf]
    %v2885 = vunpack.c.l.b16 %v2738
    %v2886 = vunpack.c.h.b16 %v2738
    %v2887 = vunpack.c.l.b16 %v2739
    %v2888 = vpack.c.b16 %v2885, %v2885
    %v2889 = vpack.c.b16 %v2886, %v2886
    %v2890 = vpack.c.b16 %v2887, %v2887
    %2891 = vrot.lane.b32.xlu0 %v2888, 112
    %v2892 = vpop.permute.xlu0 %2891
    %2893 = vrot.lane.b32.xlu0 %v2889, 112
    %v2894 = vpop.permute.xlu0 %2893
    %2895 = vrot.lane.b32.xlu0 %v2890, 112
    %v2896 = vpop.permute.xlu0 %2895
    %v2897 = vsel %vm746, %v2892, %v2894
    %v2898 = vsel %vm746, %v2894, %v2896
    %v2900 = vsel %vm938, %v2882, 0
    %v2903 = vsel %vm942, %v2897, 0
    %v2906 = vsel %vm942, %v2898, 0
    %2908 = vmatprep.subr.bf16.mxu0 %v2906
    %2909 = vmatpush1.bf16.msra.mxu0 %v2903
    %2910 = vmatprep.subr.bf16.mxu0 0
    %2911 = vmatpush1.bf16.msra.mxu0 0
    %2912 = vmatprep.subr.bf16.mxu0 0
    %2913 = vmatpush1.bf16.msra.mxu0 0
    %2914 = vmatprep.subr.bf16.mxu0 0
    %2915 = vmatpush1.bf16.msra.mxu0 0
    %2916 = vmatprep.subr.bf16.mxu0 0
    %2917 = vmatpush1.bf16.msra.mxu0 0
    %2918 = vmatprep.subr.bf16.mxu0 0
    %2919 = vmatpush1.bf16.msra.mxu0 0
    %2920 = vmatprep.subr.bf16.mxu0 0
    %2921 = vmatpush1.bf16.msra.mxu0 0
    %2922 = vmatprep.subr.bf16.mxu0 0
    %2923 = vmatpush1.bf16.msra.mxu0 0
    %2924 = vmatprep.subr.bf16.mxu0 0
    %2925 = vmatpush1.bf16.msra.mxu0 0
    %2926 = vmatprep.subr.bf16.mxu0 0
    %2927 = vmatpush1.bf16.msra.mxu0 0
    %2928 = vmatprep.subr.bf16.mxu0 0
    %2929 = vmatpush1.bf16.msra.mxu0 0
    %2930 = vmatprep.subr.bf16.mxu0 0
    %2931 = vmatpush1.bf16.msra.mxu0 0
    %2932 = vmatprep.subr.bf16.mxu0 0
    %2933 = vmatpush1.bf16.msra.mxu0 0
    %2934 = vmatprep.subr.bf16.mxu0 0
    %2935 = vmatpush1.bf16.msra.mxu0 0
    %2936 = vmatprep.subr.bf16.mxu0 0
    %2937 = vmatpush1.bf16.msra.mxu0 0
    %2938 = vmatprep.subr.bf16.mxu0 0
    %2939 = vmatpush1.bf16.msra.mxu0 0
    %2940 = vmatprep.mubr.bf16.mxu0 0
    %2941 = vmatmul.mubr.bf16.gmra.mrb[0].mxu0 %v2900
    %v2942 = vpop.f32.mrb[0].mxu0
    %v2943 = vadd.f32 0.0, %v2942
    %v2944 = vpop.f32.mrb[0].mxu0
    %v2945 = vadd.f32 0.0, %v2944
    %v2946 = vpop.f32.mrb[0].mxu0
    %v2947 = vpop.f32.mrb[0].mxu0
    %2948 = vdwg.mxu0
    %v2949 = vadd.f32 %v2880, %v2943
    %v2950 = vadd.f32 %v2881, %v2945
    %v2951 = vmul.bf16 %v2738, %v1506
    %v2952 = vmul.bf16 %v2739, %v1505
    %v2953 = vld [vmem:[%s1511] sm:$0xf]
    %v2956 = vunpack.c.l.b16 %v2951
    %v2957 = vunpack.c.h.b16 %v2951
    %v2958 = vunpack.c.l.b16 %v2952
    %v2959 = vpack.c.b16 %v2956, %v2956
    %v2960 = vpack.c.b16 %v2957, %v2957
    %v2961 = vpack.c.b16 %v2958, %v2958
    %2962 = vrot.lane.b32.xlu0 %v2959, 111
    %v2963 = vpop.permute.xlu0 %2962
    %2964 = vrot.lane.b32.xlu0 %v2960, 111
    %v2965 = vpop.permute.xlu0 %2964
    %2966 = vrot.lane.b32.xlu0 %v2961, 111
    %v2967 = vpop.permute.xlu0 %2966
    %v2968 = vsel %vm137, %v2963, %v2965
    %v2969 = vsel %vm137, %v2965, %v2967
    %v2971 = vsel %vm938, %v2953, 0
    %v2974 = vsel %vm942, %v2968, 0
    %v2977 = vsel %vm942, %v2969, 0
    %2979 = vmatprep.subr.bf16.mxu0 %v2977
    %2980 = vmatpush1.bf16.msra.mxu0 %v2974
    %2981 = vmatprep.subr.bf16.mxu0 0
    %2982 = vmatpush1.bf16.msra.mxu0 0
    %2983 = vmatprep.subr.bf16.mxu0 0
    %2984 = vmatpush1.bf16.msra.mxu0 0
    %2985 = vmatprep.subr.bf16.mxu0 0
    %2986 = vmatpush1.bf16.msra.mxu0 0
    %2987 = vmatprep.subr.bf16.mxu0 0
    %2988 = vmatpush1.bf16.msra.mxu0 0
    %2989 = vmatprep.subr.bf16.mxu0 0
    %2990 = vmatpush1.bf16.msra.mxu0 0
    %2991 = vmatprep.subr.bf16.mxu0 0
    %2992 = vmatpush1.bf16.msra.mxu0 0
    %2993 = vmatprep.subr.bf16.mxu0 0
    %2994 = vmatpush1.bf16.msra.mxu0 0
    %2995 = vmatprep.subr.bf16.mxu0 0
    %2996 = vmatpush1.bf16.msra.mxu0 0
    %2997 = vmatprep.subr.bf16.mxu0 0
    %2998 = vmatpush1.bf16.msra.mxu0 0
    %2999 = vmatprep.subr.bf16.mxu0 0
    %3000 = vmatpush1.bf16.msra.mxu0 0
    %3001 = vmatprep.subr.bf16.mxu0 0
    %3002 = vmatpush1.bf16.msra.mxu0 0
    %3003 = vmatprep.subr.bf16.mxu0 0
    %3004 = vmatpush1.bf16.msra.mxu0 0
    %3005 = vmatprep.subr.bf16.mxu0 0
    %3006 = vmatpush1.bf16.msra.mxu0 0
    %3007 = vmatprep.subr.bf16.mxu0 0
    %3008 = vmatpush1.bf16.msra.mxu0 0
    %3009 = vmatprep.subr.bf16.mxu0 0
    %3010 = vmatpush1.bf16.msra.mxu0 0
    %3011 = vmatprep.mubr.bf16.mxu0 0
    %3012 = vmatmul.mubr.bf16.gmra.mrb[0].mxu0 %v2971
    %v3013 = vpop.f32.mrb[0].mxu0
    %v3014 = vadd.f32 0.0, %v3013
    %v3015 = vpop.f32.mrb[0].mxu0
    %v3016 = vadd.f32 0.0, %v3015
    %v3017 = vpop.f32.mrb[0].mxu0
    %v3018 = vpop.f32.mrb[0].mxu0
    %3019 = vdwg.mxu0
    %v3020 = vadd.f32 %v2949, %v3014
    %v3021 = vadd.f32 %v2950, %v3016
    %v3022 = vld [vmem:[%s6] sm:$0xff]
    %3024 = vset.pattern.permute.xlu0 0
    %3025 = vperm.xlu0 %3024, %v3022
    %v3026 = vpop.permute.xlu0 %3025
    %v3028 = vadd.f32 %v3020, %v3026
    %v3029 = vadd.f32 %v3021, %v3026
    %s3030 = scalar_lea.vmem %s1, 16
    %v3031 = vld [vmem:[%s3030] sm:$0xff]
    %v3032 = vld [vmem:[%s3030 + $0x8] sm:$0xff]
    %v3033 = vsub.f32 %v3028, %v3031
    %v3034 = vsub.f32 %v3029, %v3032
    %v3035 = vmul.f32 %v3033, %v3033
    %v3036 = vmul.f32 %v3034, %v3034
    %v3037 = vrot.slane %v3035, 4
    %v3038 = vadd.f32 %v3035, %v3037
    %v3039 = vrot.slane %v3038, 2
    %v3040 = vadd.f32 %v3038, %v3039
    %v3041 = vrot.slane %v3040, 1
    %v3042 = vadd.f32 %v3040, %v3041
    %v3043 = vrot.slane %v3036, 4
    %v3044 = vadd.f32 %v3036, %v3043
    %v3045 = vrot.slane %v3044, 2
    %v3046 = vadd.f32 %v3044, %v3045
    %v3047 = vrot.slane %v3046, 1
    %v3048 = vadd.f32 %v3046, %v3047
    %v3051 = vcombine.low %v3042, %v3048
    %v3053 = vunpack.c.l.s4 1966171168
    %v3054 = vunpack.c.0.s8 %v3053
    %v3055 = vlaneseq
    %v3056 = vshrl.u32 %v3055, 7
    %v3057 = vsub.s32 %v3054, %v3056
    %v3058 = vrot.slane %v3051, %v3057
    %v3060 = vunpack.c.l.s4 1966171168
    %v3061 = vunpack.c.0.s8 %v3060
    %v3062 = vlaneseq
    %v3063 = vshrl.u32 %v3062, 7
    %v3064 = vsub.s32 %v3061, %v3063
    %v3065 = vrot.slane %v3058, %v3064
    %s3067 = scalar_lea.vmem [#allocation4], 2
    %3068 = vst.msk [vmem:[%s3067] sm:$0x3] %vm1628, %v3065
    // Predicated region
    $region30: #{tpu_custom_call.1} parent=1 // pred_check
      _
    $region31: #{tpu_custom_call.1} parent=1 // pred_check_branch
      %3070 = sbr.rel (0) target = $region33
    $region32: #{tpu_custom_call.1} parent=1 // pred_region
      %s3072 = ssub.s32 64, 64
      %3073 = vsyncadd [#allocation5], %s3072
      %s3074 = sshll.u32 [#allocation4], 4
      %s3075 = int_to_ptr.vmem [resolvable:$true] %s3074
      %3080 = dma.vmem_to_hbm [thread:$0]  %s3075, 64, %s7, [#allocation5], 32, 32, 2
    $region33: #{tpu_custom_call.1} parent=1 // pred_fallthru
      _
    // Predicated region
    $region34: #{tpu_custom_call.1} parent=1 // pred_check
      _
    $region35: #{tpu_custom_call.1} parent=1 // pred_check_branch
      %3082 = sbr.rel (0) target = $region37
    $region36: #{tpu_custom_call.1} parent=1 // pred_region
      %3083 = dma.done [#allocation5], 64
    $region37: #{tpu_custom_call.1} parent=1 // pred_fallthru
      _
    %3084 = vsyncpa [#allocation5], 1

</llo_original>
